<compile_context>
chip_gen: v7x
topology: tpu7x:2x2x1
jax: 0.10.0
libtpu: 0.0.40
codegen_flags: <defaults>
</compile_context>

<pallas_src>
import numpy as np

import jax
import jax.numpy as jnp
from jax.experimental import pallas as pl
from jax.experimental.pallas import tpu as pltpu


def _net_kernel(x_ref, w1_ref, b1_ref, m2_ref, b2_ref, rs2_ref, cs2_ref,
                m3_ref, b3_ref, rs3c_ref, kcls_ref, sel_ref, bc_ref, o_ref):
    f32 = jnp.float32
    Wz2, P2w = cs2_ref.shape           # (conv2_W - 3, pool2_W)
    W2w = Wz2 + 3                      # conv_2 output width
    Wz3 = kcls_ref.shape[1]            # conv3_W - 3
    W3w = Wz3 + 3                      # conv_3 output width

    def elu(v):
        return jnp.where(v > 0, v, jnp.exp(jnp.minimum(v, 0.0)) - 1.0)

    # ---- conv_1 (1x1, 5->16) + BN1 + ELU: pointwise channel mix == matmul.
    h1 = elu(jnp.dot(w1_ref[...], x_ref[...],
                     preferred_element_type=f32) + b1_ref[...])              # (16, T)

    # ---- conv_2 (1->4, k=(2,32), pad=(1,0)) + BN2 + ELU: one Toeplitz matmul
    #      (height zero-pad rows are folded out of the weight matrix).
    a2 = jnp.concatenate([h1[:, kw:kw + W2w] for kw in range(32)], axis=0)   # (512, W2w)
    act2 = elu(jnp.dot(m2_ref[...], a2,
                       preferred_element_type=f32) + b2_ref[...])            # (68, W2w)

    # ---- pool_2 = MaxPool(2,4): shifted maxes + 0/1 selection matmuls.
    zh2 = jnp.maximum(act2[0:67, :], act2[1:68, :])                          # (67, W2w)
    zw2 = jnp.maximum(jnp.maximum(zh2[:, 0:Wz2], zh2[:, 1:Wz2 + 1]),
                      jnp.maximum(zh2[:, 2:Wz2 + 2], zh2[:, 3:Wz2 + 3]))     # (67, Wz2)
    p2 = jnp.dot(jnp.dot(rs2_ref[...], zw2, preferred_element_type=f32),
                 cs2_ref[...], preferred_element_type=f32)                   # (32, P2w)

    # ---- conv_3 (4->4, k=(8,4), pad=(4,0)) + BN3 + ELU: one Toeplitz matmul.
    a3 = jnp.concatenate([p2[:, kw:kw + W3w] for kw in range(4)], axis=0)    # (128, W3w)
    act3 = elu(jnp.dot(m3_ref[...], a3,
                       preferred_element_type=f32) + b3_ref[...])            # (36, W3w)

    # ---- pool_3 = MaxPool(2,4) fused with conv_classifier (4->5, k=(4,28)).
    zh3 = jnp.maximum(act3[0:35, :], act3[1:36, :])                          # (35, W3w)
    zw3 = jnp.maximum(jnp.maximum(zh3[:, 0:Wz3], zh3[:, 1:Wz3 + 1]),
                      jnp.maximum(zh3[:, 2:Wz3 + 2], zh3[:, 3:Wz3 + 3]))     # (35, Wz3)
    rep = jnp.dot(rs3c_ref[...], zw3, preferred_element_type=f32)            # (80, Wz3)
    cls = jnp.dot(sel_ref[...], kcls_ref[...] * rep,
                  preferred_element_type=f32)                                # (5, Wz3)
    o_ref[...] = jnp.sum(cls, axis=1, keepdims=True) + bc_ref[...]           # (5, 1)


@jax.jit
def net_forward(x, params):
    """x: (B, 5, T) float32 (Ensure4d adds the trailing 1 implicitly).

    Returns (sigmoid(logits) of shape (B, 5), flatten(logits) of shape (B*5,)),
    matching the PyTorch module's (squeezed sigmoid output, torch.flatten(x)).
    """
    (w1, b1, g1, be1, rm1, rv1,
     w2, b2, g2, be2, rm2, rv2,
     w3, b3, g3, be3, rm3, rv3,
     wc, bc) = params
    f32 = jnp.float32
    B, c_in, T = x.shape
    assert c_in == 5
    eps = 1e-5

    W2w = T - 31            # conv_2 output width
    P2w = W2w // 4          # pool_2 output width
    W3w = P2w - 3           # conv_3 output width
    P3w = W3w // 4          # pool_3 output width
    Wz2 = W2w - 3
    Wz3 = W3w - 3
    assert P3w == 28, "time length must yield a 28-wide pool_3 output (e.g. T=496)"

    # ---- fold eval-mode BatchNorm into the preceding conv weights / biases.
    s1 = g1 / jnp.sqrt(rv1 + eps)
    w1f = (w1.reshape(16, 5) * s1[:, None]).astype(f32)                 # (16, 5)
    b1f = ((b1 - rm1) * s1 + be1).reshape(16, 1).astype(f32)

    s2 = g2 / jnp.sqrt(rv2 + eps)
    w2f = (w2[:, 0] * s2[:, None, None]).astype(f32)                    # (4, 2, 32)
    b2f = ((b2 - rm2) * s2 + be2).astype(f32)

    s3 = g3 / jnp.sqrt(rv3 + eps)
    w3f = (w3 * s3[:, None, None, None]).astype(f32)                    # (4, 4, 8, 4)
    b3f = ((b3 - rm3) * s3 + be3).astype(f32)

    # ---- conv_2 as one matmul: block-Toeplitz weight (68, 512); the height
    #      zero-pad rows are dropped (they only multiply zeros).
    co_g, kh_g, kw_g, h_g = np.meshgrid(np.arange(4), np.arange(2),
                                        np.arange(32), np.arange(17),
                                        indexing="ij")
    i_g = h_g + kh_g - 1
    ok = (i_g >= 0) & (i_g <= 15)
    m2 = jnp.zeros((68, 512), f32).at[
        (co_g * 17 + h_g)[ok], (kw_g * 16 + i_g)[ok]
    ].set(w2f[co_g[ok], kh_g[ok], kw_g[ok]])
    b2col = jnp.repeat(b2f, 17).reshape(68, 1)

    # ---- conv_3 as one matmul: block-Toeplitz weight (36, 128), pad rows dropped.
    co_g, ci_g, kh_g, kw_g, h_g = np.meshgrid(np.arange(4), np.arange(4),
                                              np.arange(8), np.arange(4),
                                              np.arange(9), indexing="ij")
    i_g = h_g + kh_g - 4
    ok = (i_g >= 0) & (i_g <= 7)
    m3 = jnp.zeros((36, 128), f32).at[
        (co_g * 9 + h_g)[ok], (kw_g * 32 + ci_g * 8 + i_g)[ok]
    ].set(w3f[co_g[ok], ci_g[ok], kh_g[ok], kw_g[ok]])
    b3col = jnp.repeat(b3f, 9).reshape(36, 1)

    # ---- exact 0/1 selection matrices for the stride-(2,4) max-pool picks.
    r = np.arange(32)
    rs2 = np.zeros((32, 67), np.float32)
    rs2[r, (r // 8) * 17 + (r % 8) * 2] = 1.0
    j = np.arange(P2w)
    cs2 = np.zeros((Wz2, P2w), np.float32)
    cs2[4 * j, j] = 1.0

    # ---- pool_3 row selection replicated once per classifier output (80, 35):
    #      row o*16 + r (r = ci*4 + kh) picks max-pooled-height row of act3.
    o_i, r_i = np.meshgrid(np.arange(5), np.arange(16), indexing="ij")
    rs3c = np.zeros((80, 35), np.float32)
    rs3c[(o_i * 16 + r_i).ravel(),
         ((r_i // 4) * 9 + (r_i % 4) * 2).ravel()] = 1.0

    # ---- classifier weights expanded onto the pre-column-pool lane grid and
    #      the per-output row-group selector (fuses pool_3 W-select + classifier).
    kcls = jnp.zeros((80, Wz3), f32).at[:, 0:4 * P3w:4].set(
        wc.reshape(80, P3w).astype(f32))
    sel = np.zeros((5, 80), np.float32)
    sel[o_i.ravel(), (o_i * 16 + r_i).ravel()] = 1.0
    bc_col = bc.reshape(5, 1).astype(f32)

    logits = pl.pallas_call(
        _net_kernel,
        out_shape=jax.ShapeDtypeStruct((B, 5, 1), f32),
        grid_spec=pltpu.PrefetchScalarGridSpec(
            num_scalar_prefetch=0,
            grid=(B,),
            in_specs=[
                pl.BlockSpec((None, 5, T), lambda b: (b, 0, 0)),
                pl.BlockSpec((16, 5), lambda b: (0, 0)),
                pl.BlockSpec((16, 1), lambda b: (0, 0)),
                pl.BlockSpec((68, 512), lambda b: (0, 0)),
                pl.BlockSpec((68, 1), lambda b: (0, 0)),
                pl.BlockSpec((32, 67), lambda b: (0, 0)),
                pl.BlockSpec((Wz2, P2w), lambda b: (0, 0)),
                pl.BlockSpec((36, 128), lambda b: (0, 0)),
                pl.BlockSpec((36, 1), lambda b: (0, 0)),
                pl.BlockSpec((80, 35), lambda b: (0, 0)),
                pl.BlockSpec((80, Wz3), lambda b: (0, 0)),
                pl.BlockSpec((5, 80), lambda b: (0, 0)),
                pl.BlockSpec((5, 1), lambda b: (0, 0)),
            ],
            out_specs=pl.BlockSpec((None, 5, 1), lambda b: (b, 0, 0)),
        ),
        compiler_params=pltpu.CompilerParams(
            dimension_semantics=("parallel",)),
    )(x.astype(f32), w1f, b1f, m2, b2col,
      jnp.asarray(rs2), jnp.asarray(cs2), m3, b3col,
      jnp.asarray(rs3c), kcls, jnp.asarray(sel), bc_col)

    logits = logits[:, :, 0]                         # (B, 5), pre-sigmoid
    return jax.nn.sigmoid(logits), logits.reshape(-1)


def reference_forward(x, params):
    """Pure-JAX (XLA conv) reference with identical eval-mode semantics."""
    (w1, b1, g1, be1, rm1, rv1,
     w2, b2, g2, be2, rm2, rv2,
     w3, b3, g3, be3, rm3, rv3,
     wc, bc) = params
    eps = 1e-5
    hi = jax.lax.Precision.HIGHEST

    def conv(y, w, pad):
        return jax.lax.conv_general_dilated(
            y, w, (1, 1), pad, dimension_numbers=("NCHW", "OIHW", "NCHW"),
            precision=hi)

    def bn(y, g, be, m, v):
        s = g / jnp.sqrt(v + eps)
        return (y - m[None, :, None, None]) * s[None, :, None, None] \
            + be[None, :, None, None]

    def pool(y):
        return jax.lax.reduce_window(y, -jnp.inf, jax.lax.max,
                                     (1, 1, 2, 4), (1, 1, 2, 4), "VALID")

    y = x[..., None]                                    # Ensure4d: (B,5,T,1)
    y = conv(y, w1, "VALID") + b1[None, :, None, None]
    y = jax.nn.elu(bn(y, g1, be1, rm1, rv1))
    y = jnp.transpose(y, (0, 3, 1, 2))                  # b c t 1 -> b 1 c t
    y = conv(y, w2, ((1, 1), (0, 0))) + b2[None, :, None, None]
    y = pool(jax.nn.elu(bn(y, g2, be2, rm2, rv2)))
    y = conv(y, w3, ((4, 4), (0, 0))) + b3[None, :, None, None]
    y = pool(jax.nn.elu(bn(y, g3, be3, rm3, rv3)))
    logits4 = conv(y, wc, "VALID") + bc[None, :, None, None]   # (B,5,1,1)
    return jax.nn.sigmoid(logits4)[:, :, 0, 0], logits4.reshape(-1)


if __name__ == "__main__":
    B, C, T = 2, 5, 496   # T must satisfy the module's shape chain (pool3 W == 28)
    keys = jax.random.split(jax.random.PRNGKey(0), 25)
    k = iter(keys)
    n = jax.random.normal
    u = jax.random.uniform

    x = n(next(k), (B, C, T), jnp.float32)

    params = (
        0.3 * n(next(k), (16, 5, 1, 1), jnp.float32),   # conv_1.weight
        0.1 * n(next(k), (16,), jnp.float32),           # conv_1.bias
        1.0 + 0.1 * n(next(k), (16,), jnp.float32),     # bnorm_1.weight
        0.1 * n(next(k), (16,), jnp.float32),           # bnorm_1.bias
        0.1 * n(next(k), (16,), jnp.float32),           # bnorm_1.running_mean
        u(next(k), (16,), jnp.float32, 0.5, 1.5),       # bnorm_1.running_var
        0.1 * n(next(k), (4, 1, 2, 32), jnp.float32),   # conv_2.weight
        0.1 * n(next(k), (4,), jnp.float32),            # conv_2.bias
        1.0 + 0.1 * n(next(k), (4,), jnp.float32),      # bnorm_2.weight
        0.1 * n(next(k), (4,), jnp.float32),            # bnorm_2.bias
        0.1 * n(next(k), (4,), jnp.float32),            # bnorm_2.running_mean
        u(next(k), (4,), jnp.float32, 0.5, 1.5),        # bnorm_2.running_var
        0.1 * n(next(k), (4, 4, 8, 4), jnp.float32),    # conv_3.weight
        0.1 * n(next(k), (4,), jnp.float32),            # conv_3.bias
        1.0 + 0.1 * n(next(k), (4,), jnp.float32),      # bnorm_3.weight
        0.1 * n(next(k), (4,), jnp.float32),            # bnorm_3.bias
        0.1 * n(next(k), (4,), jnp.float32),            # bnorm_3.running_mean
        u(next(k), (4,), jnp.float32, 0.5, 1.5),        # bnorm_3.running_var
        0.1 * n(next(k), (5, 4, 4, 28), jnp.float32),   # conv_classifier.weight
        0.1 * n(next(k), (5,), jnp.float32),            # conv_classifier.bias
    )

    # TODO(synk): Dropout layers (p=0.25) are identity in eval mode and omitted.
    probs, flat = net_forward(x, params)
    probs = jax.block_until_ready(probs)
    flat = jax.block_until_ready(flat)

    probs_ref, flat_ref = reference_forward(x, params)
    probs_ref = jax.block_until_ready(probs_ref)
    flat_ref = jax.block_until_ready(flat_ref)

    assert probs.shape == (B, 5), probs.shape
    assert flat.shape == (B * 5,), flat.shape
    err_p = float(jnp.max(jnp.abs(probs - probs_ref)))
    err_f = float(jnp.max(jnp.abs(flat - flat_ref)))
    assert err_p < 2e-2 and err_f < 2e-2, (err_p, err_f)
    print("KERNEL_OK")
</pallas_src>

<mosaic_0001>
module attributes {stable_mosaic.version = 11 : i64} {
  func.func @_net_kernel(%arg0: i32, %arg1: memref<1x5x496xf32, #tpu.memory_space<vmem>>, %arg2: memref<16x5xf32, #tpu.memory_space<vmem>>, %arg3: memref<16x1xf32, #tpu.memory_space<vmem>>, %arg4: memref<68x512xf32, #tpu.memory_space<vmem>>, %arg5: memref<68x1xf32, #tpu.memory_space<vmem>>, %arg6: memref<32x67xf32, #tpu.memory_space<vmem>>, %arg7: memref<462x116xf32, #tpu.memory_space<vmem>>, %arg8: memref<36x128xf32, #tpu.memory_space<vmem>>, %arg9: memref<36x1xf32, #tpu.memory_space<vmem>>, %arg10: memref<80x35xf32, #tpu.memory_space<vmem>>, %arg11: memref<80x110xf32, #tpu.memory_space<vmem>>, %arg12: memref<5x80xf32, #tpu.memory_space<vmem>>, %arg13: memref<5x1xf32, #tpu.memory_space<vmem>>, %arg14: memref<1x5x1xf32, #tpu.memory_space<vmem>>) attributes {dimension_semantics = [#tpu.dimension_semantics<parallel>], iteration_bounds = array<i64: 2>, scalar_prefetch = 0 : i64, scratch_operands = 0 : i64, tpu.core_type = #tpu.core_type<tc>, window_params = [{transform_indices = @transform_0, window_bounds = array<i64: 1, 5, 496>}, {pipeline_mode = #tpu.pipeline_mode<synchronous>, transform_indices = @transform_1, window_bounds = array<i64: 16, 5>}, {pipeline_mode = #tpu.pipeline_mode<synchronous>, transform_indices = @transform_2, window_bounds = array<i64: 16, 1>}, {pipeline_mode = #tpu.pipeline_mode<synchronous>, transform_indices = @transform_3, window_bounds = array<i64: 68, 512>}, {pipeline_mode = #tpu.pipeline_mode<synchronous>, transform_indices = @transform_4, window_bounds = array<i64: 68, 1>}, {pipeline_mode = #tpu.pipeline_mode<synchronous>, transform_indices = @transform_5, window_bounds = array<i64: 32, 67>}, {pipeline_mode = #tpu.pipeline_mode<synchronous>, transform_indices = @transform_6, window_bounds = array<i64: 462, 116>}, {pipeline_mode = #tpu.pipeline_mode<synchronous>, transform_indices = @transform_7, window_bounds = array<i64: 36, 128>}, {pipeline_mode = #tpu.pipeline_mode<synchronous>, transform_indices = @transform_8, window_bounds = array<i64: 36, 1>}, {pipeline_mode = #tpu.pipeline_mode<synchronous>, transform_indices = @transform_9, window_bounds = array<i64: 80, 35>}, {pipeline_mode = #tpu.pipeline_mode<synchronous>, transform_indices = @transform_10, window_bounds = array<i64: 80, 110>}, {pipeline_mode = #tpu.pipeline_mode<synchronous>, transform_indices = @transform_11, window_bounds = array<i64: 5, 80>}, {pipeline_mode = #tpu.pipeline_mode<synchronous>, transform_indices = @transform_12, window_bounds = array<i64: 5, 1>}, {transform_indices = @transform_13, window_bounds = array<i64: 1, 5, 1>}]} {
    %c0 = arith.constant 0 : index
    %c0_0 = arith.constant 0 : index
    %0 = vector.load %arg2[%c0, %c0_0] : memref<16x5xf32, #tpu.memory_space<vmem>>, vector<16x5xf32>
    %c0_1 = arith.constant 0 : index
    %c0_2 = arith.constant 0 : index
    %c0_3 = arith.constant 0 : index
    %1 = vector.load %arg1[%c0_1, %c0_2, %c0_3] : memref<1x5x496xf32, #tpu.memory_space<vmem>>, vector<1x5x496xf32>
    %2 = vector.shape_cast %1 : vector<1x5x496xf32> to vector<5x496xf32>
    %cst = arith.constant dense<0.000000e+00> : vector<16x496xf32>
    %3 = tpu.matmul %0, %2, %cst {dimension_numbers = #tpu.dot_dimension_numbers<[1], [0], [0], [1], [0, 0, 1, 1], [], []>} : vector<16x5xf32>, vector<5x496xf32>, vector<16x496xf32> -> vector<16x496xf32>
    %c0_4 = arith.constant 0 : index
    %c0_5 = arith.constant 0 : index
    %4 = vector.load %arg3[%c0_4, %c0_5] : memref<16x1xf32, #tpu.memory_space<vmem>>, vector<16x1xf32>
    %5 = vector.broadcast %4 : vector<16x1xf32> to vector<16x496xf32>
    %6 = arith.addf %3, %5 : vector<16x496xf32>
    %cst_6 = arith.constant 0.000000e+00 : f32
    %7 = vector.broadcast %cst_6 : f32 to vector<16x496xf32>
    %8 = arith.cmpf ogt, %6, %7 : vector<16x496xf32>
    %cst_7 = arith.constant 0.000000e+00 : f32
    %9 = vector.broadcast %cst_7 : f32 to vector<16x496xf32>
    %10 = arith.minimumf %6, %9 : vector<16x496xf32>
    %11 = math.exp %10 : vector<16x496xf32>
    %cst_8 = arith.constant 1.000000e+00 : f32
    %12 = vector.broadcast %cst_8 : f32 to vector<16x496xf32>
    %13 = arith.subf %11, %12 : vector<16x496xf32>
    %14 = arith.select %8, %6, %13 : vector<16x496xi1>, vector<16x496xf32>
    %15 = vector.extract_strided_slice %14 {offsets = [0, 0], sizes = [16, 465], strides = [1, 1]} : vector<16x496xf32> to vector<16x465xf32>
    %16 = vector.extract_strided_slice %14 {offsets = [0, 1], sizes = [16, 465], strides = [1, 1]} : vector<16x496xf32> to vector<16x465xf32>
    %17 = vector.extract_strided_slice %14 {offsets = [0, 2], sizes = [16, 465], strides = [1, 1]} : vector<16x496xf32> to vector<16x465xf32>
    %18 = vector.extract_strided_slice %14 {offsets = [0, 3], sizes = [16, 465], strides = [1, 1]} : vector<16x496xf32> to vector<16x465xf32>
    %19 = vector.extract_strided_slice %14 {offsets = [0, 4], sizes = [16, 465], strides = [1, 1]} : vector<16x496xf32> to vector<16x465xf32>
    %20 = vector.extract_strided_slice %14 {offsets = [0, 5], sizes = [16, 465], strides = [1, 1]} : vector<16x496xf32> to vector<16x465xf32>
    %21 = vector.extract_strided_slice %14 {offsets = [0, 6], sizes = [16, 465], strides = [1, 1]} : vector<16x496xf32> to vector<16x465xf32>
    %22 = vector.extract_strided_slice %14 {offsets = [0, 7], sizes = [16, 465], strides = [1, 1]} : vector<16x496xf32> to vector<16x465xf32>
    %23 = vector.extract_strided_slice %14 {offsets = [0, 8], sizes = [16, 465], strides = [1, 1]} : vector<16x496xf32> to vector<16x465xf32>
    %24 = vector.extract_strided_slice %14 {offsets = [0, 9], sizes = [16, 465], strides = [1, 1]} : vector<16x496xf32> to vector<16x465xf32>
    %25 = vector.extract_strided_slice %14 {offsets = [0, 10], sizes = [16, 465], strides = [1, 1]} : vector<16x496xf32> to vector<16x465xf32>
    %26 = vector.extract_strided_slice %14 {offsets = [0, 11], sizes = [16, 465], strides = [1, 1]} : vector<16x496xf32> to vector<16x465xf32>
    %27 = vector.extract_strided_slice %14 {offsets = [0, 12], sizes = [16, 465], strides = [1, 1]} : vector<16x496xf32> to vector<16x465xf32>
    %28 = vector.extract_strided_slice %14 {offsets = [0, 13], sizes = [16, 465], strides = [1, 1]} : vector<16x496xf32> to vector<16x465xf32>
    %29 = vector.extract_strided_slice %14 {offsets = [0, 14], sizes = [16, 465], strides = [1, 1]} : vector<16x496xf32> to vector<16x465xf32>
    %30 = vector.extract_strided_slice %14 {offsets = [0, 15], sizes = [16, 465], strides = [1, 1]} : vector<16x496xf32> to vector<16x465xf32>
    %31 = vector.extract_strided_slice %14 {offsets = [0, 16], sizes = [16, 465], strides = [1, 1]} : vector<16x496xf32> to vector<16x465xf32>
    %32 = vector.extract_strided_slice %14 {offsets = [0, 17], sizes = [16, 465], strides = [1, 1]} : vector<16x496xf32> to vector<16x465xf32>
    %33 = vector.extract_strided_slice %14 {offsets = [0, 18], sizes = [16, 465], strides = [1, 1]} : vector<16x496xf32> to vector<16x465xf32>
    %34 = vector.extract_strided_slice %14 {offsets = [0, 19], sizes = [16, 465], strides = [1, 1]} : vector<16x496xf32> to vector<16x465xf32>
    %35 = vector.extract_strided_slice %14 {offsets = [0, 20], sizes = [16, 465], strides = [1, 1]} : vector<16x496xf32> to vector<16x465xf32>
    %36 = vector.extract_strided_slice %14 {offsets = [0, 21], sizes = [16, 465], strides = [1, 1]} : vector<16x496xf32> to vector<16x465xf32>
    %37 = vector.extract_strided_slice %14 {offsets = [0, 22], sizes = [16, 465], strides = [1, 1]} : vector<16x496xf32> to vector<16x465xf32>
    %38 = vector.extract_strided_slice %14 {offsets = [0, 23], sizes = [16, 465], strides = [1, 1]} : vector<16x496xf32> to vector<16x465xf32>
    %39 = vector.extract_strided_slice %14 {offsets = [0, 24], sizes = [16, 465], strides = [1, 1]} : vector<16x496xf32> to vector<16x465xf32>
    %40 = vector.extract_strided_slice %14 {offsets = [0, 25], sizes = [16, 465], strides = [1, 1]} : vector<16x496xf32> to vector<16x465xf32>
    %41 = vector.extract_strided_slice %14 {offsets = [0, 26], sizes = [16, 465], strides = [1, 1]} : vector<16x496xf32> to vector<16x465xf32>
    %42 = vector.extract_strided_slice %14 {offsets = [0, 27], sizes = [16, 465], strides = [1, 1]} : vector<16x496xf32> to vector<16x465xf32>
    %43 = vector.extract_strided_slice %14 {offsets = [0, 28], sizes = [16, 465], strides = [1, 1]} : vector<16x496xf32> to vector<16x465xf32>
    %44 = vector.extract_strided_slice %14 {offsets = [0, 29], sizes = [16, 465], strides = [1, 1]} : vector<16x496xf32> to vector<16x465xf32>
    %45 = vector.extract_strided_slice %14 {offsets = [0, 30], sizes = [16, 465], strides = [1, 1]} : vector<16x496xf32> to vector<16x465xf32>
    %46 = vector.extract_strided_slice %14 {offsets = [0, 31], sizes = [16, 465], strides = [1, 1]} : vector<16x496xf32> to vector<16x465xf32>
    %47 = tpu.concatenate %15, %16, %17, %18, %19, %20, %21, %22, %23, %24, %25, %26, %27, %28, %29, %30 in 0 : vector<16x465xf32>, vector<16x465xf32>, vector<16x465xf32>, vector<16x465xf32>, vector<16x465xf32>, vector<16x465xf32>, vector<16x465xf32>, vector<16x465xf32>, vector<16x465xf32>, vector<16x465xf32>, vector<16x465xf32>, vector<16x465xf32>, vector<16x465xf32>, vector<16x465xf32>, vector<16x465xf32>, vector<16x465xf32> -> vector<256x465xf32>
    %48 = tpu.concatenate %31, %32, %33, %34, %35, %36, %37, %38, %39, %40, %41, %42, %43, %44, %45, %46 in 0 : vector<16x465xf32>, vector<16x465xf32>, vector<16x465xf32>, vector<16x465xf32>, vector<16x465xf32>, vector<16x465xf32>, vector<16x465xf32>, vector<16x465xf32>, vector<16x465xf32>, vector<16x465xf32>, vector<16x465xf32>, vector<16x465xf32>, vector<16x465xf32>, vector<16x465xf32>, vector<16x465xf32>, vector<16x465xf32> -> vector<256x465xf32>
    %49 = tpu.concatenate %47, %48 in 0 : vector<256x465xf32>, vector<256x465xf32> -> vector<512x465xf32>
    %c0_9 = arith.constant 0 : index
    %c0_10 = arith.constant 0 : index
    %50 = vector.load %arg4[%c0_9, %c0_10] : memref<68x512xf32, #tpu.memory_space<vmem>>, vector<68x512xf32>
    %cst_11 = arith.constant dense<0.000000e+00> : vector<68x465xf32>
    %51 = tpu.matmul %50, %49, %cst_11 {dimension_numbers = #tpu.dot_dimension_numbers<[1], [0], [0], [1], [0, 0, 1, 1], [], []>} : vector<68x512xf32>, vector<512x465xf32>, vector<68x465xf32> -> vector<68x465xf32>
    %c0_12 = arith.constant 0 : index
    %c0_13 = arith.constant 0 : index
    %52 = vector.load %arg5[%c0_12, %c0_13] : memref<68x1xf32, #tpu.memory_space<vmem>>, vector<68x1xf32>
    %53 = vector.broadcast %52 : vector<68x1xf32> to vector<68x465xf32>
    %54 = arith.addf %51, %53 : vector<68x465xf32>
    %cst_14 = arith.constant 0.000000e+00 : f32
    %55 = vector.broadcast %cst_14 : f32 to vector<68x465xf32>
    %56 = arith.cmpf ogt, %54, %55 : vector<68x465xf32>
    %cst_15 = arith.constant 0.000000e+00 : f32
    %57 = vector.broadcast %cst_15 : f32 to vector<68x465xf32>
    %58 = arith.minimumf %54, %57 : vector<68x465xf32>
    %59 = math.exp %58 : vector<68x465xf32>
    %cst_16 = arith.constant 1.000000e+00 : f32
    %60 = vector.broadcast %cst_16 : f32 to vector<68x465xf32>
    %61 = arith.subf %59, %60 : vector<68x465xf32>
    %62 = arith.select %56, %54, %61 : vector<68x465xi1>, vector<68x465xf32>
    %63 = vector.extract_strided_slice %62 {offsets = [0, 0], sizes = [67, 465], strides = [1, 1]} : vector<68x465xf32> to vector<67x465xf32>
    %64 = vector.extract_strided_slice %62 {offsets = [1, 0], sizes = [67, 465], strides = [1, 1]} : vector<68x465xf32> to vector<67x465xf32>
    %65 = arith.maximumf %63, %64 : vector<67x465xf32>
    %66 = vector.extract_strided_slice %65 {offsets = [0, 0], sizes = [67, 462], strides = [1, 1]} : vector<67x465xf32> to vector<67x462xf32>
    %67 = vector.extract_strided_slice %65 {offsets = [0, 1], sizes = [67, 462], strides = [1, 1]} : vector<67x465xf32> to vector<67x462xf32>
    %68 = arith.maximumf %66, %67 : vector<67x462xf32>
    %69 = vector.extract_strided_slice %65 {offsets = [0, 2], sizes = [67, 462], strides = [1, 1]} : vector<67x465xf32> to vector<67x462xf32>
    %70 = vector.extract_strided_slice %65 {offsets = [0, 3], sizes = [67, 462], strides = [1, 1]} : vector<67x465xf32> to vector<67x462xf32>
    %71 = arith.maximumf %69, %70 : vector<67x462xf32>
    %72 = arith.maximumf %68, %71 : vector<67x462xf32>
    %c0_17 = arith.constant 0 : index
    %c0_18 = arith.constant 0 : index
    %73 = vector.load %arg6[%c0_17, %c0_18] : memref<32x67xf32, #tpu.memory_space<vmem>>, vector<32x67xf32>
    %cst_19 = arith.constant dense<0.000000e+00> : vector<32x462xf32>
    %74 = tpu.matmul %73, %72, %cst_19 {dimension_numbers = #tpu.dot_dimension_numbers<[1], [0], [0], [1], [0, 0, 1, 1], [], []>} : vector<32x67xf32>, vector<67x462xf32>, vector<32x462xf32> -> vector<32x462xf32>
    %c0_20 = arith.constant 0 : index
    %c0_21 = arith.constant 0 : index
    %75 = vector.load %arg7[%c0_20, %c0_21] : memref<462x116xf32, #tpu.memory_space<vmem>>, vector<462x116xf32>
    %cst_22 = arith.constant dense<0.000000e+00> : vector<32x116xf32>
    %76 = tpu.matmul %74, %75, %cst_22 {dimension_numbers = #tpu.dot_dimension_numbers<[1], [0], [0], [1], [0, 0, 1, 1], [], []>} : vector<32x462xf32>, vector<462x116xf32>, vector<32x116xf32> -> vector<32x116xf32>
    %77 = vector.extract_strided_slice %76 {offsets = [0, 0], sizes = [32, 113], strides = [1, 1]} : vector<32x116xf32> to vector<32x113xf32>
    %78 = vector.extract_strided_slice %76 {offsets = [0, 1], sizes = [32, 113], strides = [1, 1]} : vector<32x116xf32> to vector<32x113xf32>
    %79 = vector.extract_strided_slice %76 {offsets = [0, 2], sizes = [32, 113], strides = [1, 1]} : vector<32x116xf32> to vector<32x113xf32>
    %80 = vector.extract_strided_slice %76 {offsets = [0, 3], sizes = [32, 113], strides = [1, 1]} : vector<32x116xf32> to vector<32x113xf32>
    %81 = tpu.concatenate %77, %78, %79, %80 in 0 : vector<32x113xf32>, vector<32x113xf32>, vector<32x113xf32>, vector<32x113xf32> -> vector<128x113xf32>
    %c0_23 = arith.constant 0 : index
    %c0_24 = arith.constant 0 : index
    %82 = vector.load %arg8[%c0_23, %c0_24] : memref<36x128xf32, #tpu.memory_space<vmem>>, vector<36x128xf32>
    %cst_25 = arith.constant dense<0.000000e+00> : vector<36x113xf32>
    %83 = tpu.matmul %82, %81, %cst_25 {dimension_numbers = #tpu.dot_dimension_numbers<[1], [0], [0], [1], [0, 0, 1, 1], [], []>} : vector<36x128xf32>, vector<128x113xf32>, vector<36x113xf32> -> vector<36x113xf32>
    %c0_26 = arith.constant 0 : index
    %c0_27 = arith.constant 0 : index
    %84 = vector.load %arg9[%c0_26, %c0_27] : memref<36x1xf32, #tpu.memory_space<vmem>>, vector<36x1xf32>
    %85 = vector.broadcast %84 : vector<36x1xf32> to vector<36x113xf32>
    %86 = arith.addf %83, %85 : vector<36x113xf32>
    %cst_28 = arith.constant 0.000000e+00 : f32
    %87 = vector.broadcast %cst_28 : f32 to vector<36x113xf32>
    %88 = arith.cmpf ogt, %86, %87 : vector<36x113xf32>
    %cst_29 = arith.constant 0.000000e+00 : f32
    %89 = vector.broadcast %cst_29 : f32 to vector<36x113xf32>
    %90 = arith.minimumf %86, %89 : vector<36x113xf32>
    %91 = math.exp %90 : vector<36x113xf32>
    %cst_30 = arith.constant 1.000000e+00 : f32
    %92 = vector.broadcast %cst_30 : f32 to vector<36x113xf32>
    %93 = arith.subf %91, %92 : vector<36x113xf32>
    %94 = arith.select %88, %86, %93 : vector<36x113xi1>, vector<36x113xf32>
    %95 = vector.extract_strided_slice %94 {offsets = [0, 0], sizes = [35, 113], strides = [1, 1]} : vector<36x113xf32> to vector<35x113xf32>
    %96 = vector.extract_strided_slice %94 {offsets = [1, 0], sizes = [35, 113], strides = [1, 1]} : vector<36x113xf32> to vector<35x113xf32>
    %97 = arith.maximumf %95, %96 : vector<35x113xf32>
    %98 = vector.extract_strided_slice %97 {offsets = [0, 0], sizes = [35, 110], strides = [1, 1]} : vector<35x113xf32> to vector<35x110xf32>
    %99 = vector.extract_strided_slice %97 {offsets = [0, 1], sizes = [35, 110], strides = [1, 1]} : vector<35x113xf32> to vector<35x110xf32>
    %100 = arith.maximumf %98, %99 : vector<35x110xf32>
    %101 = vector.extract_strided_slice %97 {offsets = [0, 2], sizes = [35, 110], strides = [1, 1]} : vector<35x113xf32> to vector<35x110xf32>
    %102 = vector.extract_strided_slice %97 {offsets = [0, 3], sizes = [35, 110], strides = [1, 1]} : vector<35x113xf32> to vector<35x110xf32>
    %103 = arith.maximumf %101, %102 : vector<35x110xf32>
    %104 = arith.maximumf %100, %103 : vector<35x110xf32>
    %c0_31 = arith.constant 0 : index
    %c0_32 = arith.constant 0 : index
    %105 = vector.load %arg10[%c0_31, %c0_32] : memref<80x35xf32, #tpu.memory_space<vmem>>, vector<80x35xf32>
    %cst_33 = arith.constant dense<0.000000e+00> : vector<80x110xf32>
    %106 = tpu.matmul %105, %104, %cst_33 {dimension_numbers = #tpu.dot_dimension_numbers<[1], [0], [0], [1], [0, 0, 1, 1], [], []>} : vector<80x35xf32>, vector<35x110xf32>, vector<80x110xf32> -> vector<80x110xf32>
    %c0_34 = arith.constant 0 : index
    %c0_35 = arith.constant 0 : index
    %107 = vector.load %arg12[%c0_34, %c0_35] : memref<5x80xf32, #tpu.memory_space<vmem>>, vector<5x80xf32>
    %c0_36 = arith.constant 0 : index
    %c0_37 = arith.constant 0 : index
    %108 = vector.load %arg11[%c0_36, %c0_37] : memref<80x110xf32, #tpu.memory_space<vmem>>, vector<80x110xf32>
    %109 = arith.mulf %108, %106 : vector<80x110xf32>
    %cst_38 = arith.constant dense<0.000000e+00> : vector<5x110xf32>
    %110 = tpu.matmul %107, %109, %cst_38 {dimension_numbers = #tpu.dot_dimension_numbers<[1], [0], [0], [1], [0, 0, 1, 1], [], []>} : vector<5x80xf32>, vector<80x110xf32>, vector<5x110xf32> -> vector<5x110xf32>
    %cst_39 = arith.constant dense<0.000000e+00> : vector<5xf32>
    %111 = vector.multi_reduction <add>, %110, %cst_39 [1] : vector<5x110xf32> to vector<5xf32>
    %112 = vector.shape_cast %111 : vector<5xf32> to vector<5x1xf32>
    %c0_40 = arith.constant 0 : index
    %c0_41 = arith.constant 0 : index
    %113 = vector.load %arg13[%c0_40, %c0_41] : memref<5x1xf32, #tpu.memory_space<vmem>>, vector<5x1xf32>
    %114 = arith.addf %112, %113 : vector<5x1xf32>
    %c0_42 = arith.constant 0 : index
    %c0_43 = arith.constant 0 : index
    %c0_44 = arith.constant 0 : index
    %115 = vector.load %arg14[%c0_42, %c0_43, %c0_44] : memref<1x5x1xf32, #tpu.memory_space<vmem>>, vector<1x5x1xf32>
    %116 = vector.shape_cast %115 : vector<1x5x1xf32> to vector<5x1xf32>
    %117 = vector.shape_cast %114 : vector<5x1xf32> to vector<1x5x1xf32>
    tpu.vector_store %arg14[%c0_42, %c0_43, %c0_44], %117 {strides = array<i32>} : memref<1x5x1xf32, #tpu.memory_space<vmem>>, vector<1x5x1xf32>,
    return
  }
  func.func @transform_0(%arg0: i32) -> (i32, i32, i32) {
    %c0_i32 = arith.constant 0 : i32
    %c0_i32_0 = arith.constant 0 : i32
    %c0_i32_1 = arith.constant 0 : i32
    return %arg0, %c0_i32, %c0_i32_0 : i32, i32, i32
  }
  func.func @transform_1(%arg0: i32) -> (i32, i32) {
    %c0_i32 = arith.constant 0 : i32
    %c0_i32_0 = arith.constant 0 : i32
    %c0_i32_1 = arith.constant 0 : i32
    return %c0_i32, %c0_i32_0 : i32, i32
  }
  func.func @transform_2(%arg0: i32) -> (i32, i32) {
    %c0_i32 = arith.constant 0 : i32
    %c0_i32_0 = arith.constant 0 : i32
    %c0_i32_1 = arith.constant 0 : i32
    return %c0_i32, %c0_i32_0 : i32, i32
  }
  func.func @transform_3(%arg0: i32) -> (i32, i32) {
    %c0_i32 = arith.constant 0 : i32
    %c0_i32_0 = arith.constant 0 : i32
    %c0_i32_1 = arith.constant 0 : i32
    return %c0_i32, %c0_i32_0 : i32, i32
  }
  func.func @transform_4(%arg0: i32) -> (i32, i32) {
    %c0_i32 = arith.constant 0 : i32
    %c0_i32_0 = arith.constant 0 : i32
    %c0_i32_1 = arith.constant 0 : i32
    return %c0_i32, %c0_i32_0 : i32, i32
  }
  func.func @transform_5(%arg0: i32) -> (i32, i32) {
    %c0_i32 = arith.constant 0 : i32
    %c0_i32_0 = arith.constant 0 : i32
    %c0_i32_1 = arith.constant 0 : i32
    return %c0_i32, %c0_i32_0 : i32, i32
  }
  func.func @transform_6(%arg0: i32) -> (i32, i32) {
    %c0_i32 = arith.constant 0 : i32
    %c0_i32_0 = arith.constant 0 : i32
    %c0_i32_1 = arith.constant 0 : i32
    return %c0_i32, %c0_i32_0 : i32, i32
  }
  func.func @transform_7(%arg0: i32) -> (i32, i32) {
    %c0_i32 = arith.constant 0 : i32
    %c0_i32_0 = arith.constant 0 : i32
    %c0_i32_1 = arith.constant 0 : i32
    return %c0_i32, %c0_i32_0 : i32, i32
  }
  func.func @transform_8(%arg0: i32) -> (i32, i32) {
    %c0_i32 = arith.constant 0 : i32
    %c0_i32_0 = arith.constant 0 : i32
    %c0_i32_1 = arith.constant 0 : i32
    return %c0_i32, %c0_i32_0 : i32, i32
  }
  func.func @transform_9(%arg0: i32) -> (i32, i32) {
    %c0_i32 = arith.constant 0 : i32
    %c0_i32_0 = arith.constant 0 : i32
    %c0_i32_1 = arith.constant 0 : i32
    return %c0_i32, %c0_i32_0 : i32, i32
  }
  func.func @transform_10(%arg0: i32) -> (i32, i32) {
    %c0_i32 = arith.constant 0 : i32
    %c0_i32_0 = arith.constant 0 : i32
    %c0_i32_1 = arith.constant 0 : i32
    return %c0_i32, %c0_i32_0 : i32, i32
  }
  func.func @transform_11(%arg0: i32) -> (i32, i32) {
    %c0_i32 = arith.constant 0 : i32
    %c0_i32_0 = arith.constant 0 : i32
    %c0_i32_1 = arith.constant 0 : i32
    return %c0_i32, %c0_i32_0 : i32, i32
  }
  func.func @transform_12(%arg0: i32) -> (i32, i32) {
    %c0_i32 = arith.constant 0 : i32
    %c0_i32_0 = arith.constant 0 : i32
    %c0_i32_1 = arith.constant 0 : i32
    return %c0_i32, %c0_i32_0 : i32, i32
  }
  func.func @transform_13(%arg0: i32) -> (i32, i32, i32) {
    %c0_i32 = arith.constant 0 : i32
    %c0_i32_0 = arith.constant 0 : i32
    %c0_i32_1 = arith.constant 0 : i32
    return %arg0, %c0_i32, %c0_i32_0 : i32, i32, i32
  }
}

</mosaic_0001>

<llo_original>
// kernel: squeeze.5
$region0: #{squeeze.5}
  %s0 = inlined_call_operand.vmem [shape: f32[2,5], index: 0, kind: input, shape index: {}]
  %s1 = inlined_call_operand.hbm [shape: f32[10], index: 1, kind: output, shape index: {}]
  $region1: #{squeeze.5} parent=0
    #allocation0 [shape = 'u8[512]{0}', space=vmem, size = 0x400, scoped, tag = 'operand span for operand 1']
    #allocation1 [shape = 's32[1]{0}', space=sflag, size = 0x4, scoped, tag = 'scoped memory for squeeze.5']
    #allocation2 [shape = 'u8[4096]{0}', space=vmem, size = 0x1000, scoped, tag = 'scoped mem for output reshape']
    #allocation3 [shape = 'u8[4096]{0}', space=vmem, size = 0x1000, scoped, tag = 'scoped mem for input reshape']
    %2 = vsyncpa [#allocation1], 0
    %s4 = sshllo.u32 0, 2
    %v5 = vld [vmem:[%s0] sm:%s4]
    %6 = vst [vmem:[#allocation3] sm:%s4] %v5
    %v7 = vld [vmem:[#allocation3] sm:$0x1]
    %vm8 = vcmask 39936
    %9 = vst.msk [vmem:[#allocation2] sm:$0x1] %vm8, %v7
    %s10 = scalar_lea.vmem [#allocation3], 1
    %v11 = vld [vmem:[%s10] sm:$0x1]
    %12 = vrot.lane.b32.xlu0 %v11, 5
    %v13 = vpop.permute.xlu0 %12
    %vm14 = vcmask 80936
    %15 = vst.msk [vmem:[#allocation2] sm:$0x1] %vm14, %v13
    %s17 = sshllo.u32 0, 1
    %v19 = vld [vmem:[#allocation2] sm:%s17]
    %s20 = sshllo.u32 0, 1
    %21 = vst [vmem:[#allocation0] sm:%s20] %v19
    %s23 = ssub.s32 16, 16
    %24 = vsyncadd [#allocation1], %s23
    %s26 = sshll.u32 [#allocation0], 4
    %s27 = int_to_ptr.vmem [resolvable:$true] %s26
    %29 = dma.vmem_to_hbm [thread:$0]  %s27, 16, %s1, [#allocation1]
    %30 = dma.done [#allocation1], 16
    %31 = vsyncpa [#allocation1], 1

// kernel: net_forward.1
$region0: #{net_forward.1}
  #allocation0 [shape = 'u32[]', space=smem, size = 0x4, offset = 0x4, fixed_abs, tag = 'smem constant byte address 0x4 - core index']
  #allocation1 [shape = 'u32[144,128]{1,0:T(1,128)}', space=vmem, size = 0x12000, scoped, tag = 'internal scratch']
  %s0 = inlined_call_operand.vmem [shape: f32[2,5,496], index: 0, kind: input, shape index: {}]
  %s1 = inlined_call_operand.vmem [shape: f32[16,5], index: 1, kind: input, shape index: {}]
  %s2 = inlined_call_operand.vmem [shape: f32[16,1], index: 2, kind: input, shape index: {}]
  %s3 = inlined_call_operand.vmem [shape: f32[68,512], index: 3, kind: input, shape index: {}]
  %s4 = inlined_call_operand.vmem [shape: f32[68,1], index: 4, kind: input, shape index: {}]
  %s5 = inlined_call_operand.vmem [shape: f32[32,67], index: 5, kind: input, shape index: {}]
  %s6 = inlined_call_operand.vmem [shape: f32[462,116], index: 6, kind: input, shape index: {}]
  %s7 = inlined_call_operand.vmem [shape: f32[36,128], index: 7, kind: input, shape index: {}]
  %s8 = inlined_call_operand.vmem [shape: f32[36,1], index: 8, kind: input, shape index: {}]
  %s9 = inlined_call_operand.vmem [shape: f32[80,35], index: 9, kind: input, shape index: {}]
  %s10 = inlined_call_operand.vmem [shape: f32[80,110], index: 10, kind: input, shape index: {}]
  %s11 = inlined_call_operand.vmem [shape: f32[5,80], index: 11, kind: input, shape index: {}]
  %s12 = inlined_call_operand.vmem [shape: f32[5,1], index: 12, kind: input, shape index: {}]
  %s13 = inlined_call_operand.vmem [shape: f32[2,5,1], index: 13, kind: output, shape index: {}]
  %s14 = sld [smem:[#allocation0]]
  $region85: #{net_forward.1} parent=0
    _
  %s16 = ssub.s32 1, %s14
  %s17 = scalar_select 0, %s16, %s14
  loop: start=0, step=1, limit=4
  $region2: #{net_forward.1} parent=0 // loop_pre_header
    _
  $region3: #{net_forward.1} parent=0 // loop_header
    %s19 = sphi 0, %s23
    %p20 = scmp.ge.s32.totalorder %s19, 4
    %s29 = sphi 0, %s31
    %s32 = sphi 0, %s29
    %s33 = sphi 0, %s32
    %s49 = sphi 0, %s33
    %s53 = sphi 0, %s53
    %s55 = sphi 0, %s53
    %s56 = sphi 0, %s55
    %s70 = sphi 0, %s56
    %s74 = sphi 0, %s74
    %s76 = sphi 0, %s74
    %s77 = sphi 0, %s76
    %s91 = sphi 0, %s77
    %s95 = sphi 0, %s95
    %s97 = sphi 0, %s95
    %s98 = sphi 0, %s97
    %s112 = sphi 0, %s98
    %s116 = sphi 0, %s116
    %s118 = sphi 0, %s116
    %s119 = sphi 0, %s118
    %s133 = sphi 0, %s119
    %s137 = sphi 0, %s137
    %s139 = sphi 0, %s137
    %s140 = sphi 0, %s139
    %s154 = sphi 0, %s140
    %s158 = sphi 0, %s158
    %s160 = sphi 0, %s158
    %s161 = sphi 0, %s160
    %s175 = sphi 0, %s161
    %s179 = sphi 0, %s179
    %s181 = sphi 0, %s179
    %s182 = sphi 0, %s181
    %s196 = sphi 0, %s182
    %s200 = sphi 0, %s200
    %s202 = sphi 0, %s200
    %s203 = sphi 0, %s202
    %s217 = sphi 0, %s203
    %s221 = sphi 0, %s221
    %s223 = sphi 0, %s221
    %s224 = sphi 0, %s223
    %s238 = sphi 0, %s224
    %s242 = sphi 0, %s242
    %s244 = sphi 0, %s242
    %s245 = sphi 0, %s244
    %s259 = sphi 0, %s245
    %s263 = sphi 0, %s263
    %s265 = sphi 0, %s263
    %s266 = sphi 0, %s265
    %s280 = sphi 0, %s266
    %s284 = sphi 0, %s284
    %s286 = sphi 0, %s284
    %s287 = sphi 0, %s286
    %s301 = sphi 0, %s287
    %s307 = sphi 0, %s309
    %s310 = sphi 0, %s307
    %s311 = sphi 0, %s310
    %s327 = sphi 0, %s311
  $region4: #{net_forward.1} parent=0 // loop_header_branch
    %22 = sbr.rel (%p20) target = $region8
  $region5: #{net_forward.1} parent=0 // loop_body
    %s24 = ssub.s32 %s19, 1
    %s25 = ssub.s32 %s19, 2
    %s26 = sadd.s32 %s19, 1
    %s27 = ssub.s32 %s19, %s26
    %p28 = scmp.eq.s32.totalorder %s27, 0
    %s30 = sadd.s32 %s29, 1
    %s31 = scalar_select %p28, %s29, %s30
    %p34 = pneg %p28
    %p35 = scmp.eq.s32.totalorder %s19, 1
    %p36 = por %p34, %p35
    %p37 = scmp.ne.s32.totalorder %s29, %s32
    %p38 = scmp.eq.s32.totalorder %s19, 0
    %p39 = por %p37, %p38
    %p40 = scmp.ne.s32.totalorder %s29, %s32
    %p41 = scmp.eq.s32.totalorder %s24, 1
    %p42 = por %p40, %p41
    %p43 = scmp.ne.s32.totalorder %s32, %s33
    %p44 = scmp.eq.s32.totalorder %s24, 0
    %p45 = por %p43, %p44
    %p46 = scmp.ne.s32.totalorder %s32, %s33
    %p47 = scmp.eq.s32.totalorder %s25, 1
    %p48 = por %p46, %p47
    %p50 = scmp.ne.s32.totalorder %s33, %s49
    %p51 = scmp.eq.s32.totalorder %s25, 0
    %p52 = por %p50, %p51
    %s54 = sadd.s32 %s53, 1
    %p57 = scmp.eq.s32.totalorder %s19, 1
    %p58 = scmp.ne.s32.totalorder %s53, %s55
    %p59 = scmp.eq.s32.totalorder %s19, 0
    %p60 = por %p58, %p59
    %p61 = scmp.ne.s32.totalorder %s53, %s55
    %p62 = scmp.eq.s32.totalorder %s24, 1
    %p63 = por %p61, %p62
    %p64 = scmp.ne.s32.totalorder %s55, %s56
    %p65 = scmp.eq.s32.totalorder %s24, 0
    %p66 = por %p64, %p65
    %p67 = scmp.ne.s32.totalorder %s55, %s56
    %p68 = scmp.eq.s32.totalorder %s25, 1
    %p69 = por %p67, %p68
    %p71 = scmp.ne.s32.totalorder %s56, %s70
    %p72 = scmp.eq.s32.totalorder %s25, 0
    %p73 = por %p71, %p72
    %s75 = sadd.s32 %s74, 1
    %p78 = scmp.eq.s32.totalorder %s19, 1
    %p79 = scmp.ne.s32.totalorder %s74, %s76
    %p80 = scmp.eq.s32.totalorder %s19, 0
    %p81 = por %p79, %p80
    %p82 = scmp.ne.s32.totalorder %s74, %s76
    %p83 = scmp.eq.s32.totalorder %s24, 1
    %p84 = por %p82, %p83
    %p85 = scmp.ne.s32.totalorder %s76, %s77
    %p86 = scmp.eq.s32.totalorder %s24, 0
    %p87 = por %p85, %p86
    %p88 = scmp.ne.s32.totalorder %s76, %s77
    %p89 = scmp.eq.s32.totalorder %s25, 1
    %p90 = por %p88, %p89
    %p92 = scmp.ne.s32.totalorder %s77, %s91
    %p93 = scmp.eq.s32.totalorder %s25, 0
    %p94 = por %p92, %p93
    %s96 = sadd.s32 %s95, 1
    %p99 = scmp.eq.s32.totalorder %s19, 1
    %p100 = scmp.ne.s32.totalorder %s95, %s97
    %p101 = scmp.eq.s32.totalorder %s19, 0
    %p102 = por %p100, %p101
    %p103 = scmp.ne.s32.totalorder %s95, %s97
    %p104 = scmp.eq.s32.totalorder %s24, 1
    %p105 = por %p103, %p104
    %p106 = scmp.ne.s32.totalorder %s97, %s98
    %p107 = scmp.eq.s32.totalorder %s24, 0
    %p108 = por %p106, %p107
    %p109 = scmp.ne.s32.totalorder %s97, %s98
    %p110 = scmp.eq.s32.totalorder %s25, 1
    %p111 = por %p109, %p110
    %p113 = scmp.ne.s32.totalorder %s98, %s112
    %p114 = scmp.eq.s32.totalorder %s25, 0
    %p115 = por %p113, %p114
    %s117 = sadd.s32 %s116, 1
    %p120 = scmp.eq.s32.totalorder %s19, 1
    %p121 = scmp.ne.s32.totalorder %s116, %s118
    %p122 = scmp.eq.s32.totalorder %s19, 0
    %p123 = por %p121, %p122
    %p124 = scmp.ne.s32.totalorder %s116, %s118
    %p125 = scmp.eq.s32.totalorder %s24, 1
    %p126 = por %p124, %p125
    %p127 = scmp.ne.s32.totalorder %s118, %s119
    %p128 = scmp.eq.s32.totalorder %s24, 0
    %p129 = por %p127, %p128
    %p130 = scmp.ne.s32.totalorder %s118, %s119
    %p131 = scmp.eq.s32.totalorder %s25, 1
    %p132 = por %p130, %p131
    %p134 = scmp.ne.s32.totalorder %s119, %s133
    %p135 = scmp.eq.s32.totalorder %s25, 0
    %p136 = por %p134, %p135
    %s138 = sadd.s32 %s137, 1
    %p141 = scmp.eq.s32.totalorder %s19, 1
    %p142 = scmp.ne.s32.totalorder %s137, %s139
    %p143 = scmp.eq.s32.totalorder %s19, 0
    %p144 = por %p142, %p143
    %p145 = scmp.ne.s32.totalorder %s137, %s139
    %p146 = scmp.eq.s32.totalorder %s24, 1
    %p147 = por %p145, %p146
    %p148 = scmp.ne.s32.totalorder %s139, %s140
    %p149 = scmp.eq.s32.totalorder %s24, 0
    %p150 = por %p148, %p149
    %p151 = scmp.ne.s32.totalorder %s139, %s140
    %p152 = scmp.eq.s32.totalorder %s25, 1
    %p153 = por %p151, %p152
    %p155 = scmp.ne.s32.totalorder %s140, %s154
    %p156 = scmp.eq.s32.totalorder %s25, 0
    %p157 = por %p155, %p156
    %s159 = sadd.s32 %s158, 1
    %p162 = scmp.eq.s32.totalorder %s19, 1
    %p163 = scmp.ne.s32.totalorder %s158, %s160
    %p164 = scmp.eq.s32.totalorder %s19, 0
    %p165 = por %p163, %p164
    %p166 = scmp.ne.s32.totalorder %s158, %s160
    %p167 = scmp.eq.s32.totalorder %s24, 1
    %p168 = por %p166, %p167
    %p169 = scmp.ne.s32.totalorder %s160, %s161
    %p170 = scmp.eq.s32.totalorder %s24, 0
    %p171 = por %p169, %p170
    %p172 = scmp.ne.s32.totalorder %s160, %s161
    %p173 = scmp.eq.s32.totalorder %s25, 1
    %p174 = por %p172, %p173
    %p176 = scmp.ne.s32.totalorder %s161, %s175
    %p177 = scmp.eq.s32.totalorder %s25, 0
    %p178 = por %p176, %p177
    %s180 = sadd.s32 %s179, 1
    %p183 = scmp.eq.s32.totalorder %s19, 1
    %p184 = scmp.ne.s32.totalorder %s179, %s181
    %p185 = scmp.eq.s32.totalorder %s19, 0
    %p186 = por %p184, %p185
    %p187 = scmp.ne.s32.totalorder %s179, %s181
    %p188 = scmp.eq.s32.totalorder %s24, 1
    %p189 = por %p187, %p188
    %p190 = scmp.ne.s32.totalorder %s181, %s182
    %p191 = scmp.eq.s32.totalorder %s24, 0
    %p192 = por %p190, %p191
    %p193 = scmp.ne.s32.totalorder %s181, %s182
    %p194 = scmp.eq.s32.totalorder %s25, 1
    %p195 = por %p193, %p194
    %p197 = scmp.ne.s32.totalorder %s182, %s196
    %p198 = scmp.eq.s32.totalorder %s25, 0
    %p199 = por %p197, %p198
    %s201 = sadd.s32 %s200, 1
    %p204 = scmp.eq.s32.totalorder %s19, 1
    %p205 = scmp.ne.s32.totalorder %s200, %s202
    %p206 = scmp.eq.s32.totalorder %s19, 0
    %p207 = por %p205, %p206
    %p208 = scmp.ne.s32.totalorder %s200, %s202
    %p209 = scmp.eq.s32.totalorder %s24, 1
    %p210 = por %p208, %p209
    %p211 = scmp.ne.s32.totalorder %s202, %s203
    %p212 = scmp.eq.s32.totalorder %s24, 0
    %p213 = por %p211, %p212
    %p214 = scmp.ne.s32.totalorder %s202, %s203
    %p215 = scmp.eq.s32.totalorder %s25, 1
    %p216 = por %p214, %p215
    %p218 = scmp.ne.s32.totalorder %s203, %s217
    %p219 = scmp.eq.s32.totalorder %s25, 0
    %p220 = por %p218, %p219
    %s222 = sadd.s32 %s221, 1
    %p225 = scmp.eq.s32.totalorder %s19, 1
    %p226 = scmp.ne.s32.totalorder %s221, %s223
    %p227 = scmp.eq.s32.totalorder %s19, 0
    %p228 = por %p226, %p227
    %p229 = scmp.ne.s32.totalorder %s221, %s223
    %p230 = scmp.eq.s32.totalorder %s24, 1
    %p231 = por %p229, %p230
    %p232 = scmp.ne.s32.totalorder %s223, %s224
    %p233 = scmp.eq.s32.totalorder %s24, 0
    %p234 = por %p232, %p233
    %p235 = scmp.ne.s32.totalorder %s223, %s224
    %p236 = scmp.eq.s32.totalorder %s25, 1
    %p237 = por %p235, %p236
    %p239 = scmp.ne.s32.totalorder %s224, %s238
    %p240 = scmp.eq.s32.totalorder %s25, 0
    %p241 = por %p239, %p240
    %s243 = sadd.s32 %s242, 1
    %p246 = scmp.eq.s32.totalorder %s19, 1
    %p247 = scmp.ne.s32.totalorder %s242, %s244
    %p248 = scmp.eq.s32.totalorder %s19, 0
    %p249 = por %p247, %p248
    %p250 = scmp.ne.s32.totalorder %s242, %s244
    %p251 = scmp.eq.s32.totalorder %s24, 1
    %p252 = por %p250, %p251
    %p253 = scmp.ne.s32.totalorder %s244, %s245
    %p254 = scmp.eq.s32.totalorder %s24, 0
    %p255 = por %p253, %p254
    %p256 = scmp.ne.s32.totalorder %s244, %s245
    %p257 = scmp.eq.s32.totalorder %s25, 1
    %p258 = por %p256, %p257
    %p260 = scmp.ne.s32.totalorder %s245, %s259
    %p261 = scmp.eq.s32.totalorder %s25, 0
    %p262 = por %p260, %p261
    %s264 = sadd.s32 %s263, 1
    %p267 = scmp.eq.s32.totalorder %s19, 1
    %p268 = scmp.ne.s32.totalorder %s263, %s265
    %p269 = scmp.eq.s32.totalorder %s19, 0
    %p270 = por %p268, %p269
    %p271 = scmp.ne.s32.totalorder %s263, %s265
    %p272 = scmp.eq.s32.totalorder %s24, 1
    %p273 = por %p271, %p272
    %p274 = scmp.ne.s32.totalorder %s265, %s266
    %p275 = scmp.eq.s32.totalorder %s24, 0
    %p276 = por %p274, %p275
    %p277 = scmp.ne.s32.totalorder %s265, %s266
    %p278 = scmp.eq.s32.totalorder %s25, 1
    %p279 = por %p277, %p278
    %p281 = scmp.ne.s32.totalorder %s266, %s280
    %p282 = scmp.eq.s32.totalorder %s25, 0
    %p283 = por %p281, %p282
    %s285 = sadd.s32 %s284, 1
    %p288 = scmp.eq.s32.totalorder %s19, 1
    %p289 = scmp.ne.s32.totalorder %s284, %s286
    %p290 = scmp.eq.s32.totalorder %s19, 0
    %p291 = por %p289, %p290
    %p292 = scmp.ne.s32.totalorder %s284, %s286
    %p293 = scmp.eq.s32.totalorder %s24, 1
    %p294 = por %p292, %p293
    %p295 = scmp.ne.s32.totalorder %s286, %s287
    %p296 = scmp.eq.s32.totalorder %s24, 0
    %p297 = por %p295, %p296
    %p298 = scmp.ne.s32.totalorder %s286, %s287
    %p299 = scmp.eq.s32.totalorder %s25, 1
    %p300 = por %p298, %p299
    %p302 = scmp.ne.s32.totalorder %s287, %s301
    %p303 = scmp.eq.s32.totalorder %s25, 0
    %p304 = por %p302, %p303
    %s305 = ssub.s32 %s19, %s26
    %p306 = scmp.eq.s32.totalorder %s305, 0
    %s308 = sadd.s32 %s307, 1
    %s309 = scalar_select %p306, %s307, %s308
    %p312 = pneg %p306
    %p313 = scmp.eq.s32.totalorder %s19, 1
    %p314 = por %p312, %p313
    %p315 = scmp.ne.s32.totalorder %s307, %s310
    %p316 = scmp.eq.s32.totalorder %s19, 0
    %p317 = por %p315, %p316
    %p318 = scmp.ne.s32.totalorder %s307, %s310
    %p319 = scmp.eq.s32.totalorder %s24, 1
    %p320 = por %p318, %p319
    %p321 = scmp.ne.s32.totalorder %s310, %s311
    %p322 = scmp.eq.s32.totalorder %s24, 0
    %p323 = por %p321, %p322
    %p324 = scmp.ne.s32.totalorder %s310, %s311
    %p325 = scmp.eq.s32.totalorder %s25, 1
    %p326 = por %p324, %p325
    %p328 = scmp.ne.s32.totalorder %s311, %s327
    %p329 = scmp.eq.s32.totalorder %s25, 0
    %p330 = por %p328, %p329
    %p331 = scmp.le.s32.totalorder 1, %s19
    %p332 = scmp.lt.s32.totalorder %s19, 3
    %p333 = pnand %p331, %p332
    %p334 = pneg %p333
    // Predicated region
    $region9: #{net_forward.1} parent=5 // pred_check
      _
    $region10: #{net_forward.1} parent=5 // pred_check_branch
      %336 = sbr.rel (%p333) target = $region12
    $region11: #{net_forward.1} parent=5 // pred_region
      %s337 = ssub.s32 %s19, 1
      // Predicated region
      $region13: #{net_forward.1} parent=11 // pred_check
        %p338 = pneg %p66
      $region14: #{net_forward.1} parent=11 // pred_check_branch
        %340 = sbr.rel (%p338) target = $region16
      $region15: #{net_forward.1} parent=11 // pred_region
        _
      $region16: #{net_forward.1} parent=11 // pred_fallthru
        _
      // Predicated region
      $region17: #{net_forward.1} parent=11 // pred_check
        %p341 = pneg %p87
      $region18: #{net_forward.1} parent=11 // pred_check_branch
        %343 = sbr.rel (%p341) target = $region20
      $region19: #{net_forward.1} parent=11 // pred_region
        _
      $region20: #{net_forward.1} parent=11 // pred_fallthru
        _
      // Predicated region
      $region21: #{net_forward.1} parent=11 // pred_check
        %p344 = pneg %p108
      $region22: #{net_forward.1} parent=11 // pred_check_branch
        %346 = sbr.rel (%p344) target = $region24
      $region23: #{net_forward.1} parent=11 // pred_region
        _
      $region24: #{net_forward.1} parent=11 // pred_fallthru
        _
      // Predicated region
      $region25: #{net_forward.1} parent=11 // pred_check
        %p347 = pneg %p129
      $region26: #{net_forward.1} parent=11 // pred_check_branch
        %349 = sbr.rel (%p347) target = $region28
      $region27: #{net_forward.1} parent=11 // pred_region
        _
      $region28: #{net_forward.1} parent=11 // pred_fallthru
        _
      // Predicated region
      $region29: #{net_forward.1} parent=11 // pred_check
        %p350 = pneg %p150
      $region30: #{net_forward.1} parent=11 // pred_check_branch
        %352 = sbr.rel (%p350) target = $region32
      $region31: #{net_forward.1} parent=11 // pred_region
        _
      $region32: #{net_forward.1} parent=11 // pred_fallthru
        _
      // Predicated region
      $region33: #{net_forward.1} parent=11 // pred_check
        %p353 = pneg %p171
      $region34: #{net_forward.1} parent=11 // pred_check_branch
        %355 = sbr.rel (%p353) target = $region36
      $region35: #{net_forward.1} parent=11 // pred_region
        _
      $region36: #{net_forward.1} parent=11 // pred_fallthru
        _
      // Predicated region
      $region37: #{net_forward.1} parent=11 // pred_check
        %p356 = pneg %p192
      $region38: #{net_forward.1} parent=11 // pred_check_branch
        %358 = sbr.rel (%p356) target = $region40
      $region39: #{net_forward.1} parent=11 // pred_region
        _
      $region40: #{net_forward.1} parent=11 // pred_fallthru
        _
      // Predicated region
      $region41: #{net_forward.1} parent=11 // pred_check
        %p359 = pneg %p213
      $region42: #{net_forward.1} parent=11 // pred_check_branch
        %361 = sbr.rel (%p359) target = $region44
      $region43: #{net_forward.1} parent=11 // pred_region
        _
      $region44: #{net_forward.1} parent=11 // pred_fallthru
        _
      // Predicated region
      $region45: #{net_forward.1} parent=11 // pred_check
        %p362 = pneg %p234
      $region46: #{net_forward.1} parent=11 // pred_check_branch
        %364 = sbr.rel (%p362) target = $region48
      $region47: #{net_forward.1} parent=11 // pred_region
        _
      $region48: #{net_forward.1} parent=11 // pred_fallthru
        _
      // Predicated region
      $region49: #{net_forward.1} parent=11 // pred_check
        %p365 = pneg %p255
      $region50: #{net_forward.1} parent=11 // pred_check_branch
        %367 = sbr.rel (%p365) target = $region52
      $region51: #{net_forward.1} parent=11 // pred_region
        _
      $region52: #{net_forward.1} parent=11 // pred_fallthru
        _
      // Predicated region
      $region53: #{net_forward.1} parent=11 // pred_check
        %p368 = pneg %p276
      $region54: #{net_forward.1} parent=11 // pred_check_branch
        %370 = sbr.rel (%p368) target = $region56
      $region55: #{net_forward.1} parent=11 // pred_region
        _
      $region56: #{net_forward.1} parent=11 // pred_fallthru
        _
      // Predicated region
      $region57: #{net_forward.1} parent=11 // pred_check
        %p371 = pneg %p297
      $region58: #{net_forward.1} parent=11 // pred_check_branch
        %373 = sbr.rel (%p371) target = $region60
      $region59: #{net_forward.1} parent=11 // pred_region
        _
      $region60: #{net_forward.1} parent=11 // pred_fallthru
        _
    $region12: #{net_forward.1} parent=5 // pred_fallthru
      _
    %p374 = scmp.lt.s32.totalorder %s19, 2
    // Predicated region
    $region61: #{net_forward.1} parent=5 // pred_check
      %p375 = pneg %p374
    $region62: #{net_forward.1} parent=5 // pred_check_branch
      %377 = sbr.rel (%p375) target = $region64
    $region63: #{net_forward.1} parent=5 // pred_region
      // Predicated region
      $region65: #{net_forward.1} parent=63 // pred_check
        %p378 = pneg %p39
      $region66: #{net_forward.1} parent=63 // pred_check_branch
        %380 = sbr.rel (%p378) target = $region68
      $region67: #{net_forward.1} parent=63 // pred_region
        %p381 = scmp.lt.s32.totalorder %s19, 1
        %s382 = scalar_select %p381, %s19, 1
        %s383 = smul.addr %s382, 4
        %s384 = smul.addr %s383, 8
        %s385 = scalar_lea.vmem %s0, %s384
      $region68: #{net_forward.1} parent=63 // pred_fallthru
        _
    $region64: #{net_forward.1} parent=5 // pred_fallthru
      _
    %p386 = scmp.le.s32.totalorder 1, %s19
    %p387 = scmp.lt.s32.totalorder %s19, 3
    %p388 = pnand %p386, %p387
    %p389 = pneg %p388
    // Predicated region
    $region69: #{net_forward.1} parent=5 // pred_check
      _
    $region70: #{net_forward.1} parent=5 // pred_check_branch
      %391 = sbr.rel (%p388) target = $region72
    $region71: #{net_forward.1} parent=5 // pred_region
      %s392 = ssub.s32 %s19, 1
      %p393 = scmp.lt.s32.totalorder %s24, 1
      %s394 = scalar_select %p393, %s24, 1
      %s395 = smul.addr %s394, 4
      %s396 = smul.addr %s395, 8
      %s397 = scalar_lea.vmem %s0, %s396
      %p398 = pneg %p45
      %p399 = pneg %p42
      %p400 = pneg %p66
      %p401 = pneg %p63
      %p402 = pneg %p87
      %p403 = pneg %p84
      %p404 = pneg %p108
      %p405 = pneg %p105
      %p406 = pneg %p129
      %p407 = pneg %p126
      %p408 = pneg %p150
      %p409 = pneg %p147
      %p410 = pneg %p171
      %p411 = pneg %p168
      %p412 = pneg %p192
      %p413 = pneg %p189
      %p414 = pneg %p213
      %p415 = pneg %p210
      %p416 = pneg %p234
      %p417 = pneg %p231
      %p418 = pneg %p255
      %p419 = pneg %p252
      %p420 = pneg %p276
      %p421 = pneg %p273
      %p422 = pneg %p297
      %p423 = pneg %p294
      %p424 = pneg %p323
      %p425 = pneg %p320
      %p426 = scmp.lt.s32.totalorder %s24, 1
      %s427 = scalar_select %p426, %s24, 1
      %s428 = smul.addr %s427, 8
      %s429 = scalar_lea.vmem %s13, %s428
      %p430 = scmp.lt.s32.totalorder %s24, 1
      %s431 = scalar_select %p430, %s24, 1
      %s432 = smul.addr %s431, 4
      %s433 = smul.addr %s432, 8
      %s434 = scalar_lea.vmem %s0, %s433
      %p435 = scmp.lt.s32.totalorder %s24, 1
      %s436 = scalar_select %p435, %s24, 1
      %s437 = smul.addr %s436, 8
      %s438 = scalar_lea.vmem %s13, %s437
      %v439 = vld [vmem:[%s1] sm:$0xff]
      %v440 = vld [vmem:[%s1 + $0x8] sm:$0xff]
      %v441 = vld [vmem:[%s434] sm:$0x1f]
      %v442 = vld [vmem:[%s434 + $0x8] sm:$0x1f]
      %v443 = vld [vmem:[%s434 + $0x10] sm:$0x1f]
      %v444 = vld [vmem:[%s434 + $0x18] sm:$0x1f]
      %v445 = vld [vmem:[%s2] sm:$0xff]
      %v446 = vld [vmem:[%s2 + $0x8] sm:$0xff]
      %448 = vset.pattern.permute.xlu0 0
      %449 = vperm.xlu0 %448, %v445
      %v450 = vpop.permute.xlu0 %449
      %453 = vset.pattern.permute.xlu0 0
      %454 = vperm.xlu0 %453, %v446
      %v455 = vpop.permute.xlu0 %454
      %vm457 = vcmask 39936
      %v459 = vsel %vm457, %v439, 0
      %v462 = vsel %vm457, %v440, 0
      %vm464 = vcmask 1044480
      %v466 = vsel %vm464, %v441, 0
      %v469 = vsel %vm464, %v442, 0
      %v472 = vsel %vm464, %v443, 0
      %v475 = vsel %vm464, %v444, 0
      %477 = vmatprep.subr.mxu0 %v469
      %478 = vmatpush1.msra.mxu0 %v466
      %479 = vmatprep.subr.mxu0 0.0
      %480 = vmatpush1.msra.mxu0 0.0
      %481 = vmatprep.subr.mxu0 0.0
      %482 = vmatpush1.msra.mxu0 0.0
      %483 = vmatprep.subr.mxu0 0.0
      %484 = vmatpush1.msra.mxu0 0.0
      %485 = vmatprep.subr.mxu0 0.0
      %486 = vmatpush1.msra.mxu0 0.0
      %487 = vmatprep.subr.mxu0 0.0
      %488 = vmatpush1.msra.mxu0 0.0
      %489 = vmatprep.subr.mxu0 0.0
      %490 = vmatpush1.msra.mxu0 0.0
      %491 = vmatprep.subr.mxu0 0.0
      %492 = vmatpush1.msra.mxu0 0.0
      %493 = vmatprep.subr.mxu0 0.0
      %494 = vmatpush1.msra.mxu0 0.0
      %495 = vmatprep.subr.mxu0 0.0
      %496 = vmatpush1.msra.mxu0 0.0
      %497 = vmatprep.subr.mxu0 0.0
      %498 = vmatpush1.msra.mxu0 0.0
      %499 = vmatprep.subr.mxu0 0.0
      %500 = vmatpush1.msra.mxu0 0.0
      %501 = vmatprep.subr.mxu0 0.0
      %502 = vmatpush1.msra.mxu0 0.0
      %503 = vmatprep.subr.mxu0 0.0
      %504 = vmatpush1.msra.mxu0 0.0
      %505 = vmatprep.subr.mxu0 0.0
      %506 = vmatpush1.msra.mxu0 0.0
      %507 = vmatprep.subr.mxu0 0.0
      %508 = vmatpush1.msra.mxu0 0.0
      %509 = vmatprep.subr.mxu0 0.0
      %510 = vmatpush1.msra.mxu0 0.0
      %511 = vmatprep.subr.mxu0 0.0
      %512 = vmatpush1.msra.mxu0 0.0
      %513 = vmatprep.subr.mxu0 0.0
      %514 = vmatpush1.msra.mxu0 0.0
      %515 = vmatprep.subr.mxu0 0.0
      %516 = vmatpush1.msra.mxu0 0.0
      %517 = vmatprep.subr.mxu0 0.0
      %518 = vmatpush1.msra.mxu0 0.0
      %519 = vmatprep.subr.mxu0 0.0
      %520 = vmatpush1.msra.mxu0 0.0
      %521 = vmatprep.subr.mxu0 0.0
      %522 = vmatpush1.msra.mxu0 0.0
      %523 = vmatprep.subr.mxu0 0.0
      %524 = vmatpush1.msra.mxu0 0.0
      %525 = vmatprep.subr.mxu0 0.0
      %526 = vmatpush1.msra.mxu0 0.0
      %527 = vmatprep.subr.mxu0 0.0
      %528 = vmatpush1.msra.mxu0 0.0
      %529 = vmatprep.subr.mxu0 0.0
      %530 = vmatpush1.msra.mxu0 0.0
      %531 = vmatprep.subr.mxu0 0.0
      %532 = vmatpush1.msra.mxu0 0.0
      %533 = vmatprep.subr.mxu0 0.0
      %534 = vmatpush1.msra.mxu0 0.0
      %535 = vmatprep.subr.mxu0 0.0
      %536 = vmatpush1.msra.mxu0 0.0
      %537 = vmatprep.subr.mxu0 0.0
      %538 = vmatpush1.msra.mxu0 0.0
      %539 = vmatprep.subr.mxu0 0.0
      %540 = vmatpush1.msra.mxu0 0.0
      %541 = vmatprep.mubr.f32.mxu0 0.0
      %542 = vmatmul.mubr.f32.gmra.mrb[0].mxu0 %v459
      %v543 = vpop.f32.mrb[0].mxu0
      %v544 = vadd.f32 %v450, %v543
      %v545 = vpop.f32.mrb[0].mxu0
      %v546 = vadd.f32 %v450, %v545
      %547 = vmatprep.mubr.f32.mxu0 0.0
      %548 = vmatmul.mubr.f32.gmra.mrb[0].mxu0 %v462
      %v549 = vpop.f32.mrb[0].mxu0
      %v550 = vadd.f32 %v455, %v549
      %v551 = vpop.f32.mrb[0].mxu0
      %v552 = vadd.f32 %v455, %v551
      %553 = vdwg.mxu0
      %554 = vmatprep.subr.mxu0 %v475
      %555 = vmatpush1.msra.mxu0 %v472
      %556 = vmatprep.subr.mxu0 0.0
      %557 = vmatpush1.msra.mxu0 0.0
      %558 = vmatprep.subr.mxu0 0.0
      %559 = vmatpush1.msra.mxu0 0.0
      %560 = vmatprep.subr.mxu0 0.0
      %561 = vmatpush1.msra.mxu0 0.0
      %562 = vmatprep.subr.mxu0 0.0
      %563 = vmatpush1.msra.mxu0 0.0
      %564 = vmatprep.subr.mxu0 0.0
      %565 = vmatpush1.msra.mxu0 0.0
      %566 = vmatprep.subr.mxu0 0.0
      %567 = vmatpush1.msra.mxu0 0.0
      %568 = vmatprep.subr.mxu0 0.0
      %569 = vmatpush1.msra.mxu0 0.0
      %570 = vmatprep.subr.mxu0 0.0
      %571 = vmatpush1.msra.mxu0 0.0
      %572 = vmatprep.subr.mxu0 0.0
      %573 = vmatpush1.msra.mxu0 0.0
      %574 = vmatprep.subr.mxu0 0.0
      %575 = vmatpush1.msra.mxu0 0.0
      %576 = vmatprep.subr.mxu0 0.0
      %577 = vmatpush1.msra.mxu0 0.0
      %578 = vmatprep.subr.mxu0 0.0
      %579 = vmatpush1.msra.mxu0 0.0
      %580 = vmatprep.subr.mxu0 0.0
      %581 = vmatpush1.msra.mxu0 0.0
      %582 = vmatprep.subr.mxu0 0.0
      %583 = vmatpush1.msra.mxu0 0.0
      %584 = vmatprep.subr.mxu0 0.0
      %585 = vmatpush1.msra.mxu0 0.0
      %586 = vmatprep.subr.mxu0 0.0
      %587 = vmatpush1.msra.mxu0 0.0
      %588 = vmatprep.subr.mxu0 0.0
      %589 = vmatpush1.msra.mxu0 0.0
      %590 = vmatprep.subr.mxu0 0.0
      %591 = vmatpush1.msra.mxu0 0.0
      %592 = vmatprep.subr.mxu0 0.0
      %593 = vmatpush1.msra.mxu0 0.0
      %594 = vmatprep.subr.mxu0 0.0
      %595 = vmatpush1.msra.mxu0 0.0
      %596 = vmatprep.subr.mxu0 0.0
      %597 = vmatpush1.msra.mxu0 0.0
      %598 = vmatprep.subr.mxu0 0.0
      %599 = vmatpush1.msra.mxu0 0.0
      %600 = vmatprep.subr.mxu0 0.0
      %601 = vmatpush1.msra.mxu0 0.0
      %602 = vmatprep.subr.mxu0 0.0
      %603 = vmatpush1.msra.mxu0 0.0
      %604 = vmatprep.subr.mxu0 0.0
      %605 = vmatpush1.msra.mxu0 0.0
      %606 = vmatprep.subr.mxu0 0.0
      %607 = vmatpush1.msra.mxu0 0.0
      %608 = vmatprep.subr.mxu0 0.0
      %609 = vmatpush1.msra.mxu0 0.0
      %610 = vmatprep.subr.mxu0 0.0
      %611 = vmatpush1.msra.mxu0 0.0
      %612 = vmatprep.subr.mxu0 0.0
      %613 = vmatpush1.msra.mxu0 0.0
      %614 = vmatprep.subr.mxu0 0.0
      %615 = vmatpush1.msra.mxu0 0.0
      %616 = vmatprep.subr.mxu0 0.0
      %617 = vmatpush1.msra.mxu0 0.0
      %618 = vmatprep.mubr.f32.mxu0 0.0
      %619 = vmatmul.mubr.f32.gmra.mrb[0].mxu0 %v459
      %v620 = vpop.f32.mrb[0].mxu0
      %v621 = vadd.f32 %v450, %v620
      %v622 = vpop.f32.mrb[0].mxu0
      %v623 = vadd.f32 %v450, %v622
      %624 = vmatprep.mubr.f32.mxu0 0.0
      %625 = vmatmul.mubr.f32.gmra.mrb[0].mxu0 %v462
      %v626 = vpop.f32.mrb[0].mxu0
      %v627 = vadd.f32 %v455, %v626
      %v628 = vpop.f32.mrb[0].mxu0
      %v629 = vadd.f32 %v455, %v628
      %630 = vdwg.mxu0
      %vm631 = vcmp.gt.f32.partialorder %v544, 0.0
      %vm632 = vcmp.gt.f32.partialorder %v546, 0.0
      %vm633 = vcmp.gt.f32.partialorder %v621, 0.0
      %vm634 = vcmp.gt.f32.partialorder %v623, 0.0
      %vm635 = vcmp.gt.f32.partialorder %v550, 0.0
      %vm636 = vcmp.gt.f32.partialorder %v552, 0.0
      %vm637 = vcmp.gt.f32.partialorder %v627, 0.0
      %vm638 = vcmp.gt.f32.partialorder %v629, 0.0
      %v639 = vmin.f32 %v544, 0.0
      %v640 = vmin.f32 %v546, 0.0
      %v641 = vmin.f32 %v621, 0.0
      %v642 = vmin.f32 %v623, 0.0
      %v643 = vmin.f32 %v550, 0.0
      %v644 = vmin.f32 %v552, 0.0
      %v645 = vmin.f32 %v627, 0.0
      %v646 = vmin.f32 %v629, 0.0
      %v647 = vmul.f32 %v639, 1.442695
      %v648 = vpow.pop %v647
      %v649 = vmul.f32 %v640, 1.442695
      %v650 = vpow.pop %v649
      %v651 = vmul.f32 %v641, 1.442695
      %v652 = vpow.pop %v651
      %v653 = vmul.f32 %v642, 1.442695
      %v654 = vpow.pop %v653
      %v655 = vmul.f32 %v643, 1.442695
      %v656 = vpow.pop %v655
      %v657 = vmul.f32 %v644, 1.442695
      %v658 = vpow.pop %v657
      %v659 = vmul.f32 %v645, 1.442695
      %v660 = vpow.pop %v659
      %v661 = vmul.f32 %v646, 1.442695
      %v662 = vpow.pop %v661
      %v663 = vsub.f32 %v648, 1.0
      %v664 = vsub.f32 %v650, 1.0
      %v665 = vsub.f32 %v652, 1.0
      %v666 = vsub.f32 %v654, 1.0
      %v667 = vsub.f32 %v656, 1.0
      %v668 = vsub.f32 %v658, 1.0
      %v669 = vsub.f32 %v660, 1.0
      %v670 = vsub.f32 %v662, 1.0
      %v671 = vsel %vm631, %v544, %v663
      %v672 = vsel %vm632, %v546, %v664
      %v673 = vsel %vm633, %v621, %v665
      %v674 = vsel %vm634, %v623, %v666
      %v675 = vsel %vm635, %v550, %v667
      %v676 = vsel %vm636, %v552, %v668
      %v677 = vsel %vm637, %v627, %v669
      %v678 = vsel %vm638, %v629, %v670
      %687 = vrot.lane.b32.xlu0 %v671, 127
      %v688 = vpop.permute.xlu0 %687
      %689 = vrot.lane.b32.xlu0 %v672, 127
      %v690 = vpop.permute.xlu0 %689
      %691 = vrot.lane.b32.xlu0 %v673, 127
      %v692 = vpop.permute.xlu0 %691
      %693 = vrot.lane.b32.xlu0 %v674, 127
      %v694 = vpop.permute.xlu0 %693
      %695 = vrot.lane.b32.xlu0 %v675, 127
      %v696 = vpop.permute.xlu0 %695
      %697 = vrot.lane.b32.xlu0 %v676, 127
      %v698 = vpop.permute.xlu0 %697
      %699 = vrot.lane.b32.xlu0 %v677, 127
      %v700 = vpop.permute.xlu0 %699
      %701 = vrot.lane.b32.xlu0 %v678, 127
      %v702 = vpop.permute.xlu0 %701
      %vm703 = vcmask 1039360
      %v704 = vsel %vm703, %v688, %v690
      %v705 = vsel %vm703, %v690, %v692
      %v706 = vsel %vm703, %v692, %v694
      %v707 = vsel %vm703, %v696, %v698
      %v708 = vsel %vm703, %v698, %v700
      %v709 = vsel %vm703, %v700, %v702
      %718 = vrot.lane.b32.xlu0 %v671, 126
      %v719 = vpop.permute.xlu0 %718
      %720 = vrot.lane.b32.xlu0 %v672, 126
      %v721 = vpop.permute.xlu0 %720
      %722 = vrot.lane.b32.xlu0 %v673, 126
      %v723 = vpop.permute.xlu0 %722
      %724 = vrot.lane.b32.xlu0 %v674, 126
      %v725 = vpop.permute.xlu0 %724
      %726 = vrot.lane.b32.xlu0 %v675, 126
      %v727 = vpop.permute.xlu0 %726
      %728 = vrot.lane.b32.xlu0 %v676, 126
      %v729 = vpop.permute.xlu0 %728
      %730 = vrot.lane.b32.xlu0 %v677, 126
      %v731 = vpop.permute.xlu0 %730
      %732 = vrot.lane.b32.xlu0 %v678, 126
      %v733 = vpop.permute.xlu0 %732
      %vm734 = vcmask 1031168
      %v735 = vsel %vm734, %v719, %v721
      %v736 = vsel %vm734, %v721, %v723
      %v737 = vsel %vm734, %v723, %v725
      %v738 = vsel %vm734, %v727, %v729
      %v739 = vsel %vm734, %v729, %v731
      %v740 = vsel %vm734, %v731, %v733
      %749 = vrot.lane.b32.xlu0 %v671, 125
      %v750 = vpop.permute.xlu0 %749
      %751 = vrot.lane.b32.xlu0 %v672, 125
      %v752 = vpop.permute.xlu0 %751
      %753 = vrot.lane.b32.xlu0 %v673, 125
      %v754 = vpop.permute.xlu0 %753
      %755 = vrot.lane.b32.xlu0 %v674, 125
      %v756 = vpop.permute.xlu0 %755
      %757 = vrot.lane.b32.xlu0 %v675, 125
      %v758 = vpop.permute.xlu0 %757
      %759 = vrot.lane.b32.xlu0 %v676, 125
      %v760 = vpop.permute.xlu0 %759
      %761 = vrot.lane.b32.xlu0 %v677, 125
      %v762 = vpop.permute.xlu0 %761
      %763 = vrot.lane.b32.xlu0 %v678, 125
      %v764 = vpop.permute.xlu0 %763
      %vm765 = vcmask 1022976
      %v766 = vsel %vm765, %v750, %v752
      %v767 = vsel %vm765, %v752, %v754
      %v768 = vsel %vm765, %v754, %v756
      %v769 = vsel %vm765, %v758, %v760
      %v770 = vsel %vm765, %v760, %v762
      %v771 = vsel %vm765, %v762, %v764
      %780 = vrot.lane.b32.xlu0 %v671, 124
      %v781 = vpop.permute.xlu0 %780
      %782 = vrot.lane.b32.xlu0 %v672, 124
      %v783 = vpop.permute.xlu0 %782
      %784 = vrot.lane.b32.xlu0 %v673, 124
      %v785 = vpop.permute.xlu0 %784
      %786 = vrot.lane.b32.xlu0 %v674, 124
      %v787 = vpop.permute.xlu0 %786
      %788 = vrot.lane.b32.xlu0 %v675, 124
      %v789 = vpop.permute.xlu0 %788
      %790 = vrot.lane.b32.xlu0 %v676, 124
      %v791 = vpop.permute.xlu0 %790
      %792 = vrot.lane.b32.xlu0 %v677, 124
      %v793 = vpop.permute.xlu0 %792
      %794 = vrot.lane.b32.xlu0 %v678, 124
      %v795 = vpop.permute.xlu0 %794
      %vm796 = vcmask 1014784
      %v797 = vsel %vm796, %v781, %v783
      %v798 = vsel %vm796, %v783, %v785
      %v799 = vsel %vm796, %v785, %v787
      %v800 = vsel %vm796, %v789, %v791
      %v801 = vsel %vm796, %v791, %v793
      %v802 = vsel %vm796, %v793, %v795
      %811 = vrot.lane.b32.xlu0 %v671, 123
      %v812 = vpop.permute.xlu0 %811
      %813 = vrot.lane.b32.xlu0 %v672, 123
      %v814 = vpop.permute.xlu0 %813
      %815 = vrot.lane.b32.xlu0 %v673, 123
      %v816 = vpop.permute.xlu0 %815
      %817 = vrot.lane.b32.xlu0 %v674, 123
      %v818 = vpop.permute.xlu0 %817
      %819 = vrot.lane.b32.xlu0 %v675, 123
      %v820 = vpop.permute.xlu0 %819
      %821 = vrot.lane.b32.xlu0 %v676, 123
      %v822 = vpop.permute.xlu0 %821
      %823 = vrot.lane.b32.xlu0 %v677, 123
      %v824 = vpop.permute.xlu0 %823
      %825 = vrot.lane.b32.xlu0 %v678, 123
      %v826 = vpop.permute.xlu0 %825
      %vm827 = vcmask 1006592
      %v828 = vsel %vm827, %v812, %v814
      %v829 = vsel %vm827, %v814, %v816
      %v830 = vsel %vm827, %v816, %v818
      %v831 = vsel %vm827, %v820, %v822
      %v832 = vsel %vm827, %v822, %v824
      %v833 = vsel %vm827, %v824, %v826
      %842 = vrot.lane.b32.xlu0 %v671, 122
      %v843 = vpop.permute.xlu0 %842
      %844 = vrot.lane.b32.xlu0 %v672, 122
      %v845 = vpop.permute.xlu0 %844
      %846 = vrot.lane.b32.xlu0 %v673, 122
      %v847 = vpop.permute.xlu0 %846
      %848 = vrot.lane.b32.xlu0 %v674, 122
      %v849 = vpop.permute.xlu0 %848
      %850 = vrot.lane.b32.xlu0 %v675, 122
      %v851 = vpop.permute.xlu0 %850
      %852 = vrot.lane.b32.xlu0 %v676, 122
      %v853 = vpop.permute.xlu0 %852
      %854 = vrot.lane.b32.xlu0 %v677, 122
      %v855 = vpop.permute.xlu0 %854
      %856 = vrot.lane.b32.xlu0 %v678, 122
      %v857 = vpop.permute.xlu0 %856
      %vm858 = vcmask 998400
      %v859 = vsel %vm858, %v843, %v845
      %v860 = vsel %vm858, %v845, %v847
      %v861 = vsel %vm858, %v847, %v849
      %v862 = vsel %vm858, %v851, %v853
      %v863 = vsel %vm858, %v853, %v855
      %v864 = vsel %vm858, %v855, %v857
      %873 = vrot.lane.b32.xlu0 %v671, 121
      %v874 = vpop.permute.xlu0 %873
      %875 = vrot.lane.b32.xlu0 %v672, 121
      %v876 = vpop.permute.xlu0 %875
      %877 = vrot.lane.b32.xlu0 %v673, 121
      %v878 = vpop.permute.xlu0 %877
      %879 = vrot.lane.b32.xlu0 %v674, 121
      %v880 = vpop.permute.xlu0 %879
      %881 = vrot.lane.b32.xlu0 %v675, 121
      %v882 = vpop.permute.xlu0 %881
      %883 = vrot.lane.b32.xlu0 %v676, 121
      %v884 = vpop.permute.xlu0 %883
      %885 = vrot.lane.b32.xlu0 %v677, 121
      %v886 = vpop.permute.xlu0 %885
      %887 = vrot.lane.b32.xlu0 %v678, 121
      %v888 = vpop.permute.xlu0 %887
      %vm889 = vcmask 990208
      %v890 = vsel %vm889, %v874, %v876
      %v891 = vsel %vm889, %v876, %v878
      %v892 = vsel %vm889, %v878, %v880
      %v893 = vsel %vm889, %v882, %v884
      %v894 = vsel %vm889, %v884, %v886
      %v895 = vsel %vm889, %v886, %v888
      %904 = vrot.lane.b32.xlu0 %v671, 120
      %v905 = vpop.permute.xlu0 %904
      %906 = vrot.lane.b32.xlu0 %v672, 120
      %v907 = vpop.permute.xlu0 %906
      %908 = vrot.lane.b32.xlu0 %v673, 120
      %v909 = vpop.permute.xlu0 %908
      %910 = vrot.lane.b32.xlu0 %v674, 120
      %v911 = vpop.permute.xlu0 %910
      %912 = vrot.lane.b32.xlu0 %v675, 120
      %v913 = vpop.permute.xlu0 %912
      %914 = vrot.lane.b32.xlu0 %v676, 120
      %v915 = vpop.permute.xlu0 %914
      %916 = vrot.lane.b32.xlu0 %v677, 120
      %v917 = vpop.permute.xlu0 %916
      %918 = vrot.lane.b32.xlu0 %v678, 120
      %v919 = vpop.permute.xlu0 %918
      %vm920 = vcmask 982016
      %v921 = vsel %vm920, %v905, %v907
      %v922 = vsel %vm920, %v907, %v909
      %v923 = vsel %vm920, %v909, %v911
      %v924 = vsel %vm920, %v913, %v915
      %v925 = vsel %vm920, %v915, %v917
      %v926 = vsel %vm920, %v917, %v919
      %935 = vrot.lane.b32.xlu0 %v671, 119
      %v936 = vpop.permute.xlu0 %935
      %937 = vrot.lane.b32.xlu0 %v672, 119
      %v938 = vpop.permute.xlu0 %937
      %939 = vrot.lane.b32.xlu0 %v673, 119
      %v940 = vpop.permute.xlu0 %939
      %941 = vrot.lane.b32.xlu0 %v674, 119
      %v942 = vpop.permute.xlu0 %941
      %943 = vrot.lane.b32.xlu0 %v675, 119
      %v944 = vpop.permute.xlu0 %943
      %945 = vrot.lane.b32.xlu0 %v676, 119
      %v946 = vpop.permute.xlu0 %945
      %947 = vrot.lane.b32.xlu0 %v677, 119
      %v948 = vpop.permute.xlu0 %947
      %949 = vrot.lane.b32.xlu0 %v678, 119
      %v950 = vpop.permute.xlu0 %949
      %vm951 = vcmask 973824
      %v952 = vsel %vm951, %v936, %v938
      %v953 = vsel %vm951, %v938, %v940
      %v954 = vsel %vm951, %v940, %v942
      %v955 = vsel %vm951, %v944, %v946
      %v956 = vsel %vm951, %v946, %v948
      %v957 = vsel %vm951, %v948, %v950
      %966 = vrot.lane.b32.xlu0 %v671, 118
      %v967 = vpop.permute.xlu0 %966
      %968 = vrot.lane.b32.xlu0 %v672, 118
      %v969 = vpop.permute.xlu0 %968
      %970 = vrot.lane.b32.xlu0 %v673, 118
      %v971 = vpop.permute.xlu0 %970
      %972 = vrot.lane.b32.xlu0 %v674, 118
      %v973 = vpop.permute.xlu0 %972
      %974 = vrot.lane.b32.xlu0 %v675, 118
      %v975 = vpop.permute.xlu0 %974
      %976 = vrot.lane.b32.xlu0 %v676, 118
      %v977 = vpop.permute.xlu0 %976
      %978 = vrot.lane.b32.xlu0 %v677, 118
      %v979 = vpop.permute.xlu0 %978
      %980 = vrot.lane.b32.xlu0 %v678, 118
      %v981 = vpop.permute.xlu0 %980
      %vm982 = vcmask 965632
      %v983 = vsel %vm982, %v967, %v969
      %v984 = vsel %vm982, %v969, %v971
      %v985 = vsel %vm982, %v971, %v973
      %v986 = vsel %vm982, %v975, %v977
      %v987 = vsel %vm982, %v977, %v979
      %v988 = vsel %vm982, %v979, %v981
      %997 = vrot.lane.b32.xlu0 %v671, 117
      %v998 = vpop.permute.xlu0 %997
      %999 = vrot.lane.b32.xlu0 %v672, 117
      %v1000 = vpop.permute.xlu0 %999
      %1001 = vrot.lane.b32.xlu0 %v673, 117
      %v1002 = vpop.permute.xlu0 %1001
      %1003 = vrot.lane.b32.xlu0 %v674, 117
      %v1004 = vpop.permute.xlu0 %1003
      %1005 = vrot.lane.b32.xlu0 %v675, 117
      %v1006 = vpop.permute.xlu0 %1005
      %1007 = vrot.lane.b32.xlu0 %v676, 117
      %v1008 = vpop.permute.xlu0 %1007
      %1009 = vrot.lane.b32.xlu0 %v677, 117
      %v1010 = vpop.permute.xlu0 %1009
      %1011 = vrot.lane.b32.xlu0 %v678, 117
      %v1012 = vpop.permute.xlu0 %1011
      %vm1013 = vcmask 957440
      %v1014 = vsel %vm1013, %v998, %v1000
      %v1015 = vsel %vm1013, %v1000, %v1002
      %v1016 = vsel %vm1013, %v1002, %v1004
      %v1017 = vsel %vm1013, %v1006, %v1008
      %v1018 = vsel %vm1013, %v1008, %v1010
      %v1019 = vsel %vm1013, %v1010, %v1012
      %1028 = vrot.lane.b32.xlu0 %v671, 116
      %v1029 = vpop.permute.xlu0 %1028
      %1030 = vrot.lane.b32.xlu0 %v672, 116
      %v1031 = vpop.permute.xlu0 %1030
      %1032 = vrot.lane.b32.xlu0 %v673, 116
      %v1033 = vpop.permute.xlu0 %1032
      %1034 = vrot.lane.b32.xlu0 %v674, 116
      %v1035 = vpop.permute.xlu0 %1034
      %1036 = vrot.lane.b32.xlu0 %v675, 116
      %v1037 = vpop.permute.xlu0 %1036
      %1038 = vrot.lane.b32.xlu0 %v676, 116
      %v1039 = vpop.permute.xlu0 %1038
      %1040 = vrot.lane.b32.xlu0 %v677, 116
      %v1041 = vpop.permute.xlu0 %1040
      %1042 = vrot.lane.b32.xlu0 %v678, 116
      %v1043 = vpop.permute.xlu0 %1042
      %vm1044 = vcmask 949248
      %v1045 = vsel %vm1044, %v1029, %v1031
      %v1046 = vsel %vm1044, %v1031, %v1033
      %v1047 = vsel %vm1044, %v1033, %v1035
      %v1048 = vsel %vm1044, %v1037, %v1039
      %v1049 = vsel %vm1044, %v1039, %v1041
      %v1050 = vsel %vm1044, %v1041, %v1043
      %1059 = vrot.lane.b32.xlu0 %v671, 115
      %v1060 = vpop.permute.xlu0 %1059
      %1061 = vrot.lane.b32.xlu0 %v672, 115
      %v1062 = vpop.permute.xlu0 %1061
      %1063 = vrot.lane.b32.xlu0 %v673, 115
      %v1064 = vpop.permute.xlu0 %1063
      %1065 = vrot.lane.b32.xlu0 %v674, 115
      %v1066 = vpop.permute.xlu0 %1065
      %1067 = vrot.lane.b32.xlu0 %v675, 115
      %v1068 = vpop.permute.xlu0 %1067
      %1069 = vrot.lane.b32.xlu0 %v676, 115
      %v1070 = vpop.permute.xlu0 %1069
      %1071 = vrot.lane.b32.xlu0 %v677, 115
      %v1072 = vpop.permute.xlu0 %1071
      %1073 = vrot.lane.b32.xlu0 %v678, 115
      %v1074 = vpop.permute.xlu0 %1073
      %vm1075 = vcmask 941056
      %v1076 = vsel %vm1075, %v1060, %v1062
      %v1077 = vsel %vm1075, %v1062, %v1064
      %v1078 = vsel %vm1075, %v1064, %v1066
      %v1079 = vsel %vm1075, %v1068, %v1070
      %v1080 = vsel %vm1075, %v1070, %v1072
      %v1081 = vsel %vm1075, %v1072, %v1074
      %1090 = vrot.lane.b32.xlu0 %v671, 114
      %v1091 = vpop.permute.xlu0 %1090
      %1092 = vrot.lane.b32.xlu0 %v672, 114
      %v1093 = vpop.permute.xlu0 %1092
      %1094 = vrot.lane.b32.xlu0 %v673, 114
      %v1095 = vpop.permute.xlu0 %1094
      %1096 = vrot.lane.b32.xlu0 %v674, 114
      %v1097 = vpop.permute.xlu0 %1096
      %1098 = vrot.lane.b32.xlu0 %v675, 114
      %v1099 = vpop.permute.xlu0 %1098
      %1100 = vrot.lane.b32.xlu0 %v676, 114
      %v1101 = vpop.permute.xlu0 %1100
      %1102 = vrot.lane.b32.xlu0 %v677, 114
      %v1103 = vpop.permute.xlu0 %1102
      %1104 = vrot.lane.b32.xlu0 %v678, 114
      %v1105 = vpop.permute.xlu0 %1104
      %vm1106 = vcmask 932864
      %v1107 = vsel %vm1106, %v1091, %v1093
      %v1108 = vsel %vm1106, %v1093, %v1095
      %v1109 = vsel %vm1106, %v1095, %v1097
      %v1110 = vsel %vm1106, %v1099, %v1101
      %v1111 = vsel %vm1106, %v1101, %v1103
      %v1112 = vsel %vm1106, %v1103, %v1105
      %1121 = vrot.lane.b32.xlu0 %v671, 113
      %v1122 = vpop.permute.xlu0 %1121
      %1123 = vrot.lane.b32.xlu0 %v672, 113
      %v1124 = vpop.permute.xlu0 %1123
      %1125 = vrot.lane.b32.xlu0 %v673, 113
      %v1126 = vpop.permute.xlu0 %1125
      %1127 = vrot.lane.b32.xlu0 %v674, 113
      %v1128 = vpop.permute.xlu0 %1127
      %1129 = vrot.lane.b32.xlu0 %v675, 113
      %v1130 = vpop.permute.xlu0 %1129
      %1131 = vrot.lane.b32.xlu0 %v676, 113
      %v1132 = vpop.permute.xlu0 %1131
      %1133 = vrot.lane.b32.xlu0 %v677, 113
      %v1134 = vpop.permute.xlu0 %1133
      %1135 = vrot.lane.b32.xlu0 %v678, 113
      %v1136 = vpop.permute.xlu0 %1135
      %vm1137 = vcmask 924672
      %v1138 = vsel %vm1137, %v1122, %v1124
      %v1139 = vsel %vm1137, %v1124, %v1126
      %v1140 = vsel %vm1137, %v1126, %v1128
      %v1141 = vsel %vm1137, %v1130, %v1132
      %v1142 = vsel %vm1137, %v1132, %v1134
      %v1143 = vsel %vm1137, %v1134, %v1136
      %1152 = vrot.lane.b32.xlu0 %v671, 112
      %v1153 = vpop.permute.xlu0 %1152
      %1154 = vrot.lane.b32.xlu0 %v672, 112
      %v1155 = vpop.permute.xlu0 %1154
      %1156 = vrot.lane.b32.xlu0 %v673, 112
      %v1157 = vpop.permute.xlu0 %1156
      %1158 = vrot.lane.b32.xlu0 %v674, 112
      %v1159 = vpop.permute.xlu0 %1158
      %1160 = vrot.lane.b32.xlu0 %v675, 112
      %v1161 = vpop.permute.xlu0 %1160
      %1162 = vrot.lane.b32.xlu0 %v676, 112
      %v1163 = vpop.permute.xlu0 %1162
      %1164 = vrot.lane.b32.xlu0 %v677, 112
      %v1165 = vpop.permute.xlu0 %1164
      %1166 = vrot.lane.b32.xlu0 %v678, 112
      %v1167 = vpop.permute.xlu0 %1166
      %1168 = vrot.lane.b32.xlu0 %v704, 112
      %v1169 = vpop.permute.xlu0 %1168
      %1170 = vrot.lane.b32.xlu0 %v705, 112
      %v1171 = vpop.permute.xlu0 %1170
      %1172 = vrot.lane.b32.xlu0 %v706, 112
      %v1173 = vpop.permute.xlu0 %1172
      %1174 = vrot.lane.b32.xlu0 %v694, 112
      %v1175 = vpop.permute.xlu0 %1174
      %1176 = vrot.lane.b32.xlu0 %v707, 112
      %v1177 = vpop.permute.xlu0 %1176
      %1178 = vrot.lane.b32.xlu0 %v708, 112
      %v1179 = vpop.permute.xlu0 %1178
      %1180 = vrot.lane.b32.xlu0 %v709, 112
      %v1181 = vpop.permute.xlu0 %1180
      %1182 = vrot.lane.b32.xlu0 %v702, 112
      %v1183 = vpop.permute.xlu0 %1182
      %1184 = vrot.lane.b32.xlu0 %v735, 112
      %v1185 = vpop.permute.xlu0 %1184
      %1186 = vrot.lane.b32.xlu0 %v736, 112
      %v1187 = vpop.permute.xlu0 %1186
      %1188 = vrot.lane.b32.xlu0 %v737, 112
      %v1189 = vpop.permute.xlu0 %1188
      %1190 = vrot.lane.b32.xlu0 %v725, 112
      %v1191 = vpop.permute.xlu0 %1190
      %1192 = vrot.lane.b32.xlu0 %v738, 112
      %v1193 = vpop.permute.xlu0 %1192
      %1194 = vrot.lane.b32.xlu0 %v739, 112
      %v1195 = vpop.permute.xlu0 %1194
      %1196 = vrot.lane.b32.xlu0 %v740, 112
      %v1197 = vpop.permute.xlu0 %1196
      %1198 = vrot.lane.b32.xlu0 %v733, 112
      %v1199 = vpop.permute.xlu0 %1198
      %1200 = vrot.lane.b32.xlu0 %v766, 112
      %v1201 = vpop.permute.xlu0 %1200
      %1202 = vrot.lane.b32.xlu0 %v767, 112
      %v1203 = vpop.permute.xlu0 %1202
      %1204 = vrot.lane.b32.xlu0 %v768, 112
      %v1205 = vpop.permute.xlu0 %1204
      %1206 = vrot.lane.b32.xlu0 %v756, 112
      %v1207 = vpop.permute.xlu0 %1206
      %1208 = vrot.lane.b32.xlu0 %v769, 112
      %v1209 = vpop.permute.xlu0 %1208
      %1210 = vrot.lane.b32.xlu0 %v770, 112
      %v1211 = vpop.permute.xlu0 %1210
      %1212 = vrot.lane.b32.xlu0 %v771, 112
      %v1213 = vpop.permute.xlu0 %1212
      %1214 = vrot.lane.b32.xlu0 %v764, 112
      %v1215 = vpop.permute.xlu0 %1214
      %1216 = vrot.lane.b32.xlu0 %v797, 112
      %v1217 = vpop.permute.xlu0 %1216
      %1218 = vrot.lane.b32.xlu0 %v798, 112
      %v1219 = vpop.permute.xlu0 %1218
      %1220 = vrot.lane.b32.xlu0 %v799, 112
      %v1221 = vpop.permute.xlu0 %1220
      %1222 = vrot.lane.b32.xlu0 %v787, 112
      %v1223 = vpop.permute.xlu0 %1222
      %1224 = vrot.lane.b32.xlu0 %v800, 112
      %v1225 = vpop.permute.xlu0 %1224
      %1226 = vrot.lane.b32.xlu0 %v801, 112
      %v1227 = vpop.permute.xlu0 %1226
      %1228 = vrot.lane.b32.xlu0 %v802, 112
      %v1229 = vpop.permute.xlu0 %1228
      %1230 = vrot.lane.b32.xlu0 %v795, 112
      %v1231 = vpop.permute.xlu0 %1230
      %1232 = vrot.lane.b32.xlu0 %v828, 112
      %v1233 = vpop.permute.xlu0 %1232
      %1234 = vrot.lane.b32.xlu0 %v829, 112
      %v1235 = vpop.permute.xlu0 %1234
      %1236 = vrot.lane.b32.xlu0 %v830, 112
      %v1237 = vpop.permute.xlu0 %1236
      %1238 = vrot.lane.b32.xlu0 %v818, 112
      %v1239 = vpop.permute.xlu0 %1238
      %1240 = vrot.lane.b32.xlu0 %v831, 112
      %v1241 = vpop.permute.xlu0 %1240
      %1242 = vrot.lane.b32.xlu0 %v832, 112
      %v1243 = vpop.permute.xlu0 %1242
      %1244 = vrot.lane.b32.xlu0 %v833, 112
      %v1245 = vpop.permute.xlu0 %1244
      %1246 = vrot.lane.b32.xlu0 %v826, 112
      %v1247 = vpop.permute.xlu0 %1246
      %1248 = vrot.lane.b32.xlu0 %v859, 112
      %v1249 = vpop.permute.xlu0 %1248
      %1250 = vrot.lane.b32.xlu0 %v860, 112
      %v1251 = vpop.permute.xlu0 %1250
      %1252 = vrot.lane.b32.xlu0 %v861, 112
      %v1253 = vpop.permute.xlu0 %1252
      %1254 = vrot.lane.b32.xlu0 %v849, 112
      %v1255 = vpop.permute.xlu0 %1254
      %1256 = vrot.lane.b32.xlu0 %v862, 112
      %v1257 = vpop.permute.xlu0 %1256
      %1258 = vrot.lane.b32.xlu0 %v863, 112
      %v1259 = vpop.permute.xlu0 %1258
      %1260 = vrot.lane.b32.xlu0 %v864, 112
      %v1261 = vpop.permute.xlu0 %1260
      %1262 = vrot.lane.b32.xlu0 %v857, 112
      %v1263 = vpop.permute.xlu0 %1262
      %1264 = vrot.lane.b32.xlu0 %v890, 112
      %v1265 = vpop.permute.xlu0 %1264
      %1266 = vrot.lane.b32.xlu0 %v891, 112
      %v1267 = vpop.permute.xlu0 %1266
      %1268 = vrot.lane.b32.xlu0 %v892, 112
      %v1269 = vpop.permute.xlu0 %1268
      %1270 = vrot.lane.b32.xlu0 %v880, 112
      %v1271 = vpop.permute.xlu0 %1270
      %1272 = vrot.lane.b32.xlu0 %v893, 112
      %v1273 = vpop.permute.xlu0 %1272
      %1274 = vrot.lane.b32.xlu0 %v894, 112
      %v1275 = vpop.permute.xlu0 %1274
      %1276 = vrot.lane.b32.xlu0 %v895, 112
      %v1277 = vpop.permute.xlu0 %1276
      %1278 = vrot.lane.b32.xlu0 %v888, 112
      %v1279 = vpop.permute.xlu0 %1278
      %1280 = vrot.lane.b32.xlu0 %v921, 112
      %v1281 = vpop.permute.xlu0 %1280
      %1282 = vrot.lane.b32.xlu0 %v922, 112
      %v1283 = vpop.permute.xlu0 %1282
      %1284 = vrot.lane.b32.xlu0 %v923, 112
      %v1285 = vpop.permute.xlu0 %1284
      %1286 = vrot.lane.b32.xlu0 %v911, 112
      %v1287 = vpop.permute.xlu0 %1286
      %1288 = vrot.lane.b32.xlu0 %v924, 112
      %v1289 = vpop.permute.xlu0 %1288
      %1290 = vrot.lane.b32.xlu0 %v925, 112
      %v1291 = vpop.permute.xlu0 %1290
      %1292 = vrot.lane.b32.xlu0 %v926, 112
      %v1293 = vpop.permute.xlu0 %1292
      %1294 = vrot.lane.b32.xlu0 %v919, 112
      %v1295 = vpop.permute.xlu0 %1294
      %1296 = vrot.lane.b32.xlu0 %v952, 112
      %v1297 = vpop.permute.xlu0 %1296
      %1298 = vrot.lane.b32.xlu0 %v953, 112
      %v1299 = vpop.permute.xlu0 %1298
      %1300 = vrot.lane.b32.xlu0 %v954, 112
      %v1301 = vpop.permute.xlu0 %1300
      %1302 = vrot.lane.b32.xlu0 %v942, 112
      %v1303 = vpop.permute.xlu0 %1302
      %1304 = vrot.lane.b32.xlu0 %v955, 112
      %v1305 = vpop.permute.xlu0 %1304
      %1306 = vrot.lane.b32.xlu0 %v956, 112
      %v1307 = vpop.permute.xlu0 %1306
      %1308 = vrot.lane.b32.xlu0 %v957, 112
      %v1309 = vpop.permute.xlu0 %1308
      %1310 = vrot.lane.b32.xlu0 %v950, 112
      %v1311 = vpop.permute.xlu0 %1310
      %1312 = vrot.lane.b32.xlu0 %v983, 112
      %v1313 = vpop.permute.xlu0 %1312
      %1314 = vrot.lane.b32.xlu0 %v984, 112
      %v1315 = vpop.permute.xlu0 %1314
      %1316 = vrot.lane.b32.xlu0 %v985, 112
      %v1317 = vpop.permute.xlu0 %1316
      %1318 = vrot.lane.b32.xlu0 %v973, 112
      %v1319 = vpop.permute.xlu0 %1318
      %1320 = vrot.lane.b32.xlu0 %v986, 112
      %v1321 = vpop.permute.xlu0 %1320
      %1322 = vrot.lane.b32.xlu0 %v987, 112
      %v1323 = vpop.permute.xlu0 %1322
      %1324 = vrot.lane.b32.xlu0 %v988, 112
      %v1325 = vpop.permute.xlu0 %1324
      %1326 = vrot.lane.b32.xlu0 %v981, 112
      %v1327 = vpop.permute.xlu0 %1326
      %1328 = vrot.lane.b32.xlu0 %v1014, 112
      %v1329 = vpop.permute.xlu0 %1328
      %1330 = vrot.lane.b32.xlu0 %v1015, 112
      %v1331 = vpop.permute.xlu0 %1330
      %1332 = vrot.lane.b32.xlu0 %v1016, 112
      %v1333 = vpop.permute.xlu0 %1332
      %1334 = vrot.lane.b32.xlu0 %v1004, 112
      %v1335 = vpop.permute.xlu0 %1334
      %1336 = vrot.lane.b32.xlu0 %v1017, 112
      %v1337 = vpop.permute.xlu0 %1336
      %1338 = vrot.lane.b32.xlu0 %v1018, 112
      %v1339 = vpop.permute.xlu0 %1338
      %1340 = vrot.lane.b32.xlu0 %v1019, 112
      %v1341 = vpop.permute.xlu0 %1340
      %1342 = vrot.lane.b32.xlu0 %v1012, 112
      %v1343 = vpop.permute.xlu0 %1342
      %1344 = vrot.lane.b32.xlu0 %v1045, 112
      %v1345 = vpop.permute.xlu0 %1344
      %1346 = vrot.lane.b32.xlu0 %v1046, 112
      %v1347 = vpop.permute.xlu0 %1346
      %1348 = vrot.lane.b32.xlu0 %v1047, 112
      %v1349 = vpop.permute.xlu0 %1348
      %1350 = vrot.lane.b32.xlu0 %v1035, 112
      %v1351 = vpop.permute.xlu0 %1350
      %1352 = vrot.lane.b32.xlu0 %v1048, 112
      %v1353 = vpop.permute.xlu0 %1352
      %1354 = vrot.lane.b32.xlu0 %v1049, 112
      %v1355 = vpop.permute.xlu0 %1354
      %1356 = vrot.lane.b32.xlu0 %v1050, 112
      %v1357 = vpop.permute.xlu0 %1356
      %1358 = vrot.lane.b32.xlu0 %v1043, 112
      %v1359 = vpop.permute.xlu0 %1358
      %1360 = vrot.lane.b32.xlu0 %v1076, 112
      %v1361 = vpop.permute.xlu0 %1360
      %1362 = vrot.lane.b32.xlu0 %v1077, 112
      %v1363 = vpop.permute.xlu0 %1362
      %1364 = vrot.lane.b32.xlu0 %v1078, 112
      %v1365 = vpop.permute.xlu0 %1364
      %1366 = vrot.lane.b32.xlu0 %v1066, 112
      %v1367 = vpop.permute.xlu0 %1366
      %1368 = vrot.lane.b32.xlu0 %v1079, 112
      %v1369 = vpop.permute.xlu0 %1368
      %1370 = vrot.lane.b32.xlu0 %v1080, 112
      %v1371 = vpop.permute.xlu0 %1370
      %1372 = vrot.lane.b32.xlu0 %v1081, 112
      %v1373 = vpop.permute.xlu0 %1372
      %1374 = vrot.lane.b32.xlu0 %v1074, 112
      %v1375 = vpop.permute.xlu0 %1374
      %1376 = vrot.lane.b32.xlu0 %v1107, 112
      %v1377 = vpop.permute.xlu0 %1376
      %1378 = vrot.lane.b32.xlu0 %v1108, 112
      %v1379 = vpop.permute.xlu0 %1378
      %1380 = vrot.lane.b32.xlu0 %v1109, 112
      %v1381 = vpop.permute.xlu0 %1380
      %1382 = vrot.lane.b32.xlu0 %v1097, 112
      %v1383 = vpop.permute.xlu0 %1382
      %1384 = vrot.lane.b32.xlu0 %v1110, 112
      %v1385 = vpop.permute.xlu0 %1384
      %1386 = vrot.lane.b32.xlu0 %v1111, 112
      %v1387 = vpop.permute.xlu0 %1386
      %1388 = vrot.lane.b32.xlu0 %v1112, 112
      %v1389 = vpop.permute.xlu0 %1388
      %1390 = vrot.lane.b32.xlu0 %v1105, 112
      %v1391 = vpop.permute.xlu0 %1390
      %1392 = vrot.lane.b32.xlu0 %v1138, 112
      %v1393 = vpop.permute.xlu0 %1392
      %1394 = vrot.lane.b32.xlu0 %v1139, 112
      %v1395 = vpop.permute.xlu0 %1394
      %1396 = vrot.lane.b32.xlu0 %v1140, 112
      %v1397 = vpop.permute.xlu0 %1396
      %1398 = vrot.lane.b32.xlu0 %v1128, 112
      %v1399 = vpop.permute.xlu0 %1398
      %1400 = vrot.lane.b32.xlu0 %v1141, 112
      %v1401 = vpop.permute.xlu0 %1400
      %1402 = vrot.lane.b32.xlu0 %v1142, 112
      %v1403 = vpop.permute.xlu0 %1402
      %1404 = vrot.lane.b32.xlu0 %v1143, 112
      %v1405 = vpop.permute.xlu0 %1404
      %1406 = vrot.lane.b32.xlu0 %v1136, 112
      %v1407 = vpop.permute.xlu0 %1406
      %vm1408 = vcmask 916480
      %v1409 = vsel %vm1408, %v1153, %v1155
      %v1410 = vsel %vm1408, %v1155, %v1157
      %v1411 = vsel %vm1408, %v1157, %v1159
      %v1412 = vsel %vm1408, %v1161, %v1163
      %v1413 = vsel %vm1408, %v1163, %v1165
      %v1414 = vsel %vm1408, %v1165, %v1167
      %v1415 = vsel %vm1408, %v1169, %v1171
      %v1416 = vsel %vm1408, %v1171, %v1173
      %v1417 = vsel %vm1408, %v1173, %v1175
      %v1418 = vsel %vm1408, %v1177, %v1179
      %v1419 = vsel %vm1408, %v1179, %v1181
      %v1420 = vsel %vm1408, %v1181, %v1183
      %v1421 = vsel %vm1408, %v1185, %v1187
      %v1422 = vsel %vm1408, %v1187, %v1189
      %v1423 = vsel %vm1408, %v1189, %v1191
      %v1424 = vsel %vm1408, %v1193, %v1195
      %v1425 = vsel %vm1408, %v1195, %v1197
      %v1426 = vsel %vm1408, %v1197, %v1199
      %v1427 = vsel %vm1408, %v1201, %v1203
      %v1428 = vsel %vm1408, %v1203, %v1205
      %v1429 = vsel %vm1408, %v1205, %v1207
      %v1430 = vsel %vm1408, %v1209, %v1211
      %v1431 = vsel %vm1408, %v1211, %v1213
      %v1432 = vsel %vm1408, %v1213, %v1215
      %v1433 = vsel %vm1408, %v1217, %v1219
      %v1434 = vsel %vm1408, %v1219, %v1221
      %v1435 = vsel %vm1408, %v1221, %v1223
      %v1436 = vsel %vm1408, %v1225, %v1227
      %v1437 = vsel %vm1408, %v1227, %v1229
      %v1438 = vsel %vm1408, %v1229, %v1231
      %v1439 = vsel %vm1408, %v1233, %v1235
      %v1440 = vsel %vm1408, %v1235, %v1237
      %v1441 = vsel %vm1408, %v1237, %v1239
      %v1442 = vsel %vm1408, %v1241, %v1243
      %v1443 = vsel %vm1408, %v1243, %v1245
      %v1444 = vsel %vm1408, %v1245, %v1247
      %v1445 = vsel %vm1408, %v1249, %v1251
      %v1446 = vsel %vm1408, %v1251, %v1253
      %v1447 = vsel %vm1408, %v1253, %v1255
      %v1448 = vsel %vm1408, %v1257, %v1259
      %v1449 = vsel %vm1408, %v1259, %v1261
      %v1450 = vsel %vm1408, %v1261, %v1263
      %v1451 = vsel %vm1408, %v1265, %v1267
      %v1452 = vsel %vm1408, %v1267, %v1269
      %v1453 = vsel %vm1408, %v1269, %v1271
      %v1454 = vsel %vm1408, %v1273, %v1275
      %v1455 = vsel %vm1408, %v1275, %v1277
      %v1456 = vsel %vm1408, %v1277, %v1279
      %v1457 = vsel %vm1408, %v1281, %v1283
      %v1458 = vsel %vm1408, %v1283, %v1285
      %v1459 = vsel %vm1408, %v1285, %v1287
      %v1460 = vsel %vm1408, %v1289, %v1291
      %v1461 = vsel %vm1408, %v1291, %v1293
      %v1462 = vsel %vm1408, %v1293, %v1295
      %v1463 = vsel %vm1408, %v1297, %v1299
      %v1464 = vsel %vm1408, %v1299, %v1301
      %v1465 = vsel %vm1408, %v1301, %v1303
      %v1466 = vsel %vm1408, %v1305, %v1307
      %v1467 = vsel %vm1408, %v1307, %v1309
      %v1468 = vsel %vm1408, %v1309, %v1311
      %v1469 = vsel %vm1408, %v1313, %v1315
      %v1470 = vsel %vm1408, %v1315, %v1317
      %v1471 = vsel %vm1408, %v1317, %v1319
      %v1472 = vsel %vm1408, %v1321, %v1323
      %v1473 = vsel %vm1408, %v1323, %v1325
      %v1474 = vsel %vm1408, %v1325, %v1327
      %v1475 = vsel %vm1408, %v1329, %v1331
      %v1476 = vsel %vm1408, %v1331, %v1333
      %v1477 = vsel %vm1408, %v1333, %v1335
      %v1478 = vsel %vm1408, %v1337, %v1339
      %v1479 = vsel %vm1408, %v1339, %v1341
      %v1480 = vsel %vm1408, %v1341, %v1343
      %v1481 = vsel %vm1408, %v1345, %v1347
      %v1482 = vsel %vm1408, %v1347, %v1349
      %v1483 = vsel %vm1408, %v1349, %v1351
      %v1484 = vsel %vm1408, %v1353, %v1355
      %v1485 = vsel %vm1408, %v1355, %v1357
      %v1486 = vsel %vm1408, %v1357, %v1359
      %v1487 = vsel %vm1408, %v1361, %v1363
      %v1488 = vsel %vm1408, %v1363, %v1365
      %v1489 = vsel %vm1408, %v1365, %v1367
      %v1490 = vsel %vm1408, %v1369, %v1371
      %v1491 = vsel %vm1408, %v1371, %v1373
      %v1492 = vsel %vm1408, %v1373, %v1375
      %v1493 = vsel %vm1408, %v1377, %v1379
      %v1494 = vsel %vm1408, %v1379, %v1381
      %v1495 = vsel %vm1408, %v1381, %v1383
      %v1496 = vsel %vm1408, %v1385, %v1387
      %v1497 = vsel %vm1408, %v1387, %v1389
      %v1498 = vsel %vm1408, %v1389, %v1391
      %v1499 = vsel %vm1408, %v1393, %v1395
      %v1500 = vsel %vm1408, %v1395, %v1397
      %v1501 = vsel %vm1408, %v1397, %v1399
      %v1502 = vsel %vm1408, %v1401, %v1403
      %v1503 = vsel %vm1408, %v1403, %v1405
      %v1504 = vsel %vm1408, %v1405, %v1407
      %v1633 = vld [vmem:[%s3] sm:$0xff]
      %v1634 = vld [vmem:[%s3 + $0x8] sm:$0xff]
      %v1635 = vld [vmem:[%s3 + $0x10] sm:$0xff]
      %v1636 = vld [vmem:[%s3 + $0x18] sm:$0xff]
      %v1637 = vld [vmem:[%s3 + $0x20] sm:$0xff]
      %v1638 = vld [vmem:[%s3 + $0x28] sm:$0xff]
      %v1639 = vld [vmem:[%s3 + $0x30] sm:$0xff]
      %v1640 = vld [vmem:[%s3 + $0x38] sm:$0xff]
      %v1641 = vld [vmem:[%s3 + $0x40] sm:$0xff]
      %v1642 = vld [vmem:[%s3 + $0x48] sm:$0xff]
      %v1643 = vld [vmem:[%s3 + $0x50] sm:$0xff]
      %v1644 = vld [vmem:[%s3 + $0x58] sm:$0xff]
      %v1645 = vld [vmem:[%s3 + $0x60] sm:$0xff]
      %v1646 = vld [vmem:[%s3 + $0x68] sm:$0xff]
      %v1647 = vld [vmem:[%s3 + $0x70] sm:$0xff]
      %v1648 = vld [vmem:[%s3 + $0x78] sm:$0xff]
      %v1649 = vld [vmem:[%s3 + $0x80] sm:$0xff]
      %v1650 = vld [vmem:[%s3 + $0x88] sm:$0xff]
      %v1651 = vld [vmem:[%s3 + $0x90] sm:$0xff]
      %v1652 = vld [vmem:[%s3 + $0x98] sm:$0xff]
      %v1653 = vld [vmem:[%s3 + $0xa0] sm:$0xff]
      %v1654 = vld [vmem:[%s3 + $0xa8] sm:$0xff]
      %v1655 = vld [vmem:[%s3 + $0xb0] sm:$0xff]
      %v1656 = vld [vmem:[%s3 + $0xb8] sm:$0xff]
      %v1657 = vld [vmem:[%s3 + $0xc0] sm:$0xff]
      %v1658 = vld [vmem:[%s3 + $0xc8] sm:$0xff]
      %v1659 = vld [vmem:[%s3 + $0xd0] sm:$0xff]
      %v1660 = vld [vmem:[%s3 + $0xd8] sm:$0xff]
      %v1661 = vld [vmem:[%s3 + $0xe0] sm:$0xff]
      %v1662 = vld [vmem:[%s3 + $0xe8] sm:$0xff]
      %v1663 = vld [vmem:[%s3 + $0xf0] sm:$0xff]
      %v1664 = vld [vmem:[%s3 + $0xf8] sm:$0xff]
      %v1665 = vld [vmem:[%s3 + $0x100] sm:$0xf]
      %v1666 = vld [vmem:[%s3 + $0x108] sm:$0xf]
      %v1667 = vld [vmem:[%s3 + $0x110] sm:$0xf]
      %v1668 = vld [vmem:[%s3 + $0x118] sm:$0xf]
      %v1669 = vld [vmem:[%s4] sm:$0xff]
      %v1670 = vld [vmem:[%s4 + $0x8] sm:$0xff]
      %v1671 = vld [vmem:[%s4 + $0x10] sm:$0xff]
      %v1672 = vld [vmem:[%s4 + $0x18] sm:$0xff]
      %v1673 = vld [vmem:[%s4 + $0x20] sm:$0xff]
      %v1674 = vld [vmem:[%s4 + $0x28] sm:$0xff]
      %v1675 = vld [vmem:[%s4 + $0x30] sm:$0xff]
      %v1676 = vld [vmem:[%s4 + $0x38] sm:$0xff]
      %v1677 = vld [vmem:[%s4 + $0x40] sm:$0xf]
      %1679 = vset.pattern.permute.xlu0 0
      %1680 = vperm.xlu0 %1679, %v1669
      %v1681 = vpop.permute.xlu0 %1680
      %1684 = vset.pattern.permute.xlu0 0
      %1685 = vperm.xlu0 %1684, %v1670
      %v1686 = vpop.permute.xlu0 %1685
      %1689 = vset.pattern.permute.xlu0 0
      %1690 = vperm.xlu0 %1689, %v1671
      %v1691 = vpop.permute.xlu0 %1690
      %1694 = vset.pattern.permute.xlu0 0
      %1695 = vperm.xlu0 %1694, %v1672
      %v1696 = vpop.permute.xlu0 %1695
      %1699 = vset.pattern.permute.xlu0 0
      %1700 = vperm.xlu0 %1699, %v1673
      %v1701 = vpop.permute.xlu0 %1700
      %1704 = vset.pattern.permute.xlu0 0
      %1705 = vperm.xlu0 %1704, %v1674
      %v1706 = vpop.permute.xlu0 %1705
      %1709 = vset.pattern.permute.xlu0 0
      %1710 = vperm.xlu0 %1709, %v1675
      %v1711 = vpop.permute.xlu0 %1710
      %1714 = vset.pattern.permute.xlu0 0
      %1715 = vperm.xlu0 %1714, %v1676
      %v1716 = vpop.permute.xlu0 %1715
      %1719 = vset.pattern.permute.xlu0 0
      %1720 = vperm.xlu0 %1719, %v1677
      %v1721 = vpop.permute.xlu0 %1720
      %1723 = vmatprep.subr.mxu0 %v672
      %1724 = vmatpush1.msra.mxu0 %v671
      %1725 = vmatprep.subr.mxu0 %v676
      %1726 = vmatpush1.msra.mxu0 %v675
      %1727 = vmatprep.subr.mxu0 %v705
      %1728 = vmatpush1.msra.mxu0 %v704
      %1729 = vmatprep.subr.mxu0 %v708
      %1730 = vmatpush1.msra.mxu0 %v707
      %1731 = vmatprep.subr.mxu0 %v736
      %1732 = vmatpush1.msra.mxu0 %v735
      %1733 = vmatprep.subr.mxu0 %v739
      %1734 = vmatpush1.msra.mxu0 %v738
      %1735 = vmatprep.subr.mxu0 %v767
      %1736 = vmatpush1.msra.mxu0 %v766
      %1737 = vmatprep.subr.mxu0 %v770
      %1738 = vmatpush1.msra.mxu0 %v769
      %1739 = vmatprep.subr.mxu0 %v798
      %1740 = vmatpush1.msra.mxu0 %v797
      %1741 = vmatprep.subr.mxu0 %v801
      %1742 = vmatpush1.msra.mxu0 %v800
      %1743 = vmatprep.subr.mxu0 %v829
      %1744 = vmatpush1.msra.mxu0 %v828
      %1745 = vmatprep.subr.mxu0 %v832
      %1746 = vmatpush1.msra.mxu0 %v831
      %1747 = vmatprep.subr.mxu0 %v860
      %1748 = vmatpush1.msra.mxu0 %v859
      %1749 = vmatprep.subr.mxu0 %v863
      %1750 = vmatpush1.msra.mxu0 %v862
      %1751 = vmatprep.subr.mxu0 %v891
      %1752 = vmatpush1.msra.mxu0 %v890
      %1753 = vmatprep.subr.mxu0 %v894
      %1754 = vmatpush1.msra.mxu0 %v893
      %1755 = vmatprep.subr.mxu0 %v922
      %1756 = vmatpush1.msra.mxu0 %v921
      %1757 = vmatprep.subr.mxu0 %v925
      %1758 = vmatpush1.msra.mxu0 %v924
      %1759 = vmatprep.subr.mxu0 %v953
      %1760 = vmatpush1.msra.mxu0 %v952
      %1761 = vmatprep.subr.mxu0 %v956
      %1762 = vmatpush1.msra.mxu0 %v955
      %1763 = vmatprep.subr.mxu0 %v984
      %1764 = vmatpush1.msra.mxu0 %v983
      %1765 = vmatprep.subr.mxu0 %v987
      %1766 = vmatpush1.msra.mxu0 %v986
      %1767 = vmatprep.subr.mxu0 %v1015
      %1768 = vmatpush1.msra.mxu0 %v1014
      %1769 = vmatprep.subr.mxu0 %v1018
      %1770 = vmatpush1.msra.mxu0 %v1017
      %1771 = vmatprep.subr.mxu0 %v1046
      %1772 = vmatpush1.msra.mxu0 %v1045
      %1773 = vmatprep.subr.mxu0 %v1049
      %1774 = vmatpush1.msra.mxu0 %v1048
      %1775 = vmatprep.subr.mxu0 %v1077
      %1776 = vmatpush1.msra.mxu0 %v1076
      %1777 = vmatprep.subr.mxu0 %v1080
      %1778 = vmatpush1.msra.mxu0 %v1079
      %1779 = vmatprep.subr.mxu0 %v1108
      %1780 = vmatpush1.msra.mxu0 %v1107
      %1781 = vmatprep.subr.mxu0 %v1111
      %1782 = vmatpush1.msra.mxu0 %v1110
      %1783 = vmatprep.subr.mxu0 %v1139
      %1784 = vmatpush1.msra.mxu0 %v1138
      %1785 = vmatprep.subr.mxu0 %v1142
      %1786 = vmatpush1.msra.mxu0 %v1141
      %1787 = vmatprep.mubr.f32.mxu0 %v1634
      %1788 = vmatmul.mubr.f32.gmra.mrb[0].mxu0 %v1633
      %v1789 = vpop.f32.mrb[0].mxu0
      %v1790 = vadd.f32 %v1681, %v1789
      %v1791 = vpop.f32.mrb[0].mxu0
      %v1792 = vadd.f32 %v1681, %v1791
      %1793 = vmatprep.mubr.f32.mxu0 %v1638
      %1794 = vmatmul.mubr.f32.gmra.mrb[0].mxu0 %v1637
      %v1795 = vpop.f32.mrb[0].mxu0
      %v1796 = vadd.f32 %v1686, %v1795
      %v1797 = vpop.f32.mrb[0].mxu0
      %v1798 = vadd.f32 %v1686, %v1797
      %1799 = vmatprep.mubr.f32.mxu0 %v1642
      %1800 = vmatmul.mubr.f32.gmra.mrb[0].mxu0 %v1641
      %v1801 = vpop.f32.mrb[0].mxu0
      %v1802 = vadd.f32 %v1691, %v1801
      %v1803 = vpop.f32.mrb[0].mxu0
      %v1804 = vadd.f32 %v1691, %v1803
      %1805 = vmatprep.mubr.f32.mxu0 %v1646
      %1806 = vmatmul.mubr.f32.gmra.mrb[0].mxu0 %v1645
      %v1807 = vpop.f32.mrb[0].mxu0
      %v1808 = vadd.f32 %v1696, %v1807
      %v1809 = vpop.f32.mrb[0].mxu0
      %v1810 = vadd.f32 %v1696, %v1809
      %1811 = vmatprep.mubr.f32.mxu0 %v1650
      %1812 = vmatmul.mubr.f32.gmra.mrb[0].mxu0 %v1649
      %v1813 = vpop.f32.mrb[0].mxu0
      %v1814 = vadd.f32 %v1701, %v1813
      %v1815 = vpop.f32.mrb[0].mxu0
      %v1816 = vadd.f32 %v1701, %v1815
      %1817 = vmatprep.mubr.f32.mxu0 %v1654
      %1818 = vmatmul.mubr.f32.gmra.mrb[0].mxu0 %v1653
      %v1819 = vpop.f32.mrb[0].mxu0
      %v1820 = vadd.f32 %v1706, %v1819
      %v1821 = vpop.f32.mrb[0].mxu0
      %v1822 = vadd.f32 %v1706, %v1821
      %1823 = vmatprep.mubr.f32.mxu0 %v1658
      %1824 = vmatmul.mubr.f32.gmra.mrb[0].mxu0 %v1657
      %v1825 = vpop.f32.mrb[0].mxu0
      %v1826 = vadd.f32 %v1711, %v1825
      %v1827 = vpop.f32.mrb[0].mxu0
      %v1828 = vadd.f32 %v1711, %v1827
      %1829 = vmatprep.mubr.f32.mxu0 %v1662
      %1830 = vmatmul.mubr.f32.gmra.mrb[0].mxu0 %v1661
      %v1831 = vpop.f32.mrb[0].mxu0
      %v1832 = vadd.f32 %v1716, %v1831
      %v1833 = vpop.f32.mrb[0].mxu0
      %v1834 = vadd.f32 %v1716, %v1833
      %1835 = vmatprep.mubr.f32.mxu0 %v1666
      %1836 = vmatmul.mubr.f32.gmra.mrb[0].mxu0 %v1665
      %v1837 = vpop.f32.mrb[0].mxu0
      %v1838 = vadd.f32 %v1721, %v1837
      %v1839 = vpop.f32.mrb[0].mxu0
      %v1840 = vadd.f32 %v1721, %v1839
      %1841 = vdwg.mxu0
      %1842 = vmatprep.subr.mxu0 %v1410
      %1843 = vmatpush1.msra.mxu0 %v1409
      %1844 = vmatprep.subr.mxu0 %v1413
      %1845 = vmatpush1.msra.mxu0 %v1412
      %1846 = vmatprep.subr.mxu0 %v1416
      %1847 = vmatpush1.msra.mxu0 %v1415
      %1848 = vmatprep.subr.mxu0 %v1419
      %1849 = vmatpush1.msra.mxu0 %v1418
      %1850 = vmatprep.subr.mxu0 %v1422
      %1851 = vmatpush1.msra.mxu0 %v1421
      %1852 = vmatprep.subr.mxu0 %v1425
      %1853 = vmatpush1.msra.mxu0 %v1424
      %1854 = vmatprep.subr.mxu0 %v1428
      %1855 = vmatpush1.msra.mxu0 %v1427
      %1856 = vmatprep.subr.mxu0 %v1431
      %1857 = vmatpush1.msra.mxu0 %v1430
      %1858 = vmatprep.subr.mxu0 %v1434
      %1859 = vmatpush1.msra.mxu0 %v1433
      %1860 = vmatprep.subr.mxu0 %v1437
      %1861 = vmatpush1.msra.mxu0 %v1436
      %1862 = vmatprep.subr.mxu0 %v1440
      %1863 = vmatpush1.msra.mxu0 %v1439
      %1864 = vmatprep.subr.mxu0 %v1443
      %1865 = vmatpush1.msra.mxu0 %v1442
      %1866 = vmatprep.subr.mxu0 %v1446
      %1867 = vmatpush1.msra.mxu0 %v1445
      %1868 = vmatprep.subr.mxu0 %v1449
      %1869 = vmatpush1.msra.mxu0 %v1448
      %1870 = vmatprep.subr.mxu0 %v1452
      %1871 = vmatpush1.msra.mxu0 %v1451
      %1872 = vmatprep.subr.mxu0 %v1455
      %1873 = vmatpush1.msra.mxu0 %v1454
      %1874 = vmatprep.subr.mxu0 %v1458
      %1875 = vmatpush1.msra.mxu0 %v1457
      %1876 = vmatprep.subr.mxu0 %v1461
      %1877 = vmatpush1.msra.mxu0 %v1460
      %1878 = vmatprep.subr.mxu0 %v1464
      %1879 = vmatpush1.msra.mxu0 %v1463
      %1880 = vmatprep.subr.mxu0 %v1467
      %1881 = vmatpush1.msra.mxu0 %v1466
      %1882 = vmatprep.subr.mxu0 %v1470
      %1883 = vmatpush1.msra.mxu0 %v1469
      %1884 = vmatprep.subr.mxu0 %v1473
      %1885 = vmatpush1.msra.mxu0 %v1472
      %1886 = vmatprep.subr.mxu0 %v1476
      %1887 = vmatpush1.msra.mxu0 %v1475
      %1888 = vmatprep.subr.mxu0 %v1479
      %1889 = vmatpush1.msra.mxu0 %v1478
      %1890 = vmatprep.subr.mxu0 %v1482
      %1891 = vmatpush1.msra.mxu0 %v1481
      %1892 = vmatprep.subr.mxu0 %v1485
      %1893 = vmatpush1.msra.mxu0 %v1484
      %1894 = vmatprep.subr.mxu0 %v1488
      %1895 = vmatpush1.msra.mxu0 %v1487
      %1896 = vmatprep.subr.mxu0 %v1491
      %1897 = vmatpush1.msra.mxu0 %v1490
      %1898 = vmatprep.subr.mxu0 %v1494
      %1899 = vmatpush1.msra.mxu0 %v1493
      %1900 = vmatprep.subr.mxu0 %v1497
      %1901 = vmatpush1.msra.mxu0 %v1496
      %1902 = vmatprep.subr.mxu0 %v1500
      %1903 = vmatpush1.msra.mxu0 %v1499
      %1904 = vmatprep.subr.mxu0 %v1503
      %1905 = vmatpush1.msra.mxu0 %v1502
      %1906 = vmatprep.mubr.f32.mxu0 %v1636
      %1907 = vmatmul.mubr.f32.gmra.mrb[0].mxu0 %v1635
      %v1908 = vpop.f32.mrb[0].mxu0
      %v1909 = vadd.f32 %v1790, %v1908
      %v1910 = vpop.f32.mrb[0].mxu0
      %v1911 = vadd.f32 %v1792, %v1910
      %1912 = vmatprep.mubr.f32.mxu0 %v1640
      %1913 = vmatmul.mubr.f32.gmra.mrb[0].mxu0 %v1639
      %v1914 = vpop.f32.mrb[0].mxu0
      %v1915 = vadd.f32 %v1796, %v1914
      %v1916 = vpop.f32.mrb[0].mxu0
      %v1917 = vadd.f32 %v1798, %v1916
      %1918 = vmatprep.mubr.f32.mxu0 %v1644
      %1919 = vmatmul.mubr.f32.gmra.mrb[0].mxu0 %v1643
      %v1920 = vpop.f32.mrb[0].mxu0
      %v1921 = vadd.f32 %v1802, %v1920
      %v1922 = vpop.f32.mrb[0].mxu0
      %v1923 = vadd.f32 %v1804, %v1922
      %1924 = vmatprep.mubr.f32.mxu0 %v1648
      %1925 = vmatmul.mubr.f32.gmra.mrb[0].mxu0 %v1647
      %v1926 = vpop.f32.mrb[0].mxu0
      %v1927 = vadd.f32 %v1808, %v1926
      %v1928 = vpop.f32.mrb[0].mxu0
      %v1929 = vadd.f32 %v1810, %v1928
      %1930 = vmatprep.mubr.f32.mxu0 %v1652
      %1931 = vmatmul.mubr.f32.gmra.mrb[0].mxu0 %v1651
      %v1932 = vpop.f32.mrb[0].mxu0
      %v1933 = vadd.f32 %v1814, %v1932
      %v1934 = vpop.f32.mrb[0].mxu0
      %v1935 = vadd.f32 %v1816, %v1934
      %1936 = vmatprep.mubr.f32.mxu0 %v1656
      %1937 = vmatmul.mubr.f32.gmra.mrb[0].mxu0 %v1655
      %v1938 = vpop.f32.mrb[0].mxu0
      %v1939 = vadd.f32 %v1820, %v1938
      %v1940 = vpop.f32.mrb[0].mxu0
      %v1941 = vadd.f32 %v1822, %v1940
      %1942 = vmatprep.mubr.f32.mxu0 %v1660
      %1943 = vmatmul.mubr.f32.gmra.mrb[0].mxu0 %v1659
      %v1944 = vpop.f32.mrb[0].mxu0
      %v1945 = vadd.f32 %v1826, %v1944
      %v1946 = vpop.f32.mrb[0].mxu0
      %v1947 = vadd.f32 %v1828, %v1946
      %1948 = vmatprep.mubr.f32.mxu0 %v1664
      %1949 = vmatmul.mubr.f32.gmra.mrb[0].mxu0 %v1663
      %v1950 = vpop.f32.mrb[0].mxu0
      %v1951 = vadd.f32 %v1832, %v1950
      %v1952 = vpop.f32.mrb[0].mxu0
      %v1953 = vadd.f32 %v1834, %v1952
      %1954 = vmatprep.mubr.f32.mxu0 %v1668
      %1955 = vmatmul.mubr.f32.gmra.mrb[0].mxu0 %v1667
      %v1956 = vpop.f32.mrb[0].mxu0
      %v1957 = vadd.f32 %v1838, %v1956
      %v1958 = vpop.f32.mrb[0].mxu0
      %v1959 = vadd.f32 %v1840, %v1958
      %1960 = vdwg.mxu0
      %1961 = vmatprep.subr.mxu0 %v674
      %1962 = vmatpush1.msra.mxu0 %v673
      %1963 = vmatprep.subr.mxu0 %v678
      %1964 = vmatpush1.msra.mxu0 %v677
      %1965 = vmatprep.subr.mxu0 %v694
      %1966 = vmatpush1.msra.mxu0 %v706
      %1967 = vmatprep.subr.mxu0 %v702
      %1968 = vmatpush1.msra.mxu0 %v709
      %1969 = vmatprep.subr.mxu0 %v725
      %1970 = vmatpush1.msra.mxu0 %v737
      %1971 = vmatprep.subr.mxu0 %v733
      %1972 = vmatpush1.msra.mxu0 %v740
      %1973 = vmatprep.subr.mxu0 %v756
      %1974 = vmatpush1.msra.mxu0 %v768
      %1975 = vmatprep.subr.mxu0 %v764
      %1976 = vmatpush1.msra.mxu0 %v771
      %1977 = vmatprep.subr.mxu0 %v787
      %1978 = vmatpush1.msra.mxu0 %v799
      %1979 = vmatprep.subr.mxu0 %v795
      %1980 = vmatpush1.msra.mxu0 %v802
      %1981 = vmatprep.subr.mxu0 %v818
      %1982 = vmatpush1.msra.mxu0 %v830
      %1983 = vmatprep.subr.mxu0 %v826
      %1984 = vmatpush1.msra.mxu0 %v833
      %1985 = vmatprep.subr.mxu0 %v849
      %1986 = vmatpush1.msra.mxu0 %v861
      %1987 = vmatprep.subr.mxu0 %v857
      %1988 = vmatpush1.msra.mxu0 %v864
      %1989 = vmatprep.subr.mxu0 %v880
      %1990 = vmatpush1.msra.mxu0 %v892
      %1991 = vmatprep.subr.mxu0 %v888
      %1992 = vmatpush1.msra.mxu0 %v895
      %1993 = vmatprep.subr.mxu0 %v911
      %1994 = vmatpush1.msra.mxu0 %v923
      %1995 = vmatprep.subr.mxu0 %v919
      %1996 = vmatpush1.msra.mxu0 %v926
      %1997 = vmatprep.subr.mxu0 %v942
      %1998 = vmatpush1.msra.mxu0 %v954
      %1999 = vmatprep.subr.mxu0 %v950
      %2000 = vmatpush1.msra.mxu0 %v957
      %2001 = vmatprep.subr.mxu0 %v973
      %2002 = vmatpush1.msra.mxu0 %v985
      %2003 = vmatprep.subr.mxu0 %v981
      %2004 = vmatpush1.msra.mxu0 %v988
      %2005 = vmatprep.subr.mxu0 %v1004
      %2006 = vmatpush1.msra.mxu0 %v1016
      %2007 = vmatprep.subr.mxu0 %v1012
      %2008 = vmatpush1.msra.mxu0 %v1019
      %2009 = vmatprep.subr.mxu0 %v1035
      %2010 = vmatpush1.msra.mxu0 %v1047
      %2011 = vmatprep.subr.mxu0 %v1043
      %2012 = vmatpush1.msra.mxu0 %v1050
      %2013 = vmatprep.subr.mxu0 %v1066
      %2014 = vmatpush1.msra.mxu0 %v1078
      %2015 = vmatprep.subr.mxu0 %v1074
      %2016 = vmatpush1.msra.mxu0 %v1081
      %2017 = vmatprep.subr.mxu0 %v1097
      %2018 = vmatpush1.msra.mxu0 %v1109
      %2019 = vmatprep.subr.mxu0 %v1105
      %2020 = vmatpush1.msra.mxu0 %v1112
      %2021 = vmatprep.subr.mxu0 %v1128
      %2022 = vmatpush1.msra.mxu0 %v1140
      %2023 = vmatprep.subr.mxu0 %v1136
      %2024 = vmatpush1.msra.mxu0 %v1143
      %2025 = vmatprep.mubr.f32.mxu0 %v1634
      %2026 = vmatmul.mubr.f32.gmra.mrb[0].mxu0 %v1633
      %v2027 = vpop.f32.mrb[0].mxu0
      %v2028 = vadd.f32 %v1681, %v2027
      %v2029 = vpop.f32.mrb[0].mxu0
      %v2030 = vadd.f32 %v1681, %v2029
      %2031 = vmatprep.mubr.f32.mxu0 %v1638
      %2032 = vmatmul.mubr.f32.gmra.mrb[0].mxu0 %v1637
      %v2033 = vpop.f32.mrb[0].mxu0
      %v2034 = vadd.f32 %v1686, %v2033
      %v2035 = vpop.f32.mrb[0].mxu0
      %v2036 = vadd.f32 %v1686, %v2035
      %2037 = vmatprep.mubr.f32.mxu0 %v1642
      %2038 = vmatmul.mubr.f32.gmra.mrb[0].mxu0 %v1641
      %v2039 = vpop.f32.mrb[0].mxu0
      %v2040 = vadd.f32 %v1691, %v2039
      %v2041 = vpop.f32.mrb[0].mxu0
      %v2042 = vadd.f32 %v1691, %v2041
      %2043 = vmatprep.mubr.f32.mxu0 %v1646
      %2044 = vmatmul.mubr.f32.gmra.mrb[0].mxu0 %v1645
      %v2045 = vpop.f32.mrb[0].mxu0
      %v2046 = vadd.f32 %v1696, %v2045
      %v2047 = vpop.f32.mrb[0].mxu0
      %v2048 = vadd.f32 %v1696, %v2047
      %2049 = vmatprep.mubr.f32.mxu0 %v1650
      %2050 = vmatmul.mubr.f32.gmra.mrb[0].mxu0 %v1649
      %v2051 = vpop.f32.mrb[0].mxu0
      %v2052 = vadd.f32 %v1701, %v2051
      %v2053 = vpop.f32.mrb[0].mxu0
      %v2054 = vadd.f32 %v1701, %v2053
      %2055 = vmatprep.mubr.f32.mxu0 %v1654
      %2056 = vmatmul.mubr.f32.gmra.mrb[0].mxu0 %v1653
      %v2057 = vpop.f32.mrb[0].mxu0
      %v2058 = vadd.f32 %v1706, %v2057
      %v2059 = vpop.f32.mrb[0].mxu0
      %v2060 = vadd.f32 %v1706, %v2059
      %2061 = vmatprep.mubr.f32.mxu0 %v1658
      %2062 = vmatmul.mubr.f32.gmra.mrb[0].mxu0 %v1657
      %v2063 = vpop.f32.mrb[0].mxu0
      %v2064 = vadd.f32 %v1711, %v2063
      %v2065 = vpop.f32.mrb[0].mxu0
      %v2066 = vadd.f32 %v1711, %v2065
      %2067 = vmatprep.mubr.f32.mxu0 %v1662
      %2068 = vmatmul.mubr.f32.gmra.mrb[0].mxu0 %v1661
      %v2069 = vpop.f32.mrb[0].mxu0
      %v2070 = vadd.f32 %v1716, %v2069
      %v2071 = vpop.f32.mrb[0].mxu0
      %v2072 = vadd.f32 %v1716, %v2071
      %2073 = vmatprep.mubr.f32.mxu0 %v1666
      %2074 = vmatmul.mubr.f32.gmra.mrb[0].mxu0 %v1665
      %v2075 = vpop.f32.mrb[0].mxu0
      %v2076 = vadd.f32 %v1721, %v2075
      %v2077 = vpop.f32.mrb[0].mxu0
      %v2078 = vadd.f32 %v1721, %v2077
      %2079 = vdwg.mxu0
      %2080 = vmatprep.subr.mxu0 %v1159
      %2081 = vmatpush1.msra.mxu0 %v1411
      %2082 = vmatprep.subr.mxu0 %v1167
      %2083 = vmatpush1.msra.mxu0 %v1414
      %2084 = vmatprep.subr.mxu0 %v1175
      %2085 = vmatpush1.msra.mxu0 %v1417
      %2086 = vmatprep.subr.mxu0 %v1183
      %2087 = vmatpush1.msra.mxu0 %v1420
      %2088 = vmatprep.subr.mxu0 %v1191
      %2089 = vmatpush1.msra.mxu0 %v1423
      %2090 = vmatprep.subr.mxu0 %v1199
      %2091 = vmatpush1.msra.mxu0 %v1426
      %2092 = vmatprep.subr.mxu0 %v1207
      %2093 = vmatpush1.msra.mxu0 %v1429
      %2094 = vmatprep.subr.mxu0 %v1215
      %2095 = vmatpush1.msra.mxu0 %v1432
      %2096 = vmatprep.subr.mxu0 %v1223
      %2097 = vmatpush1.msra.mxu0 %v1435
      %2098 = vmatprep.subr.mxu0 %v1231
      %2099 = vmatpush1.msra.mxu0 %v1438
      %2100 = vmatprep.subr.mxu0 %v1239
      %2101 = vmatpush1.msra.mxu0 %v1441
      %2102 = vmatprep.subr.mxu0 %v1247
      %2103 = vmatpush1.msra.mxu0 %v1444
      %2104 = vmatprep.subr.mxu0 %v1255
      %2105 = vmatpush1.msra.mxu0 %v1447
      %2106 = vmatprep.subr.mxu0 %v1263
      %2107 = vmatpush1.msra.mxu0 %v1450
      %2108 = vmatprep.subr.mxu0 %v1271
      %2109 = vmatpush1.msra.mxu0 %v1453
      %2110 = vmatprep.subr.mxu0 %v1279
      %2111 = vmatpush1.msra.mxu0 %v1456
      %2112 = vmatprep.subr.mxu0 %v1287
      %2113 = vmatpush1.msra.mxu0 %v1459
      %2114 = vmatprep.subr.mxu0 %v1295
      %2115 = vmatpush1.msra.mxu0 %v1462
      %2116 = vmatprep.subr.mxu0 %v1303
      %2117 = vmatpush1.msra.mxu0 %v1465
      %2118 = vmatprep.subr.mxu0 %v1311
      %2119 = vmatpush1.msra.mxu0 %v1468
      %2120 = vmatprep.subr.mxu0 %v1319
      %2121 = vmatpush1.msra.mxu0 %v1471
      %2122 = vmatprep.subr.mxu0 %v1327
      %2123 = vmatpush1.msra.mxu0 %v1474
      %2124 = vmatprep.subr.mxu0 %v1335
      %2125 = vmatpush1.msra.mxu0 %v1477
      %2126 = vmatprep.subr.mxu0 %v1343
      %2127 = vmatpush1.msra.mxu0 %v1480
      %2128 = vmatprep.subr.mxu0 %v1351
      %2129 = vmatpush1.msra.mxu0 %v1483
      %2130 = vmatprep.subr.mxu0 %v1359
      %2131 = vmatpush1.msra.mxu0 %v1486
      %2132 = vmatprep.subr.mxu0 %v1367
      %2133 = vmatpush1.msra.mxu0 %v1489
      %2134 = vmatprep.subr.mxu0 %v1375
      %2135 = vmatpush1.msra.mxu0 %v1492
      %2136 = vmatprep.subr.mxu0 %v1383
      %2137 = vmatpush1.msra.mxu0 %v1495
      %2138 = vmatprep.subr.mxu0 %v1391
      %2139 = vmatpush1.msra.mxu0 %v1498
      %2140 = vmatprep.subr.mxu0 %v1399
      %2141 = vmatpush1.msra.mxu0 %v1501
      %2142 = vmatprep.subr.mxu0 %v1407
      %2143 = vmatpush1.msra.mxu0 %v1504
      %2144 = vmatprep.mubr.f32.mxu0 %v1636
      %2145 = vmatmul.mubr.f32.gmra.mrb[0].mxu0 %v1635
      %v2146 = vpop.f32.mrb[0].mxu0
      %v2147 = vadd.f32 %v2028, %v2146
      %v2148 = vpop.f32.mrb[0].mxu0
      %v2149 = vadd.f32 %v2030, %v2148
      %2150 = vmatprep.mubr.f32.mxu0 %v1640
      %2151 = vmatmul.mubr.f32.gmra.mrb[0].mxu0 %v1639
      %v2152 = vpop.f32.mrb[0].mxu0
      %v2153 = vadd.f32 %v2034, %v2152
      %v2154 = vpop.f32.mrb[0].mxu0
      %v2155 = vadd.f32 %v2036, %v2154
      %2156 = vmatprep.mubr.f32.mxu0 %v1644
      %2157 = vmatmul.mubr.f32.gmra.mrb[0].mxu0 %v1643
      %v2158 = vpop.f32.mrb[0].mxu0
      %v2159 = vadd.f32 %v2040, %v2158
      %v2160 = vpop.f32.mrb[0].mxu0
      %v2161 = vadd.f32 %v2042, %v2160
      %2162 = vmatprep.mubr.f32.mxu0 %v1648
      %2163 = vmatmul.mubr.f32.gmra.mrb[0].mxu0 %v1647
      %v2164 = vpop.f32.mrb[0].mxu0
      %v2165 = vadd.f32 %v2046, %v2164
      %v2166 = vpop.f32.mrb[0].mxu0
      %v2167 = vadd.f32 %v2048, %v2166
      %2168 = vmatprep.mubr.f32.mxu0 %v1652
      %2169 = vmatmul.mubr.f32.gmra.mrb[0].mxu0 %v1651
      %v2170 = vpop.f32.mrb[0].mxu0
      %v2171 = vadd.f32 %v2052, %v2170
      %v2172 = vpop.f32.mrb[0].mxu0
      %v2173 = vadd.f32 %v2054, %v2172
      %2174 = vmatprep.mubr.f32.mxu0 %v1656
      %2175 = vmatmul.mubr.f32.gmra.mrb[0].mxu0 %v1655
      %v2176 = vpop.f32.mrb[0].mxu0
      %v2177 = vadd.f32 %v2058, %v2176
      %v2178 = vpop.f32.mrb[0].mxu0
      %v2179 = vadd.f32 %v2060, %v2178
      %2180 = vmatprep.mubr.f32.mxu0 %v1660
      %2181 = vmatmul.mubr.f32.gmra.mrb[0].mxu0 %v1659
      %v2182 = vpop.f32.mrb[0].mxu0
      %v2183 = vadd.f32 %v2064, %v2182
      %v2184 = vpop.f32.mrb[0].mxu0
      %v2185 = vadd.f32 %v2066, %v2184
      %2186 = vmatprep.mubr.f32.mxu0 %v1664
      %2187 = vmatmul.mubr.f32.gmra.mrb[0].mxu0 %v1663
      %v2188 = vpop.f32.mrb[0].mxu0
      %v2189 = vadd.f32 %v2070, %v2188
      %v2190 = vpop.f32.mrb[0].mxu0
      %v2191 = vadd.f32 %v2072, %v2190
      %2192 = vmatprep.mubr.f32.mxu0 %v1668
      %2193 = vmatmul.mubr.f32.gmra.mrb[0].mxu0 %v1667
      %v2194 = vpop.f32.mrb[0].mxu0
      %v2195 = vadd.f32 %v2076, %v2194
      %v2196 = vpop.f32.mrb[0].mxu0
      %v2197 = vadd.f32 %v2078, %v2196
      %2198 = vdwg.mxu0
      %vm2199 = vcmp.gt.f32.partialorder %v1909, 0.0
      %vm2200 = vcmp.gt.f32.partialorder %v1911, 0.0
      %vm2201 = vcmp.gt.f32.partialorder %v2147, 0.0
      %vm2202 = vcmp.gt.f32.partialorder %v2149, 0.0
      %vm2203 = vcmp.gt.f32.partialorder %v1915, 0.0
      %vm2204 = vcmp.gt.f32.partialorder %v1917, 0.0
      %vm2205 = vcmp.gt.f32.partialorder %v2153, 0.0
      %vm2206 = vcmp.gt.f32.partialorder %v2155, 0.0
      %vm2207 = vcmp.gt.f32.partialorder %v1921, 0.0
      %vm2208 = vcmp.gt.f32.partialorder %v1923, 0.0
      %vm2209 = vcmp.gt.f32.partialorder %v2159, 0.0
      %vm2210 = vcmp.gt.f32.partialorder %v2161, 0.0
      %vm2211 = vcmp.gt.f32.partialorder %v1927, 0.0
      %vm2212 = vcmp.gt.f32.partialorder %v1929, 0.0
      %vm2213 = vcmp.gt.f32.partialorder %v2165, 0.0
      %vm2214 = vcmp.gt.f32.partialorder %v2167, 0.0
      %vm2215 = vcmp.gt.f32.partialorder %v1933, 0.0
      %vm2216 = vcmp.gt.f32.partialorder %v1935, 0.0
      %vm2217 = vcmp.gt.f32.partialorder %v2171, 0.0
      %vm2218 = vcmp.gt.f32.partialorder %v2173, 0.0
      %vm2219 = vcmp.gt.f32.partialorder %v1939, 0.0
      %vm2220 = vcmp.gt.f32.partialorder %v1941, 0.0
      %vm2221 = vcmp.gt.f32.partialorder %v2177, 0.0
      %vm2222 = vcmp.gt.f32.partialorder %v2179, 0.0
      %vm2223 = vcmp.gt.f32.partialorder %v1945, 0.0
      %vm2224 = vcmp.gt.f32.partialorder %v1947, 0.0
      %vm2225 = vcmp.gt.f32.partialorder %v2183, 0.0
      %vm2226 = vcmp.gt.f32.partialorder %v2185, 0.0
      %vm2227 = vcmp.gt.f32.partialorder %v1951, 0.0
      %vm2228 = vcmp.gt.f32.partialorder %v1953, 0.0
      %vm2229 = vcmp.gt.f32.partialorder %v2189, 0.0
      %vm2230 = vcmp.gt.f32.partialorder %v2191, 0.0
      %vm2231 = vcmp.gt.f32.partialorder %v1957, 0.0
      %vm2232 = vcmp.gt.f32.partialorder %v1959, 0.0
      %vm2233 = vcmp.gt.f32.partialorder %v2195, 0.0
      %vm2234 = vcmp.gt.f32.partialorder %v2197, 0.0
      %v2235 = vmin.f32 %v1909, 0.0
      %v2236 = vmin.f32 %v1911, 0.0
      %v2237 = vmin.f32 %v2147, 0.0
      %v2238 = vmin.f32 %v2149, 0.0
      %v2239 = vmin.f32 %v1915, 0.0
      %v2240 = vmin.f32 %v1917, 0.0
      %v2241 = vmin.f32 %v2153, 0.0
      %v2242 = vmin.f32 %v2155, 0.0
      %v2243 = vmin.f32 %v1921, 0.0
      %v2244 = vmin.f32 %v1923, 0.0
      %v2245 = vmin.f32 %v2159, 0.0
      %v2246 = vmin.f32 %v2161, 0.0
      %v2247 = vmin.f32 %v1927, 0.0
      %v2248 = vmin.f32 %v1929, 0.0
      %v2249 = vmin.f32 %v2165, 0.0
      %v2250 = vmin.f32 %v2167, 0.0
      %v2251 = vmin.f32 %v1933, 0.0
      %v2252 = vmin.f32 %v1935, 0.0
      %v2253 = vmin.f32 %v2171, 0.0
      %v2254 = vmin.f32 %v2173, 0.0
      %v2255 = vmin.f32 %v1939, 0.0
      %v2256 = vmin.f32 %v1941, 0.0
      %v2257 = vmin.f32 %v2177, 0.0
      %v2258 = vmin.f32 %v2179, 0.0
      %v2259 = vmin.f32 %v1945, 0.0
      %v2260 = vmin.f32 %v1947, 0.0
      %v2261 = vmin.f32 %v2183, 0.0
      %v2262 = vmin.f32 %v2185, 0.0
      %v2263 = vmin.f32 %v1951, 0.0
      %v2264 = vmin.f32 %v1953, 0.0
      %v2265 = vmin.f32 %v2189, 0.0
      %v2266 = vmin.f32 %v2191, 0.0
      %v2267 = vmin.f32 %v1957, 0.0
      %v2268 = vmin.f32 %v1959, 0.0
      %v2269 = vmin.f32 %v2195, 0.0
      %v2270 = vmin.f32 %v2197, 0.0
      %v2271 = vmul.f32 %v2235, 1.442695
      %v2272 = vpow.pop %v2271
      %v2273 = vmul.f32 %v2236, 1.442695
      %v2274 = vpow.pop %v2273
      %v2275 = vmul.f32 %v2237, 1.442695
      %v2276 = vpow.pop %v2275
      %v2277 = vmul.f32 %v2238, 1.442695
      %v2278 = vpow.pop %v2277
      %v2279 = vmul.f32 %v2239, 1.442695
      %v2280 = vpow.pop %v2279
      %v2281 = vmul.f32 %v2240, 1.442695
      %v2282 = vpow.pop %v2281
      %v2283 = vmul.f32 %v2241, 1.442695
      %v2284 = vpow.pop %v2283
      %v2285 = vmul.f32 %v2242, 1.442695
      %v2286 = vpow.pop %v2285
      %v2287 = vmul.f32 %v2243, 1.442695
      %v2288 = vpow.pop %v2287
      %v2289 = vmul.f32 %v2244, 1.442695
      %v2290 = vpow.pop %v2289
      %v2291 = vmul.f32 %v2245, 1.442695
      %v2292 = vpow.pop %v2291
      %v2293 = vmul.f32 %v2246, 1.442695
      %v2294 = vpow.pop %v2293
      %v2295 = vmul.f32 %v2247, 1.442695
      %v2296 = vpow.pop %v2295
      %v2297 = vmul.f32 %v2248, 1.442695
      %v2298 = vpow.pop %v2297
      %v2299 = vmul.f32 %v2249, 1.442695
      %v2300 = vpow.pop %v2299
      %v2301 = vmul.f32 %v2250, 1.442695
      %v2302 = vpow.pop %v2301
      %v2303 = vmul.f32 %v2251, 1.442695
      %v2304 = vpow.pop %v2303
      %v2305 = vmul.f32 %v2252, 1.442695
      %v2306 = vpow.pop %v2305
      %v2307 = vmul.f32 %v2253, 1.442695
      %v2308 = vpow.pop %v2307
      %v2309 = vmul.f32 %v2254, 1.442695
      %v2310 = vpow.pop %v2309
      %v2311 = vmul.f32 %v2255, 1.442695
      %v2312 = vpow.pop %v2311
      %v2313 = vmul.f32 %v2256, 1.442695
      %v2314 = vpow.pop %v2313
      %v2315 = vmul.f32 %v2257, 1.442695
      %v2316 = vpow.pop %v2315
      %v2317 = vmul.f32 %v2258, 1.442695
      %v2318 = vpow.pop %v2317
      %v2319 = vmul.f32 %v2259, 1.442695
      %v2320 = vpow.pop %v2319
      %v2321 = vmul.f32 %v2260, 1.442695
      %v2322 = vpow.pop %v2321
      %v2323 = vmul.f32 %v2261, 1.442695
      %v2324 = vpow.pop %v2323
      %v2325 = vmul.f32 %v2262, 1.442695
      %v2326 = vpow.pop %v2325
      %v2327 = vmul.f32 %v2263, 1.442695
      %v2328 = vpow.pop %v2327
      %v2329 = vmul.f32 %v2264, 1.442695
      %v2330 = vpow.pop %v2329
      %v2331 = vmul.f32 %v2265, 1.442695
      %v2332 = vpow.pop %v2331
      %v2333 = vmul.f32 %v2266, 1.442695
      %v2334 = vpow.pop %v2333
      %v2335 = vmul.f32 %v2267, 1.442695
      %v2336 = vpow.pop %v2335
      %v2337 = vmul.f32 %v2268, 1.442695
      %v2338 = vpow.pop %v2337
      %v2339 = vmul.f32 %v2269, 1.442695
      %v2340 = vpow.pop %v2339
      %v2341 = vmul.f32 %v2270, 1.442695
      %v2342 = vpow.pop %v2341
      %v2343 = vsub.f32 %v2272, 1.0
      %v2344 = vsub.f32 %v2274, 1.0
      %v2345 = vsub.f32 %v2276, 1.0
      %v2346 = vsub.f32 %v2278, 1.0
      %v2347 = vsub.f32 %v2280, 1.0
      %v2348 = vsub.f32 %v2282, 1.0
      %v2349 = vsub.f32 %v2284, 1.0
      %v2350 = vsub.f32 %v2286, 1.0
      %v2351 = vsub.f32 %v2288, 1.0
      %v2352 = vsub.f32 %v2290, 1.0
      %v2353 = vsub.f32 %v2292, 1.0
      %v2354 = vsub.f32 %v2294, 1.0
      %v2355 = vsub.f32 %v2296, 1.0
      %v2356 = vsub.f32 %v2298, 1.0
      %v2357 = vsub.f32 %v2300, 1.0
      %v2358 = vsub.f32 %v2302, 1.0
      %v2359 = vsub.f32 %v2304, 1.0
      %v2360 = vsub.f32 %v2306, 1.0
      %v2361 = vsub.f32 %v2308, 1.0
      %v2362 = vsub.f32 %v2310, 1.0
      %v2363 = vsub.f32 %v2312, 1.0
      %v2364 = vsub.f32 %v2314, 1.0
      %v2365 = vsub.f32 %v2316, 1.0
      %v2366 = vsub.f32 %v2318, 1.0
      %v2367 = vsub.f32 %v2320, 1.0
      %v2368 = vsub.f32 %v2322, 1.0
      %v2369 = vsub.f32 %v2324, 1.0
      %v2370 = vsub.f32 %v2326, 1.0
      %v2371 = vsub.f32 %v2328, 1.0
      %v2372 = vsub.f32 %v2330, 1.0
      %v2373 = vsub.f32 %v2332, 1.0
      %v2374 = vsub.f32 %v2334, 1.0
      %v2375 = vsub.f32 %v2336, 1.0
      %v2376 = vsub.f32 %v2338, 1.0
      %v2377 = vsub.f32 %v2340, 1.0
      %v2378 = vsub.f32 %v2342, 1.0
      %v2379 = vsel %vm2199, %v1909, %v2343
      %v2380 = vsel %vm2200, %v1911, %v2344
      %v2381 = vsel %vm2201, %v2147, %v2345
      %v2382 = vsel %vm2202, %v2149, %v2346
      %v2383 = vsel %vm2203, %v1915, %v2347
      %v2384 = vsel %vm2204, %v1917, %v2348
      %v2385 = vsel %vm2205, %v2153, %v2349
      %v2386 = vsel %vm2206, %v2155, %v2350
      %v2387 = vsel %vm2207, %v1921, %v2351
      %v2388 = vsel %vm2208, %v1923, %v2352
      %v2389 = vsel %vm2209, %v2159, %v2353
      %v2390 = vsel %vm2210, %v2161, %v2354
      %v2391 = vsel %vm2211, %v1927, %v2355
      %v2392 = vsel %vm2212, %v1929, %v2356
      %v2393 = vsel %vm2213, %v2165, %v2357
      %v2394 = vsel %vm2214, %v2167, %v2358
      %v2395 = vsel %vm2215, %v1933, %v2359
      %v2396 = vsel %vm2216, %v1935, %v2360
      %v2397 = vsel %vm2217, %v2171, %v2361
      %v2398 = vsel %vm2218, %v2173, %v2362
      %v2399 = vsel %vm2219, %v1939, %v2363
      %v2400 = vsel %vm2220, %v1941, %v2364
      %v2401 = vsel %vm2221, %v2177, %v2365
      %v2402 = vsel %vm2222, %v2179, %v2366
      %v2403 = vsel %vm2223, %v1945, %v2367
      %v2404 = vsel %vm2224, %v1947, %v2368
      %v2405 = vsel %vm2225, %v2183, %v2369
      %v2406 = vsel %vm2226, %v2185, %v2370
      %v2407 = vsel %vm2227, %v1951, %v2371
      %v2408 = vsel %vm2228, %v1953, %v2372
      %v2409 = vsel %vm2229, %v2189, %v2373
      %v2410 = vsel %vm2230, %v2191, %v2374
      %v2411 = vsel %vm2231, %v1957, %v2375
      %v2412 = vsel %vm2232, %v1959, %v2376
      %v2413 = vsel %vm2233, %v2195, %v2377
      %v2414 = vsel %vm2234, %v2197, %v2378
      %vm2451 = vcmask 1046528
      %v2452 = vrot.slane %v2379, 1
      %v2453 = vrot.slane %v2383, 1
      %v2454 = vsel %vm2451, %v2452, %v2453
      %v2455 = vrot.slane %v2380, 1
      %v2456 = vrot.slane %v2384, 1
      %v2457 = vsel %vm2451, %v2455, %v2456
      %v2458 = vrot.slane %v2381, 1
      %v2459 = vrot.slane %v2385, 1
      %v2460 = vsel %vm2451, %v2458, %v2459
      %v2461 = vrot.slane %v2382, 1
      %v2462 = vrot.slane %v2386, 1
      %v2463 = vsel %vm2451, %v2461, %v2462
      %v2464 = vrot.slane %v2387, 1
      %v2465 = vsel %vm2451, %v2453, %v2464
      %v2466 = vrot.slane %v2388, 1
      %v2467 = vsel %vm2451, %v2456, %v2466
      %v2468 = vrot.slane %v2389, 1
      %v2469 = vsel %vm2451, %v2459, %v2468
      %v2470 = vrot.slane %v2390, 1
      %v2471 = vsel %vm2451, %v2462, %v2470
      %v2472 = vrot.slane %v2391, 1
      %v2473 = vsel %vm2451, %v2464, %v2472
      %v2474 = vrot.slane %v2392, 1
      %v2475 = vsel %vm2451, %v2466, %v2474
      %v2476 = vrot.slane %v2393, 1
      %v2477 = vsel %vm2451, %v2468, %v2476
      %v2478 = vrot.slane %v2394, 1
      %v2479 = vsel %vm2451, %v2470, %v2478
      %v2480 = vrot.slane %v2395, 1
      %v2481 = vsel %vm2451, %v2472, %v2480
      %v2482 = vrot.slane %v2396, 1
      %v2483 = vsel %vm2451, %v2474, %v2482
      %v2484 = vrot.slane %v2397, 1
      %v2485 = vsel %vm2451, %v2476, %v2484
      %v2486 = vrot.slane %v2398, 1
      %v2487 = vsel %vm2451, %v2478, %v2486
      %v2488 = vrot.slane %v2399, 1
      %v2489 = vsel %vm2451, %v2480, %v2488
      %v2490 = vrot.slane %v2400, 1
      %v2491 = vsel %vm2451, %v2482, %v2490
      %v2492 = vrot.slane %v2401, 1
      %v2493 = vsel %vm2451, %v2484, %v2492
      %v2494 = vrot.slane %v2402, 1
      %v2495 = vsel %vm2451, %v2486, %v2494
      %v2496 = vrot.slane %v2403, 1
      %v2497 = vsel %vm2451, %v2488, %v2496
      %v2498 = vrot.slane %v2404, 1
      %v2499 = vsel %vm2451, %v2490, %v2498
      %v2500 = vrot.slane %v2405, 1
      %v2501 = vsel %vm2451, %v2492, %v2500
      %v2502 = vrot.slane %v2406, 1
      %v2503 = vsel %vm2451, %v2494, %v2502
      %v2504 = vrot.slane %v2407, 1
      %v2505 = vsel %vm2451, %v2496, %v2504
      %v2506 = vrot.slane %v2408, 1
      %v2507 = vsel %vm2451, %v2498, %v2506
      %v2508 = vrot.slane %v2409, 1
      %v2509 = vsel %vm2451, %v2500, %v2508
      %v2510 = vrot.slane %v2410, 1
      %v2511 = vsel %vm2451, %v2502, %v2510
      %v2512 = vrot.slane %v2411, 1
      %v2513 = vsel %vm2451, %v2504, %v2512
      %v2514 = vrot.slane %v2412, 1
      %v2515 = vsel %vm2451, %v2506, %v2514
      %v2516 = vrot.slane %v2413, 1
      %v2517 = vsel %vm2451, %v2508, %v2516
      %v2518 = vrot.slane %v2414, 1
      %v2519 = vsel %vm2451, %v2510, %v2518
      %v2556 = vmax.f32 %v2379, %v2454
      %v2557 = vmax.f32 %v2380, %v2457
      %v2558 = vmax.f32 %v2381, %v2460
      %v2559 = vmax.f32 %v2382, %v2463
      %v2560 = vmax.f32 %v2383, %v2465
      %v2561 = vmax.f32 %v2384, %v2467
      %v2562 = vmax.f32 %v2385, %v2469
      %v2563 = vmax.f32 %v2386, %v2471
      %v2564 = vmax.f32 %v2387, %v2473
      %v2565 = vmax.f32 %v2388, %v2475
      %v2566 = vmax.f32 %v2389, %v2477
      %v2567 = vmax.f32 %v2390, %v2479
      %v2568 = vmax.f32 %v2391, %v2481
      %v2569 = vmax.f32 %v2392, %v2483
      %v2570 = vmax.f32 %v2393, %v2485
      %v2571 = vmax.f32 %v2394, %v2487
      %v2572 = vmax.f32 %v2395, %v2489
      %v2573 = vmax.f32 %v2396, %v2491
      %v2574 = vmax.f32 %v2397, %v2493
      %v2575 = vmax.f32 %v2398, %v2495
      %v2576 = vmax.f32 %v2399, %v2497
      %v2577 = vmax.f32 %v2400, %v2499
      %v2578 = vmax.f32 %v2401, %v2501
      %v2579 = vmax.f32 %v2402, %v2503
      %v2580 = vmax.f32 %v2403, %v2505
      %v2581 = vmax.f32 %v2404, %v2507
      %v2582 = vmax.f32 %v2405, %v2509
      %v2583 = vmax.f32 %v2406, %v2511
      %v2584 = vmax.f32 %v2407, %v2513
      %v2585 = vmax.f32 %v2408, %v2515
      %v2586 = vmax.f32 %v2409, %v2517
      %v2587 = vmax.f32 %v2410, %v2519
      %v2588 = vmax.f32 %v2411, %v2512
      %v2589 = vmax.f32 %v2412, %v2514
      %v2590 = vmax.f32 %v2413, %v2516
      %v2591 = vmax.f32 %v2414, %v2518
      %2628 = vrot.lane.b32.xlu0 %v2556, 127
      %v2629 = vpop.permute.xlu0 %2628
      %2630 = vrot.lane.b32.xlu0 %v2557, 127
      %v2631 = vpop.permute.xlu0 %2630
      %2632 = vrot.lane.b32.xlu0 %v2558, 127
      %v2633 = vpop.permute.xlu0 %2632
      %2634 = vrot.lane.b32.xlu0 %v2559, 127
      %v2635 = vpop.permute.xlu0 %2634
      %2636 = vrot.lane.b32.xlu0 %v2560, 127
      %v2637 = vpop.permute.xlu0 %2636
      %2638 = vrot.lane.b32.xlu0 %v2561, 127
      %v2639 = vpop.permute.xlu0 %2638
      %2640 = vrot.lane.b32.xlu0 %v2562, 127
      %v2641 = vpop.permute.xlu0 %2640
      %2642 = vrot.lane.b32.xlu0 %v2563, 127
      %v2643 = vpop.permute.xlu0 %2642
      %2644 = vrot.lane.b32.xlu0 %v2564, 127
      %v2645 = vpop.permute.xlu0 %2644
      %2646 = vrot.lane.b32.xlu0 %v2565, 127
      %v2647 = vpop.permute.xlu0 %2646
      %2648 = vrot.lane.b32.xlu0 %v2566, 127
      %v2649 = vpop.permute.xlu0 %2648
      %2650 = vrot.lane.b32.xlu0 %v2567, 127
      %v2651 = vpop.permute.xlu0 %2650
      %2652 = vrot.lane.b32.xlu0 %v2568, 127
      %v2653 = vpop.permute.xlu0 %2652
      %2654 = vrot.lane.b32.xlu0 %v2569, 127
      %v2655 = vpop.permute.xlu0 %2654
      %2656 = vrot.lane.b32.xlu0 %v2570, 127
      %v2657 = vpop.permute.xlu0 %2656
      %2658 = vrot.lane.b32.xlu0 %v2571, 127
      %v2659 = vpop.permute.xlu0 %2658
      %2660 = vrot.lane.b32.xlu0 %v2572, 127
      %v2661 = vpop.permute.xlu0 %2660
      %2662 = vrot.lane.b32.xlu0 %v2573, 127
      %v2663 = vpop.permute.xlu0 %2662
      %2664 = vrot.lane.b32.xlu0 %v2574, 127
      %v2665 = vpop.permute.xlu0 %2664
      %2666 = vrot.lane.b32.xlu0 %v2575, 127
      %v2667 = vpop.permute.xlu0 %2666
      %2668 = vrot.lane.b32.xlu0 %v2576, 127
      %v2669 = vpop.permute.xlu0 %2668
      %2670 = vrot.lane.b32.xlu0 %v2577, 127
      %v2671 = vpop.permute.xlu0 %2670
      %2672 = vrot.lane.b32.xlu0 %v2578, 127
      %v2673 = vpop.permute.xlu0 %2672
      %2674 = vrot.lane.b32.xlu0 %v2579, 127
      %v2675 = vpop.permute.xlu0 %2674
      %2676 = vrot.lane.b32.xlu0 %v2580, 127
      %v2677 = vpop.permute.xlu0 %2676
      %2678 = vrot.lane.b32.xlu0 %v2581, 127
      %v2679 = vpop.permute.xlu0 %2678
      %2680 = vrot.lane.b32.xlu0 %v2582, 127
      %v2681 = vpop.permute.xlu0 %2680
      %2682 = vrot.lane.b32.xlu0 %v2583, 127
      %v2683 = vpop.permute.xlu0 %2682
      %2684 = vrot.lane.b32.xlu0 %v2584, 127
      %v2685 = vpop.permute.xlu0 %2684
      %2686 = vrot.lane.b32.xlu0 %v2585, 127
      %v2687 = vpop.permute.xlu0 %2686
      %2688 = vrot.lane.b32.xlu0 %v2586, 127
      %v2689 = vpop.permute.xlu0 %2688
      %2690 = vrot.lane.b32.xlu0 %v2587, 127
      %v2691 = vpop.permute.xlu0 %2690
      %2692 = vrot.lane.b32.xlu0 %v2588, 127
      %v2693 = vpop.permute.xlu0 %2692
      %2694 = vrot.lane.b32.xlu0 %v2589, 127
      %v2695 = vpop.permute.xlu0 %2694
      %2696 = vrot.lane.b32.xlu0 %v2590, 127
      %v2697 = vpop.permute.xlu0 %2696
      %2698 = vrot.lane.b32.xlu0 %v2591, 127
      %v2699 = vpop.permute.xlu0 %2698
      %v2700 = vsel %vm703, %v2629, %v2631
      %v2701 = vsel %vm703, %v2631, %v2633
      %v2702 = vsel %vm703, %v2633, %v2635
      %v2703 = vsel %vm703, %v2637, %v2639
      %v2704 = vsel %vm703, %v2639, %v2641
      %v2705 = vsel %vm703, %v2641, %v2643
      %v2706 = vsel %vm703, %v2645, %v2647
      %v2707 = vsel %vm703, %v2647, %v2649
      %v2708 = vsel %vm703, %v2649, %v2651
      %v2709 = vsel %vm703, %v2653, %v2655
      %v2710 = vsel %vm703, %v2655, %v2657
      %v2711 = vsel %vm703, %v2657, %v2659
      %v2712 = vsel %vm703, %v2661, %v2663
      %v2713 = vsel %vm703, %v2663, %v2665
      %v2714 = vsel %vm703, %v2665, %v2667
      %v2715 = vsel %vm703, %v2669, %v2671
      %v2716 = vsel %vm703, %v2671, %v2673
      %v2717 = vsel %vm703, %v2673, %v2675
      %v2718 = vsel %vm703, %v2677, %v2679
      %v2719 = vsel %vm703, %v2679, %v2681
      %v2720 = vsel %vm703, %v2681, %v2683
      %v2721 = vsel %vm703, %v2685, %v2687
      %v2722 = vsel %vm703, %v2687, %v2689
      %v2723 = vsel %vm703, %v2689, %v2691
      %v2724 = vsel %vm703, %v2693, %v2695
      %v2725 = vsel %vm703, %v2695, %v2697
      %v2726 = vsel %vm703, %v2697, %v2699
      %v2763 = vmax.f32 %v2556, %v2700
      %v2764 = vmax.f32 %v2557, %v2701
      %v2765 = vmax.f32 %v2558, %v2702
      %v2766 = vmax.f32 %v2559, %v2635
      %v2767 = vmax.f32 %v2560, %v2703
      %v2768 = vmax.f32 %v2561, %v2704
      %v2769 = vmax.f32 %v2562, %v2705
      %v2770 = vmax.f32 %v2563, %v2643
      %v2771 = vmax.f32 %v2564, %v2706
      %v2772 = vmax.f32 %v2565, %v2707
      %v2773 = vmax.f32 %v2566, %v2708
      %v2774 = vmax.f32 %v2567, %v2651
      %v2775 = vmax.f32 %v2568, %v2709
      %v2776 = vmax.f32 %v2569, %v2710
      %v2777 = vmax.f32 %v2570, %v2711
      %v2778 = vmax.f32 %v2571, %v2659
      %v2779 = vmax.f32 %v2572, %v2712
      %v2780 = vmax.f32 %v2573, %v2713
      %v2781 = vmax.f32 %v2574, %v2714
      %v2782 = vmax.f32 %v2575, %v2667
      %v2783 = vmax.f32 %v2576, %v2715
      %v2784 = vmax.f32 %v2577, %v2716
      %v2785 = vmax.f32 %v2578, %v2717
      %v2786 = vmax.f32 %v2579, %v2675
      %v2787 = vmax.f32 %v2580, %v2718
      %v2788 = vmax.f32 %v2581, %v2719
      %v2789 = vmax.f32 %v2582, %v2720
      %v2790 = vmax.f32 %v2583, %v2683
      %v2791 = vmax.f32 %v2584, %v2721
      %v2792 = vmax.f32 %v2585, %v2722
      %v2793 = vmax.f32 %v2586, %v2723
      %v2794 = vmax.f32 %v2587, %v2691
      %v2795 = vmax.f32 %v2588, %v2724
      %v2796 = vmax.f32 %v2589, %v2725
      %v2797 = vmax.f32 %v2590, %v2726
      %v2798 = vmax.f32 %v2591, %v2699
      %2835 = vrot.lane.b32.xlu0 %v2763, 126
      %v2836 = vpop.permute.xlu0 %2835
      %2837 = vrot.lane.b32.xlu0 %v2764, 126
      %v2838 = vpop.permute.xlu0 %2837
      %2839 = vrot.lane.b32.xlu0 %v2765, 126
      %v2840 = vpop.permute.xlu0 %2839
      %2841 = vrot.lane.b32.xlu0 %v2766, 126
      %v2842 = vpop.permute.xlu0 %2841
      %2843 = vrot.lane.b32.xlu0 %v2767, 126
      %v2844 = vpop.permute.xlu0 %2843
      %2845 = vrot.lane.b32.xlu0 %v2768, 126
      %v2846 = vpop.permute.xlu0 %2845
      %2847 = vrot.lane.b32.xlu0 %v2769, 126
      %v2848 = vpop.permute.xlu0 %2847
      %2849 = vrot.lane.b32.xlu0 %v2770, 126
      %v2850 = vpop.permute.xlu0 %2849
      %2851 = vrot.lane.b32.xlu0 %v2771, 126
      %v2852 = vpop.permute.xlu0 %2851
      %2853 = vrot.lane.b32.xlu0 %v2772, 126
      %v2854 = vpop.permute.xlu0 %2853
      %2855 = vrot.lane.b32.xlu0 %v2773, 126
      %v2856 = vpop.permute.xlu0 %2855
      %2857 = vrot.lane.b32.xlu0 %v2774, 126
      %v2858 = vpop.permute.xlu0 %2857
      %2859 = vrot.lane.b32.xlu0 %v2775, 126
      %v2860 = vpop.permute.xlu0 %2859
      %2861 = vrot.lane.b32.xlu0 %v2776, 126
      %v2862 = vpop.permute.xlu0 %2861
      %2863 = vrot.lane.b32.xlu0 %v2777, 126
      %v2864 = vpop.permute.xlu0 %2863
      %2865 = vrot.lane.b32.xlu0 %v2778, 126
      %v2866 = vpop.permute.xlu0 %2865
      %2867 = vrot.lane.b32.xlu0 %v2779, 126
      %v2868 = vpop.permute.xlu0 %2867
      %2869 = vrot.lane.b32.xlu0 %v2780, 126
      %v2870 = vpop.permute.xlu0 %2869
      %2871 = vrot.lane.b32.xlu0 %v2781, 126
      %v2872 = vpop.permute.xlu0 %2871
      %2873 = vrot.lane.b32.xlu0 %v2782, 126
      %v2874 = vpop.permute.xlu0 %2873
      %2875 = vrot.lane.b32.xlu0 %v2783, 126
      %v2876 = vpop.permute.xlu0 %2875
      %2877 = vrot.lane.b32.xlu0 %v2784, 126
      %v2878 = vpop.permute.xlu0 %2877
      %2879 = vrot.lane.b32.xlu0 %v2785, 126
      %v2880 = vpop.permute.xlu0 %2879
      %2881 = vrot.lane.b32.xlu0 %v2786, 126
      %v2882 = vpop.permute.xlu0 %2881
      %2883 = vrot.lane.b32.xlu0 %v2787, 126
      %v2884 = vpop.permute.xlu0 %2883
      %2885 = vrot.lane.b32.xlu0 %v2788, 126
      %v2886 = vpop.permute.xlu0 %2885
      %2887 = vrot.lane.b32.xlu0 %v2789, 126
      %v2888 = vpop.permute.xlu0 %2887
      %2889 = vrot.lane.b32.xlu0 %v2790, 126
      %v2890 = vpop.permute.xlu0 %2889
      %2891 = vrot.lane.b32.xlu0 %v2791, 126
      %v2892 = vpop.permute.xlu0 %2891
      %2893 = vrot.lane.b32.xlu0 %v2792, 126
      %v2894 = vpop.permute.xlu0 %2893
      %2895 = vrot.lane.b32.xlu0 %v2793, 126
      %v2896 = vpop.permute.xlu0 %2895
      %2897 = vrot.lane.b32.xlu0 %v2794, 126
      %v2898 = vpop.permute.xlu0 %2897
      %2899 = vrot.lane.b32.xlu0 %v2795, 126
      %v2900 = vpop.permute.xlu0 %2899
      %2901 = vrot.lane.b32.xlu0 %v2796, 126
      %v2902 = vpop.permute.xlu0 %2901
      %2903 = vrot.lane.b32.xlu0 %v2797, 126
      %v2904 = vpop.permute.xlu0 %2903
      %2905 = vrot.lane.b32.xlu0 %v2798, 126
      %v2906 = vpop.permute.xlu0 %2905
      %v2907 = vsel %vm734, %v2836, %v2838
      %v2908 = vsel %vm734, %v2838, %v2840
      %v2909 = vsel %vm734, %v2840, %v2842
      %v2910 = vsel %vm734, %v2844, %v2846
      %v2911 = vsel %vm734, %v2846, %v2848
      %v2912 = vsel %vm734, %v2848, %v2850
      %v2913 = vsel %vm734, %v2852, %v2854
      %v2914 = vsel %vm734, %v2854, %v2856
      %v2915 = vsel %vm734, %v2856, %v2858
      %v2916 = vsel %vm734, %v2860, %v2862
      %v2917 = vsel %vm734, %v2862, %v2864
      %v2918 = vsel %vm734, %v2864, %v2866
      %v2919 = vsel %vm734, %v2868, %v2870
      %v2920 = vsel %vm734, %v2870, %v2872
      %v2921 = vsel %vm734, %v2872, %v2874
      %v2922 = vsel %vm734, %v2876, %v2878
      %v2923 = vsel %vm734, %v2878, %v2880
      %v2924 = vsel %vm734, %v2880, %v2882
      %v2925 = vsel %vm734, %v2884, %v2886
      %v2926 = vsel %vm734, %v2886, %v2888
      %v2927 = vsel %vm734, %v2888, %v2890
      %v2928 = vsel %vm734, %v2892, %v2894
      %v2929 = vsel %vm734, %v2894, %v2896
      %v2930 = vsel %vm734, %v2896, %v2898
      %v2931 = vsel %vm734, %v2900, %v2902
      %v2932 = vsel %vm734, %v2902, %v2904
      %v2933 = vsel %vm734, %v2904, %v2906
      %v2970 = vmax.f32 %v2763, %v2907
      %v2971 = vmax.f32 %v2764, %v2908
      %v2972 = vmax.f32 %v2765, %v2909
      %v2973 = vmax.f32 %v2766, %v2842
      %v2974 = vmax.f32 %v2767, %v2910
      %v2975 = vmax.f32 %v2768, %v2911
      %v2976 = vmax.f32 %v2769, %v2912
      %v2977 = vmax.f32 %v2770, %v2850
      %v2978 = vmax.f32 %v2771, %v2913
      %v2979 = vmax.f32 %v2772, %v2914
      %v2980 = vmax.f32 %v2773, %v2915
      %v2981 = vmax.f32 %v2774, %v2858
      %v2982 = vmax.f32 %v2775, %v2916
      %v2983 = vmax.f32 %v2776, %v2917
      %v2984 = vmax.f32 %v2777, %v2918
      %v2985 = vmax.f32 %v2778, %v2866
      %v2986 = vmax.f32 %v2779, %v2919
      %v2987 = vmax.f32 %v2780, %v2920
      %v2988 = vmax.f32 %v2781, %v2921
      %v2989 = vmax.f32 %v2782, %v2874
      %v2990 = vmax.f32 %v2783, %v2922
      %v2991 = vmax.f32 %v2784, %v2923
      %v2992 = vmax.f32 %v2785, %v2924
      %v2993 = vmax.f32 %v2786, %v2882
      %v2994 = vmax.f32 %v2787, %v2925
      %v2995 = vmax.f32 %v2788, %v2926
      %v2996 = vmax.f32 %v2789, %v2927
      %v2997 = vmax.f32 %v2790, %v2890
      %v2998 = vmax.f32 %v2791, %v2928
      %v2999 = vmax.f32 %v2792, %v2929
      %v3000 = vmax.f32 %v2793, %v2930
      %v3001 = vmax.f32 %v2794, %v2898
      %v3002 = vmax.f32 %v2795, %v2931
      %v3003 = vmax.f32 %v2796, %v2932
      %v3004 = vmax.f32 %v2797, %v2933
      %v3005 = vmax.f32 %v2798, %v2906
      %v3006 = vld [vmem:[%s5] sm:$0xff]
      %v3007 = vld [vmem:[%s5 + $0x8] sm:$0xff]
      %v3008 = vld [vmem:[%s5 + $0x10] sm:$0xff]
      %v3009 = vld [vmem:[%s5 + $0x18] sm:$0xff]
      %vm3010 = vcmask 547840
      %v3012 = vsel %vm3010, %v3006, 0
      %v3015 = vsel %vm3010, %v3007, 0
      %v3018 = vsel %vm3010, %v3008, 0
      %v3021 = vsel %vm3010, %v3009, 0
      %vm3023 = vcmask 1042432
      %v3025 = vsel %vm3023, %v3002, 0
      %v3028 = vsel %vm3023, %v3003, 0
      %v3031 = vsel %vm3023, %v3004, 0
      %v3034 = vsel %vm3023, %v3005, 0
      %3036 = vmatprep.subr.mxu0 %v2971
      %3037 = vmatpush1.msra.mxu0 %v2970
      %3038 = vmatprep.subr.mxu0 %v2975
      %3039 = vmatpush1.msra.mxu0 %v2974
      %3040 = vmatprep.subr.mxu0 %v2979
      %3041 = vmatpush1.msra.mxu0 %v2978
      %3042 = vmatprep.subr.mxu0 %v2983
      %3043 = vmatpush1.msra.mxu0 %v2982
      %3044 = vmatprep.subr.mxu0 %v2987
      %3045 = vmatpush1.msra.mxu0 %v2986
      %3046 = vmatprep.subr.mxu0 %v2991
      %3047 = vmatpush1.msra.mxu0 %v2990
      %3048 = vmatprep.subr.mxu0 %v2995
      %3049 = vmatpush1.msra.mxu0 %v2994
      %3050 = vmatprep.subr.mxu0 %v2999
      %3051 = vmatpush1.msra.mxu0 %v2998
      %3052 = vmatprep.subr.mxu0 %v3028
      %3053 = vmatpush1.msra.mxu0 %v3025
      %3054 = vmatprep.subr.mxu0 0.0
      %3055 = vmatpush1.msra.mxu0 0.0
      %3056 = vmatprep.subr.mxu0 0.0
      %3057 = vmatpush1.msra.mxu0 0.0
      %3058 = vmatprep.subr.mxu0 0.0
      %3059 = vmatpush1.msra.mxu0 0.0
      %3060 = vmatprep.subr.mxu0 0.0
      %3061 = vmatpush1.msra.mxu0 0.0
      %3062 = vmatprep.subr.mxu0 0.0
      %3063 = vmatpush1.msra.mxu0 0.0
      %3064 = vmatprep.subr.mxu0 0.0
      %3065 = vmatpush1.msra.mxu0 0.0
      %3066 = vmatprep.subr.mxu0 0.0
      %3067 = vmatpush1.msra.mxu0 0.0
      %3068 = vmatprep.subr.mxu0 0.0
      %3069 = vmatpush1.msra.mxu0 0.0
      %3070 = vmatprep.subr.mxu0 0.0
      %3071 = vmatpush1.msra.mxu0 0.0
      %3072 = vmatprep.subr.mxu0 0.0
      %3073 = vmatpush1.msra.mxu0 0.0
      %3074 = vmatprep.subr.mxu0 0.0
      %3075 = vmatpush1.msra.mxu0 0.0
      %3076 = vmatprep.subr.mxu0 0.0
      %3077 = vmatpush1.msra.mxu0 0.0
      %3078 = vmatprep.subr.mxu0 0.0
      %3079 = vmatpush1.msra.mxu0 0.0
      %3080 = vmatprep.subr.mxu0 0.0
      %3081 = vmatpush1.msra.mxu0 0.0
      %3082 = vmatprep.subr.mxu0 0.0
      %3083 = vmatpush1.msra.mxu0 0.0
      %3084 = vmatprep.subr.mxu0 0.0
      %3085 = vmatpush1.msra.mxu0 0.0
      %3086 = vmatprep.subr.mxu0 0.0
      %3087 = vmatpush1.msra.mxu0 0.0
      %3088 = vmatprep.subr.mxu0 0.0
      %3089 = vmatpush1.msra.mxu0 0.0
      %3090 = vmatprep.subr.mxu0 0.0
      %3091 = vmatpush1.msra.mxu0 0.0
      %3092 = vmatprep.subr.mxu0 0.0
      %3093 = vmatpush1.msra.mxu0 0.0
      %3094 = vmatprep.subr.mxu0 0.0
      %3095 = vmatpush1.msra.mxu0 0.0
      %3096 = vmatprep.subr.mxu0 0.0
      %3097 = vmatpush1.msra.mxu0 0.0
      %3098 = vmatprep.subr.mxu0 0.0
      %3099 = vmatpush1.msra.mxu0 0.0
      %3100 = vmatprep.mubr.f32.mxu0 0.0
      %3101 = vmatmul.mubr.f32.gmra.mrb[0].mxu0 %v3012
      %v3102 = vpop.f32.mrb[0].mxu0
      %v3103 = vadd.f32 0.0, %v3102
      %v3104 = vpop.f32.mrb[0].mxu0
      %v3105 = vadd.f32 0.0, %v3104
      %3106 = vmatprep.mubr.f32.mxu0 0.0
      %3107 = vmatmul.mubr.f32.gmra.mrb[0].mxu0 %v3015
      %v3108 = vpop.f32.mrb[0].mxu0
      %v3109 = vadd.f32 0.0, %v3108
      %v3110 = vpop.f32.mrb[0].mxu0
      %v3111 = vadd.f32 0.0, %v3110
      %3112 = vmatprep.mubr.f32.mxu0 0.0
      %3113 = vmatmul.mubr.f32.gmra.mrb[0].mxu0 %v3018
      %v3114 = vpop.f32.mrb[0].mxu0
      %v3115 = vadd.f32 0.0, %v3114
      %v3116 = vpop.f32.mrb[0].mxu0
      %v3117 = vadd.f32 0.0, %v3116
      %3118 = vmatprep.mubr.f32.mxu0 0.0
      %3119 = vmatmul.mubr.f32.gmra.mrb[0].mxu0 %v3021
      %v3120 = vpop.f32.mrb[0].mxu0
      %v3121 = vadd.f32 0.0, %v3120
      %v3122 = vpop.f32.mrb[0].mxu0
      %v3123 = vadd.f32 0.0, %v3122
      %3124 = vdwg.mxu0
      %3125 = vmatprep.subr.mxu0 %v2973
      %3126 = vmatpush1.msra.mxu0 %v2972
      %3127 = vmatprep.subr.mxu0 %v2977
      %3128 = vmatpush1.msra.mxu0 %v2976
      %3129 = vmatprep.subr.mxu0 %v2981
      %3130 = vmatpush1.msra.mxu0 %v2980
      %3131 = vmatprep.subr.mxu0 %v2985
      %3132 = vmatpush1.msra.mxu0 %v2984
      %3133 = vmatprep.subr.mxu0 %v2989
      %3134 = vmatpush1.msra.mxu0 %v2988
      %3135 = vmatprep.subr.mxu0 %v2993
      %3136 = vmatpush1.msra.mxu0 %v2992
      %3137 = vmatprep.subr.mxu0 %v2997
      %3138 = vmatpush1.msra.mxu0 %v2996
      %3139 = vmatprep.subr.mxu0 %v3001
      %3140 = vmatpush1.msra.mxu0 %v3000
      %3141 = vmatprep.subr.mxu0 %v3034
      %3142 = vmatpush1.msra.mxu0 %v3031
      %3143 = vmatprep.subr.mxu0 0.0
      %3144 = vmatpush1.msra.mxu0 0.0
      %3145 = vmatprep.subr.mxu0 0.0
      %3146 = vmatpush1.msra.mxu0 0.0
      %3147 = vmatprep.subr.mxu0 0.0
      %3148 = vmatpush1.msra.mxu0 0.0
      %3149 = vmatprep.subr.mxu0 0.0
      %3150 = vmatpush1.msra.mxu0 0.0
      %3151 = vmatprep.subr.mxu0 0.0
      %3152 = vmatpush1.msra.mxu0 0.0
      %3153 = vmatprep.subr.mxu0 0.0
      %3154 = vmatpush1.msra.mxu0 0.0
      %3155 = vmatprep.subr.mxu0 0.0
      %3156 = vmatpush1.msra.mxu0 0.0
      %3157 = vmatprep.subr.mxu0 0.0
      %3158 = vmatpush1.msra.mxu0 0.0
      %3159 = vmatprep.subr.mxu0 0.0
      %3160 = vmatpush1.msra.mxu0 0.0
      %3161 = vmatprep.subr.mxu0 0.0
      %3162 = vmatpush1.msra.mxu0 0.0
      %3163 = vmatprep.subr.mxu0 0.0
      %3164 = vmatpush1.msra.mxu0 0.0
      %3165 = vmatprep.subr.mxu0 0.0
      %3166 = vmatpush1.msra.mxu0 0.0
      %3167 = vmatprep.subr.mxu0 0.0
      %3168 = vmatpush1.msra.mxu0 0.0
      %3169 = vmatprep.subr.mxu0 0.0
      %3170 = vmatpush1.msra.mxu0 0.0
      %3171 = vmatprep.subr.mxu0 0.0
      %3172 = vmatpush1.msra.mxu0 0.0
      %3173 = vmatprep.subr.mxu0 0.0
      %3174 = vmatpush1.msra.mxu0 0.0
      %3175 = vmatprep.subr.mxu0 0.0
      %3176 = vmatpush1.msra.mxu0 0.0
      %3177 = vmatprep.subr.mxu0 0.0
      %3178 = vmatpush1.msra.mxu0 0.0
      %3179 = vmatprep.subr.mxu0 0.0
      %3180 = vmatpush1.msra.mxu0 0.0
      %3181 = vmatprep.subr.mxu0 0.0
      %3182 = vmatpush1.msra.mxu0 0.0
      %3183 = vmatprep.subr.mxu0 0.0
      %3184 = vmatpush1.msra.mxu0 0.0
      %3185 = vmatprep.subr.mxu0 0.0
      %3186 = vmatpush1.msra.mxu0 0.0
      %3187 = vmatprep.subr.mxu0 0.0
      %3188 = vmatpush1.msra.mxu0 0.0
      %3189 = vmatprep.mubr.f32.mxu0 0.0
      %3190 = vmatmul.mubr.f32.gmra.mrb[0].mxu0 %v3012
      %v3191 = vpop.f32.mrb[0].mxu0
      %v3192 = vadd.f32 0.0, %v3191
      %v3193 = vpop.f32.mrb[0].mxu0
      %v3194 = vadd.f32 0.0, %v3193
      %3195 = vmatprep.mubr.f32.mxu0 0.0
      %3196 = vmatmul.mubr.f32.gmra.mrb[0].mxu0 %v3015
      %v3197 = vpop.f32.mrb[0].mxu0
      %v3198 = vadd.f32 0.0, %v3197
      %v3199 = vpop.f32.mrb[0].mxu0
      %v3200 = vadd.f32 0.0, %v3199
      %3201 = vmatprep.mubr.f32.mxu0 0.0
      %3202 = vmatmul.mubr.f32.gmra.mrb[0].mxu0 %v3018
      %v3203 = vpop.f32.mrb[0].mxu0
      %v3204 = vadd.f32 0.0, %v3203
      %v3205 = vpop.f32.mrb[0].mxu0
      %v3206 = vadd.f32 0.0, %v3205
      %3207 = vmatprep.mubr.f32.mxu0 0.0
      %3208 = vmatmul.mubr.f32.gmra.mrb[0].mxu0 %v3021
      %v3209 = vpop.f32.mrb[0].mxu0
      %v3210 = vadd.f32 0.0, %v3209
      %v3211 = vpop.f32.mrb[0].mxu0
      %v3212 = vadd.f32 0.0, %v3211
      %3213 = vdwg.mxu0
      %v3214 = vld [vmem:[%s6] sm:$0xff]
      %v3215 = vld [vmem:[%s6 + $0x8] sm:$0xff]
      %v3216 = vld [vmem:[%s6 + $0x10] sm:$0xff]
      %v3217 = vld [vmem:[%s6 + $0x18] sm:$0xff]
      %v3218 = vld [vmem:[%s6 + $0x20] sm:$0xff]
      %v3219 = vld [vmem:[%s6 + $0x28] sm:$0xff]
      %v3220 = vld [vmem:[%s6 + $0x30] sm:$0xff]
      %v3221 = vld [vmem:[%s6 + $0x38] sm:$0xff]
      %v3222 = vld [vmem:[%s6 + $0x40] sm:$0xff]
      %v3223 = vld [vmem:[%s6 + $0x48] sm:$0xff]
      %v3224 = vld [vmem:[%s6 + $0x50] sm:$0xff]
      %v3225 = vld [vmem:[%s6 + $0x58] sm:$0xff]
      %v3226 = vld [vmem:[%s6 + $0x60] sm:$0xff]
      %v3227 = vld [vmem:[%s6 + $0x68] sm:$0xff]
      %v3228 = vld [vmem:[%s6 + $0x70] sm:$0xff]
      %v3229 = vld [vmem:[%s6 + $0x78] sm:$0xff]
      %v3230 = vld [vmem:[%s6 + $0x80] sm:$0xff]
      %v3231 = vld [vmem:[%s6 + $0x88] sm:$0xff]
      %v3232 = vld [vmem:[%s6 + $0x90] sm:$0xff]
      %v3233 = vld [vmem:[%s6 + $0x98] sm:$0xff]
      %v3234 = vld [vmem:[%s6 + $0xa0] sm:$0xff]
      %v3235 = vld [vmem:[%s6 + $0xa8] sm:$0xff]
      %v3236 = vld [vmem:[%s6 + $0xb0] sm:$0xff]
      %v3237 = vld [vmem:[%s6 + $0xb8] sm:$0xff]
      %v3238 = vld [vmem:[%s6 + $0xc0] sm:$0xff]
      %v3239 = vld [vmem:[%s6 + $0xc8] sm:$0xff]
      %v3240 = vld [vmem:[%s6 + $0xd0] sm:$0xff]
      %v3241 = vld [vmem:[%s6 + $0xd8] sm:$0xff]
      %v3242 = vld [vmem:[%s6 + $0xe0] sm:$0xff]
      %v3243 = vld [vmem:[%s6 + $0xe8] sm:$0xff]
      %v3244 = vld [vmem:[%s6 + $0xf0] sm:$0xff]
      %v3245 = vld [vmem:[%s6 + $0xf8] sm:$0xff]
      %v3246 = vld [vmem:[%s6 + $0x100] sm:$0xff]
      %v3247 = vld [vmem:[%s6 + $0x108] sm:$0xff]
      %v3248 = vld [vmem:[%s6 + $0x110] sm:$0xff]
      %v3249 = vld [vmem:[%s6 + $0x118] sm:$0xff]
      %v3250 = vld [vmem:[%s6 + $0x120] sm:$0xff]
      %v3251 = vld [vmem:[%s6 + $0x128] sm:$0xff]
      %v3252 = vld [vmem:[%s6 + $0x130] sm:$0xff]
      %v3253 = vld [vmem:[%s6 + $0x138] sm:$0xff]
      %v3254 = vld [vmem:[%s6 + $0x140] sm:$0xff]
      %v3255 = vld [vmem:[%s6 + $0x148] sm:$0xff]
      %v3256 = vld [vmem:[%s6 + $0x150] sm:$0xff]
      %v3257 = vld [vmem:[%s6 + $0x158] sm:$0xff]
      %v3258 = vld [vmem:[%s6 + $0x160] sm:$0xff]
      %v3259 = vld [vmem:[%s6 + $0x168] sm:$0xff]
      %v3260 = vld [vmem:[%s6 + $0x170] sm:$0xff]
      %v3261 = vld [vmem:[%s6 + $0x178] sm:$0xff]
      %v3262 = vld [vmem:[%s6 + $0x180] sm:$0xff]
      %v3263 = vld [vmem:[%s6 + $0x188] sm:$0xff]
      %v3264 = vld [vmem:[%s6 + $0x190] sm:$0xff]
      %v3265 = vld [vmem:[%s6 + $0x198] sm:$0xff]
      %v3266 = vld [vmem:[%s6 + $0x1a0] sm:$0xff]
      %v3267 = vld [vmem:[%s6 + $0x1a8] sm:$0xff]
      %v3268 = vld [vmem:[%s6 + $0x1b0] sm:$0xff]
      %v3269 = vld [vmem:[%s6 + $0x1b8] sm:$0xff]
      %v3270 = vld [vmem:[%s6 + $0x1c0] sm:$0xff]
      %v3271 = vld [vmem:[%s6 + $0x1c8] sm:$0x3f]
      %vm3272 = vcmask 637952
      %v3274 = vsel %vm3272, %v3194, 0
      %v3277 = vsel %vm3272, %v3200, 0
      %v3280 = vsel %vm3272, %v3206, 0
      %v3283 = vsel %vm3272, %v3212, 0
      %vm3285 = vcmask 1045504
      %v3287 = vsel %vm3285, %v3271, 0
      %3289 = vmatprep.subr.mxu0 0.0
      %3290 = vmatpush1.msra.mxu0 %v3214
      %3291 = vmatprep.subr.mxu0 0.0
      %3292 = vmatpush1.msra.mxu0 %v3215
      %3293 = vmatprep.subr.mxu0 0.0
      %3294 = vmatpush1.msra.mxu0 %v3216
      %3295 = vmatprep.subr.mxu0 0.0
      %3296 = vmatpush1.msra.mxu0 %v3217
      %3297 = vmatprep.subr.mxu0 0.0
      %3298 = vmatpush1.msra.mxu0 %v3218
      %3299 = vmatprep.subr.mxu0 0.0
      %3300 = vmatpush1.msra.mxu0 %v3219
      %3301 = vmatprep.subr.mxu0 0.0
      %3302 = vmatpush1.msra.mxu0 %v3220
      %3303 = vmatprep.subr.mxu0 0.0
      %3304 = vmatpush1.msra.mxu0 %v3221
      %3305 = vmatprep.subr.mxu0 0.0
      %3306 = vmatpush1.msra.mxu0 %v3222
      %3307 = vmatprep.subr.mxu0 0.0
      %3308 = vmatpush1.msra.mxu0 %v3223
      %3309 = vmatprep.subr.mxu0 0.0
      %3310 = vmatpush1.msra.mxu0 %v3224
      %3311 = vmatprep.subr.mxu0 0.0
      %3312 = vmatpush1.msra.mxu0 %v3225
      %3313 = vmatprep.subr.mxu0 0.0
      %3314 = vmatpush1.msra.mxu0 %v3226
      %3315 = vmatprep.subr.mxu0 0.0
      %3316 = vmatpush1.msra.mxu0 %v3227
      %3317 = vmatprep.subr.mxu0 0.0
      %3318 = vmatpush1.msra.mxu0 %v3228
      %3319 = vmatprep.subr.mxu0 0.0
      %3320 = vmatpush1.msra.mxu0 %v3229
      %3321 = vmatprep.subr.mxu0 0.0
      %3322 = vmatpush1.msra.mxu0 %v3230
      %3323 = vmatprep.subr.mxu0 0.0
      %3324 = vmatpush1.msra.mxu0 %v3231
      %3325 = vmatprep.subr.mxu0 0.0
      %3326 = vmatpush1.msra.mxu0 %v3232
      %3327 = vmatprep.subr.mxu0 0.0
      %3328 = vmatpush1.msra.mxu0 %v3233
      %3329 = vmatprep.subr.mxu0 0.0
      %3330 = vmatpush1.msra.mxu0 %v3234
      %3331 = vmatprep.subr.mxu0 0.0
      %3332 = vmatpush1.msra.mxu0 %v3235
      %3333 = vmatprep.subr.mxu0 0.0
      %3334 = vmatpush1.msra.mxu0 %v3236
      %3335 = vmatprep.subr.mxu0 0.0
      %3336 = vmatpush1.msra.mxu0 %v3237
      %3337 = vmatprep.subr.mxu0 0.0
      %3338 = vmatpush1.msra.mxu0 %v3238
      %3339 = vmatprep.subr.mxu0 0.0
      %3340 = vmatpush1.msra.mxu0 %v3239
      %3341 = vmatprep.subr.mxu0 0.0
      %3342 = vmatpush1.msra.mxu0 %v3240
      %3343 = vmatprep.subr.mxu0 0.0
      %3344 = vmatpush1.msra.mxu0 %v3241
      %3345 = vmatprep.subr.mxu0 0.0
      %3346 = vmatpush1.msra.mxu0 %v3242
      %3347 = vmatprep.subr.mxu0 0.0
      %3348 = vmatpush1.msra.mxu0 %v3243
      %3349 = vmatprep.subr.mxu0 0.0
      %3350 = vmatpush1.msra.mxu0 %v3244
      %3351 = vmatprep.subr.mxu0 0.0
      %3352 = vmatpush1.msra.mxu0 %v3245
      %3353 = vmatprep.mubr.f32.mxu0 %v3105
      %3354 = vmatmul.mubr.f32.gmra.mrb[0].mxu0 %v3103
      %v3355 = vpop.f32.mrb[0].mxu0
      %v3356 = vadd.f32 0.0, %v3355
      %v3357 = vpop.f32.mrb[0].mxu0
      %3358 = vmatprep.mubr.f32.mxu0 %v3111
      %3359 = vmatmul.mubr.f32.gmra.mrb[0].mxu0 %v3109
      %v3360 = vpop.f32.mrb[0].mxu0
      %v3361 = vadd.f32 0.0, %v3360
      %v3362 = vpop.f32.mrb[0].mxu0
      %3363 = vmatprep.mubr.f32.mxu0 %v3117
      %3364 = vmatmul.mubr.f32.gmra.mrb[0].mxu0 %v3115
      %v3365 = vpop.f32.mrb[0].mxu0
      %v3366 = vadd.f32 0.0, %v3365
      %v3367 = vpop.f32.mrb[0].mxu0
      %3368 = vmatprep.mubr.f32.mxu0 %v3123
      %3369 = vmatmul.mubr.f32.gmra.mrb[0].mxu0 %v3121
      %v3370 = vpop.f32.mrb[0].mxu0
      %v3371 = vadd.f32 0.0, %v3370
      %v3372 = vpop.f32.mrb[0].mxu0
      %3373 = vdwg.mxu0
      %3374 = vmatprep.subr.mxu0 0.0
      %3375 = vmatpush1.msra.mxu0 %v3246
      %3376 = vmatprep.subr.mxu0 0.0
      %3377 = vmatpush1.msra.mxu0 %v3247
      %3378 = vmatprep.subr.mxu0 0.0
      %3379 = vmatpush1.msra.mxu0 %v3248
      %3380 = vmatprep.subr.mxu0 0.0
      %3381 = vmatpush1.msra.mxu0 %v3249
      %3382 = vmatprep.subr.mxu0 0.0
      %3383 = vmatpush1.msra.mxu0 %v3250
      %3384 = vmatprep.subr.mxu0 0.0
      %3385 = vmatpush1.msra.mxu0 %v3251
      %3386 = vmatprep.subr.mxu0 0.0
      %3387 = vmatpush1.msra.mxu0 %v3252
      %3388 = vmatprep.subr.mxu0 0.0
      %3389 = vmatpush1.msra.mxu0 %v3253
      %3390 = vmatprep.subr.mxu0 0.0
      %3391 = vmatpush1.msra.mxu0 %v3254
      %3392 = vmatprep.subr.mxu0 0.0
      %3393 = vmatpush1.msra.mxu0 %v3255
      %3394 = vmatprep.subr.mxu0 0.0
      %3395 = vmatpush1.msra.mxu0 %v3256
      %3396 = vmatprep.subr.mxu0 0.0
      %3397 = vmatpush1.msra.mxu0 %v3257
      %3398 = vmatprep.subr.mxu0 0.0
      %3399 = vmatpush1.msra.mxu0 %v3258
      %3400 = vmatprep.subr.mxu0 0.0
      %3401 = vmatpush1.msra.mxu0 %v3259
      %3402 = vmatprep.subr.mxu0 0.0
      %3403 = vmatpush1.msra.mxu0 %v3260
      %3404 = vmatprep.subr.mxu0 0.0
      %3405 = vmatpush1.msra.mxu0 %v3261
      %3406 = vmatprep.subr.mxu0 0.0
      %3407 = vmatpush1.msra.mxu0 %v3262
      %3408 = vmatprep.subr.mxu0 0.0
      %3409 = vmatpush1.msra.mxu0 %v3263
      %3410 = vmatprep.subr.mxu0 0.0
      %3411 = vmatpush1.msra.mxu0 %v3264
      %3412 = vmatprep.subr.mxu0 0.0
      %3413 = vmatpush1.msra.mxu0 %v3265
      %3414 = vmatprep.subr.mxu0 0.0
      %3415 = vmatpush1.msra.mxu0 %v3266
      %3416 = vmatprep.subr.mxu0 0.0
      %3417 = vmatpush1.msra.mxu0 %v3267
      %3418 = vmatprep.subr.mxu0 0.0
      %3419 = vmatpush1.msra.mxu0 %v3268
      %3420 = vmatprep.subr.mxu0 0.0
      %3421 = vmatpush1.msra.mxu0 %v3269
      %3422 = vmatprep.subr.mxu0 0.0
      %3423 = vmatpush1.msra.mxu0 %v3270
      %3424 = vmatprep.subr.mxu0 0.0
      %3425 = vmatpush1.msra.mxu0 %v3287
      %3426 = vmatprep.subr.mxu0 0.0
      %3427 = vmatpush1.msra.mxu0 0.0
      %3428 = vmatprep.subr.mxu0 0.0
      %3429 = vmatpush1.msra.mxu0 0.0
      %3430 = vmatprep.subr.mxu0 0.0
      %3431 = vmatpush1.msra.mxu0 0.0
      %3432 = vmatprep.subr.mxu0 0.0
      %3433 = vmatpush1.msra.mxu0 0.0
      %3434 = vmatprep.subr.mxu0 0.0
      %3435 = vmatpush1.msra.mxu0 0.0
      %3436 = vmatprep.subr.mxu0 0.0
      %3437 = vmatpush1.msra.mxu0 0.0
      %3438 = vmatprep.mubr.f32.mxu0 %v3274
      %3439 = vmatmul.mubr.f32.gmra.mrb[0].mxu0 %v3192
      %v3440 = vpop.f32.mrb[0].mxu0
      %v3441 = vadd.f32 %v3356, %v3440
      %v3442 = vpop.f32.mrb[0].mxu0
      %3443 = vmatprep.mubr.f32.mxu0 %v3277
      %3444 = vmatmul.mubr.f32.gmra.mrb[0].mxu0 %v3198
      %v3445 = vpop.f32.mrb[0].mxu0
      %v3446 = vadd.f32 %v3361, %v3445
      %v3447 = vpop.f32.mrb[0].mxu0
      %3448 = vmatprep.mubr.f32.mxu0 %v3280
      %3449 = vmatmul.mubr.f32.gmra.mrb[0].mxu0 %v3204
      %v3450 = vpop.f32.mrb[0].mxu0
      %v3451 = vadd.f32 %v3366, %v3450
      %v3452 = vpop.f32.mrb[0].mxu0
      %3453 = vmatprep.mubr.f32.mxu0 %v3283
      %3454 = vmatmul.mubr.f32.gmra.mrb[0].mxu0 %v3210
      %v3455 = vpop.f32.mrb[0].mxu0
      %v3456 = vadd.f32 %v3371, %v3455
      %v3457 = vpop.f32.mrb[0].mxu0
      %3458 = vdwg.mxu0
      %3463 = vrot.lane.b32.xlu0 %v3441, 127
      %v3464 = vpop.permute.xlu0 %3463
      %3465 = vrot.lane.b32.xlu0 %v3446, 127
      %v3466 = vpop.permute.xlu0 %3465
      %3467 = vrot.lane.b32.xlu0 %v3451, 127
      %v3468 = vpop.permute.xlu0 %3467
      %3469 = vrot.lane.b32.xlu0 %v3456, 127
      %v3470 = vpop.permute.xlu0 %3469
      %3475 = vrot.lane.b32.xlu0 %v3441, 126
      %v3476 = vpop.permute.xlu0 %3475
      %3477 = vrot.lane.b32.xlu0 %v3446, 126
      %v3478 = vpop.permute.xlu0 %3477
      %3479 = vrot.lane.b32.xlu0 %v3451, 126
      %v3480 = vpop.permute.xlu0 %3479
      %3481 = vrot.lane.b32.xlu0 %v3456, 126
      %v3482 = vpop.permute.xlu0 %3481
      %3487 = vrot.lane.b32.xlu0 %v3441, 125
      %v3488 = vpop.permute.xlu0 %3487
      %3489 = vrot.lane.b32.xlu0 %v3446, 125
      %v3490 = vpop.permute.xlu0 %3489
      %3491 = vrot.lane.b32.xlu0 %v3451, 125
      %v3492 = vpop.permute.xlu0 %3491
      %3493 = vrot.lane.b32.xlu0 %v3456, 125
      %v3494 = vpop.permute.xlu0 %3493
      %v3499 = vld [vmem:[%s7] sm:$0xff]
      %v3500 = vld [vmem:[%s7 + $0x8] sm:$0xff]
      %v3501 = vld [vmem:[%s7 + $0x10] sm:$0xff]
      %v3502 = vld [vmem:[%s7 + $0x18] sm:$0xff]
      %v3503 = vld [vmem:[%s7 + $0x20] sm:$0xf]
      %v3504 = vld [vmem:[%s8] sm:$0xff]
      %v3505 = vld [vmem:[%s8 + $0x8] sm:$0xff]
      %v3506 = vld [vmem:[%s8 + $0x10] sm:$0xff]
      %v3507 = vld [vmem:[%s8 + $0x18] sm:$0xff]
      %v3508 = vld [vmem:[%s8 + $0x20] sm:$0xf]
      %3510 = vset.pattern.permute.xlu0 0
      %3511 = vperm.xlu0 %3510, %v3504
      %v3512 = vpop.permute.xlu0 %3511
      %3515 = vset.pattern.permute.xlu0 0
      %3516 = vperm.xlu0 %3515, %v3505
      %v3517 = vpop.permute.xlu0 %3516
      %3520 = vset.pattern.permute.xlu0 0
      %3521 = vperm.xlu0 %3520, %v3506
      %v3522 = vpop.permute.xlu0 %3521
      %3525 = vset.pattern.permute.xlu0 0
      %3526 = vperm.xlu0 %3525, %v3507
      %v3527 = vpop.permute.xlu0 %3526
      %3530 = vset.pattern.permute.xlu0 0
      %3531 = vperm.xlu0 %3530, %v3508
      %v3532 = vpop.permute.xlu0 %3531
      %3534 = vmatprep.subr.mxu0 0.0
      %3535 = vmatpush1.msra.mxu0 %v3441
      %3536 = vmatprep.subr.mxu0 0.0
      %3537 = vmatpush1.msra.mxu0 %v3446
      %3538 = vmatprep.subr.mxu0 0.0
      %3539 = vmatpush1.msra.mxu0 %v3451
      %3540 = vmatprep.subr.mxu0 0.0
      %3541 = vmatpush1.msra.mxu0 %v3456
      %3542 = vmatprep.subr.mxu0 0.0
      %3543 = vmatpush1.msra.mxu0 %v3464
      %3544 = vmatprep.subr.mxu0 0.0
      %3545 = vmatpush1.msra.mxu0 %v3466
      %3546 = vmatprep.subr.mxu0 0.0
      %3547 = vmatpush1.msra.mxu0 %v3468
      %3548 = vmatprep.subr.mxu0 0.0
      %3549 = vmatpush1.msra.mxu0 %v3470
      %3550 = vmatprep.subr.mxu0 0.0
      %3551 = vmatpush1.msra.mxu0 %v3476
      %3552 = vmatprep.subr.mxu0 0.0
      %3553 = vmatpush1.msra.mxu0 %v3478
      %3554 = vmatprep.subr.mxu0 0.0
      %3555 = vmatpush1.msra.mxu0 %v3480
      %3556 = vmatprep.subr.mxu0 0.0
      %3557 = vmatpush1.msra.mxu0 %v3482
      %3558 = vmatprep.subr.mxu0 0.0
      %3559 = vmatpush1.msra.mxu0 %v3488
      %3560 = vmatprep.subr.mxu0 0.0
      %3561 = vmatpush1.msra.mxu0 %v3490
      %3562 = vmatprep.subr.mxu0 0.0
      %3563 = vmatpush1.msra.mxu0 %v3492
      %3564 = vmatprep.subr.mxu0 0.0
      %3565 = vmatpush1.msra.mxu0 %v3494
      %3566 = vmatprep.subr.mxu0 0.0
      %3567 = vmatpush1.msra.mxu0 0.0
      %3568 = vmatprep.subr.mxu0 0.0
      %3569 = vmatpush1.msra.mxu0 0.0
      %3570 = vmatprep.subr.mxu0 0.0
      %3571 = vmatpush1.msra.mxu0 0.0
      %3572 = vmatprep.subr.mxu0 0.0
      %3573 = vmatpush1.msra.mxu0 0.0
      %3574 = vmatprep.subr.mxu0 0.0
      %3575 = vmatpush1.msra.mxu0 0.0
      %3576 = vmatprep.subr.mxu0 0.0
      %3577 = vmatpush1.msra.mxu0 0.0
      %3578 = vmatprep.subr.mxu0 0.0
      %3579 = vmatpush1.msra.mxu0 0.0
      %3580 = vmatprep.subr.mxu0 0.0
      %3581 = vmatpush1.msra.mxu0 0.0
      %3582 = vmatprep.subr.mxu0 0.0
      %3583 = vmatpush1.msra.mxu0 0.0
      %3584 = vmatprep.subr.mxu0 0.0
      %3585 = vmatpush1.msra.mxu0 0.0
      %3586 = vmatprep.subr.mxu0 0.0
      %3587 = vmatpush1.msra.mxu0 0.0
      %3588 = vmatprep.subr.mxu0 0.0
      %3589 = vmatpush1.msra.mxu0 0.0
      %3590 = vmatprep.subr.mxu0 0.0
      %3591 = vmatpush1.msra.mxu0 0.0
      %3592 = vmatprep.subr.mxu0 0.0
      %3593 = vmatpush1.msra.mxu0 0.0
      %3594 = vmatprep.subr.mxu0 0.0
      %3595 = vmatpush1.msra.mxu0 0.0
      %3596 = vmatprep.subr.mxu0 0.0
      %3597 = vmatpush1.msra.mxu0 0.0
      %3598 = vmatprep.mubr.f32.mxu0 0.0
      %3599 = vmatmul.mubr.f32.gmra.mrb[0].mxu0 %v3499
      %v3600 = vpop.f32.mrb[0].mxu0
      %v3601 = vadd.f32 %v3512, %v3600
      %v3602 = vpop.f32.mrb[0].mxu0
      %3603 = vmatprep.mubr.f32.mxu0 0.0
      %3604 = vmatmul.mubr.f32.gmra.mrb[0].mxu0 %v3500
      %v3605 = vpop.f32.mrb[0].mxu0
      %v3606 = vadd.f32 %v3517, %v3605
      %v3607 = vpop.f32.mrb[0].mxu0
      %3608 = vmatprep.mubr.f32.mxu0 0.0
      %3609 = vmatmul.mubr.f32.gmra.mrb[0].mxu0 %v3501
      %v3610 = vpop.f32.mrb[0].mxu0
      %v3611 = vadd.f32 %v3522, %v3610
      %v3612 = vpop.f32.mrb[0].mxu0
      %3613 = vmatprep.mubr.f32.mxu0 0.0
      %3614 = vmatmul.mubr.f32.gmra.mrb[0].mxu0 %v3502
      %v3615 = vpop.f32.mrb[0].mxu0
      %v3616 = vadd.f32 %v3527, %v3615
      %v3617 = vpop.f32.mrb[0].mxu0
      %3618 = vmatprep.mubr.f32.mxu0 0.0
      %3619 = vmatmul.mubr.f32.gmra.mrb[0].mxu0 %v3503
      %v3620 = vpop.f32.mrb[0].mxu0
      %v3621 = vadd.f32 %v3532, %v3620
      %v3622 = vpop.f32.mrb[0].mxu0
      %3623 = vdwg.mxu0
      %vm3624 = vcmp.gt.f32.partialorder %v3601, 0.0
      %vm3625 = vcmp.gt.f32.partialorder %v3606, 0.0
      %vm3626 = vcmp.gt.f32.partialorder %v3611, 0.0
      %vm3627 = vcmp.gt.f32.partialorder %v3616, 0.0
      %vm3628 = vcmp.gt.f32.partialorder %v3621, 0.0
      %v3629 = vmin.f32 %v3601, 0.0
      %v3630 = vmin.f32 %v3606, 0.0
      %v3631 = vmin.f32 %v3611, 0.0
      %v3632 = vmin.f32 %v3616, 0.0
      %v3633 = vmin.f32 %v3621, 0.0
      %v3634 = vmul.f32 %v3629, 1.442695
      %v3635 = vpow.pop %v3634
      %v3636 = vmul.f32 %v3630, 1.442695
      %v3637 = vpow.pop %v3636
      %v3638 = vmul.f32 %v3631, 1.442695
      %v3639 = vpow.pop %v3638
      %v3640 = vmul.f32 %v3632, 1.442695
      %v3641 = vpow.pop %v3640
      %v3642 = vmul.f32 %v3633, 1.442695
      %v3643 = vpow.pop %v3642
      %v3644 = vsub.f32 %v3635, 1.0
      %v3645 = vsub.f32 %v3637, 1.0
      %v3646 = vsub.f32 %v3639, 1.0
      %v3647 = vsub.f32 %v3641, 1.0
      %v3648 = vsub.f32 %v3643, 1.0
      %v3649 = vsel %vm3624, %v3601, %v3644
      %v3650 = vsel %vm3625, %v3606, %v3645
      %v3651 = vsel %vm3626, %v3611, %v3646
      %v3652 = vsel %vm3627, %v3616, %v3647
      %v3653 = vsel %vm3628, %v3621, %v3648
      %v3659 = vrot.slane %v3649, 1
      %v3660 = vrot.slane %v3650, 1
      %v3661 = vsel %vm2451, %v3659, %v3660
      %v3662 = vrot.slane %v3651, 1
      %v3663 = vsel %vm2451, %v3660, %v3662
      %v3664 = vrot.slane %v3652, 1
      %v3665 = vsel %vm2451, %v3662, %v3664
      %v3666 = vrot.slane %v3653, 1
      %v3667 = vsel %vm2451, %v3664, %v3666
      %v3673 = vmax.f32 %v3649, %v3661
      %v3674 = vmax.f32 %v3650, %v3663
      %v3675 = vmax.f32 %v3651, %v3665
      %v3676 = vmax.f32 %v3652, %v3667
      %v3677 = vmax.f32 %v3653, %v3666
      %3683 = vrot.lane.b32.xlu0 %v3673, 127
      %v3684 = vpop.permute.xlu0 %3683
      %3685 = vrot.lane.b32.xlu0 %v3674, 127
      %v3686 = vpop.permute.xlu0 %3685
      %3687 = vrot.lane.b32.xlu0 %v3675, 127
      %v3688 = vpop.permute.xlu0 %3687
      %3689 = vrot.lane.b32.xlu0 %v3676, 127
      %v3690 = vpop.permute.xlu0 %3689
      %3691 = vrot.lane.b32.xlu0 %v3677, 127
      %v3692 = vpop.permute.xlu0 %3691
      %v3698 = vmax.f32 %v3673, %v3684
      %v3699 = vmax.f32 %v3674, %v3686
      %v3700 = vmax.f32 %v3675, %v3688
      %v3701 = vmax.f32 %v3676, %v3690
      %v3702 = vmax.f32 %v3677, %v3692
      %3708 = vrot.lane.b32.xlu0 %v3698, 126
      %v3709 = vpop.permute.xlu0 %3708
      %3710 = vrot.lane.b32.xlu0 %v3699, 126
      %v3711 = vpop.permute.xlu0 %3710
      %3712 = vrot.lane.b32.xlu0 %v3700, 126
      %v3713 = vpop.permute.xlu0 %3712
      %3714 = vrot.lane.b32.xlu0 %v3701, 126
      %v3715 = vpop.permute.xlu0 %3714
      %3716 = vrot.lane.b32.xlu0 %v3702, 126
      %v3717 = vpop.permute.xlu0 %3716
      %v3723 = vmax.f32 %v3698, %v3709
      %v3724 = vmax.f32 %v3699, %v3711
      %v3725 = vmax.f32 %v3700, %v3713
      %v3726 = vmax.f32 %v3701, %v3715
      %v3727 = vmax.f32 %v3702, %v3717
      %v3728 = vld [vmem:[%s9] sm:$0xff]
      %v3729 = vld [vmem:[%s9 + $0x8] sm:$0xff]
      %v3730 = vld [vmem:[%s9 + $0x10] sm:$0xff]
      %v3731 = vld [vmem:[%s9 + $0x18] sm:$0xff]
      %v3732 = vld [vmem:[%s9 + $0x20] sm:$0xff]
      %v3733 = vld [vmem:[%s9 + $0x28] sm:$0xff]
      %v3734 = vld [vmem:[%s9 + $0x30] sm:$0xff]
      %v3735 = vld [vmem:[%s9 + $0x38] sm:$0xff]
      %v3736 = vld [vmem:[%s9 + $0x40] sm:$0xff]
      %v3737 = vld [vmem:[%s9 + $0x48] sm:$0xff]
      %vm3738 = vcmask 285696
      %v3740 = vsel %vm3738, %v3728, 0
      %v3743 = vsel %vm3738, %v3729, 0
      %v3746 = vsel %vm3738, %v3730, 0
      %v3749 = vsel %vm3738, %v3731, 0
      %v3752 = vsel %vm3738, %v3732, 0
      %v3755 = vsel %vm3738, %v3733, 0
      %v3758 = vsel %vm3738, %v3734, 0
      %v3761 = vsel %vm3738, %v3735, 0
      %v3764 = vsel %vm3738, %v3736, 0
      %v3767 = vsel %vm3738, %v3737, 0
      %v3770 = vsel %vm3023, %v3727, 0
      %3772 = vmatprep.subr.mxu0 0.0
      %3773 = vmatpush1.msra.mxu0 %v3723
      %3774 = vmatprep.subr.mxu0 0.0
      %3775 = vmatpush1.msra.mxu0 %v3724
      %3776 = vmatprep.subr.mxu0 0.0
      %3777 = vmatpush1.msra.mxu0 %v3725
      %3778 = vmatprep.subr.mxu0 0.0
      %3779 = vmatpush1.msra.mxu0 %v3726
      %3780 = vmatprep.subr.mxu0 0.0
      %3781 = vmatpush1.msra.mxu0 %v3770
      %3782 = vmatprep.subr.mxu0 0.0
      %3783 = vmatpush1.msra.mxu0 0.0
      %3784 = vmatprep.subr.mxu0 0.0
      %3785 = vmatpush1.msra.mxu0 0.0
      %3786 = vmatprep.subr.mxu0 0.0
      %3787 = vmatpush1.msra.mxu0 0.0
      %3788 = vmatprep.subr.mxu0 0.0
      %3789 = vmatpush1.msra.mxu0 0.0
      %3790 = vmatprep.subr.mxu0 0.0
      %3791 = vmatpush1.msra.mxu0 0.0
      %3792 = vmatprep.subr.mxu0 0.0
      %3793 = vmatpush1.msra.mxu0 0.0
      %3794 = vmatprep.subr.mxu0 0.0
      %3795 = vmatpush1.msra.mxu0 0.0
      %3796 = vmatprep.subr.mxu0 0.0
      %3797 = vmatpush1.msra.mxu0 0.0
      %3798 = vmatprep.subr.mxu0 0.0
      %3799 = vmatpush1.msra.mxu0 0.0
      %3800 = vmatprep.subr.mxu0 0.0
      %3801 = vmatpush1.msra.mxu0 0.0
      %3802 = vmatprep.subr.mxu0 0.0
      %3803 = vmatpush1.msra.mxu0 0.0
      %3804 = vmatprep.subr.mxu0 0.0
      %3805 = vmatpush1.msra.mxu0 0.0
      %3806 = vmatprep.subr.mxu0 0.0
      %3807 = vmatpush1.msra.mxu0 0.0
      %3808 = vmatprep.subr.mxu0 0.0
      %3809 = vmatpush1.msra.mxu0 0.0
      %3810 = vmatprep.subr.mxu0 0.0
      %3811 = vmatpush1.msra.mxu0 0.0
      %3812 = vmatprep.subr.mxu0 0.0
      %3813 = vmatpush1.msra.mxu0 0.0
      %3814 = vmatprep.subr.mxu0 0.0
      %3815 = vmatpush1.msra.mxu0 0.0
      %3816 = vmatprep.subr.mxu0 0.0
      %3817 = vmatpush1.msra.mxu0 0.0
      %3818 = vmatprep.subr.mxu0 0.0
      %3819 = vmatpush1.msra.mxu0 0.0
      %3820 = vmatprep.subr.mxu0 0.0
      %3821 = vmatpush1.msra.mxu0 0.0
      %3822 = vmatprep.subr.mxu0 0.0
      %3823 = vmatpush1.msra.mxu0 0.0
      %3824 = vmatprep.subr.mxu0 0.0
      %3825 = vmatpush1.msra.mxu0 0.0
      %3826 = vmatprep.subr.mxu0 0.0
      %3827 = vmatpush1.msra.mxu0 0.0
      %3828 = vmatprep.subr.mxu0 0.0
      %3829 = vmatpush1.msra.mxu0 0.0
      %3830 = vmatprep.subr.mxu0 0.0
      %3831 = vmatpush1.msra.mxu0 0.0
      %3832 = vmatprep.subr.mxu0 0.0
      %3833 = vmatpush1.msra.mxu0 0.0
      %3834 = vmatprep.subr.mxu0 0.0
      %3835 = vmatpush1.msra.mxu0 0.0
      %3836 = vmatprep.mubr.f32.mxu0 0.0
      %3837 = vmatmul.mubr.f32.gmra.mrb[0].mxu0 %v3740
      %v3838 = vpop.f32.mrb[0].mxu0
      %v3839 = vadd.f32 0.0, %v3838
      %v3840 = vpop.f32.mrb[0].mxu0
      %3841 = vmatprep.mubr.f32.mxu0 0.0
      %3842 = vmatmul.mubr.f32.gmra.mrb[0].mxu0 %v3743
      %v3843 = vpop.f32.mrb[0].mxu0
      %v3844 = vadd.f32 0.0, %v3843
      %v3845 = vpop.f32.mrb[0].mxu0
      %3846 = vmatprep.mubr.f32.mxu0 0.0
      %3847 = vmatmul.mubr.f32.gmra.mrb[0].mxu0 %v3746
      %v3848 = vpop.f32.mrb[0].mxu0
      %v3849 = vadd.f32 0.0, %v3848
      %v3850 = vpop.f32.mrb[0].mxu0
      %3851 = vmatprep.mubr.f32.mxu0 0.0
      %3852 = vmatmul.mubr.f32.gmra.mrb[0].mxu0 %v3749
      %v3853 = vpop.f32.mrb[0].mxu0
      %v3854 = vadd.f32 0.0, %v3853
      %v3855 = vpop.f32.mrb[0].mxu0
      %3856 = vmatprep.mubr.f32.mxu0 0.0
      %3857 = vmatmul.mubr.f32.gmra.mrb[0].mxu0 %v3752
      %v3858 = vpop.f32.mrb[0].mxu0
      %v3859 = vadd.f32 0.0, %v3858
      %v3860 = vpop.f32.mrb[0].mxu0
      %3861 = vmatprep.mubr.f32.mxu0 0.0
      %3862 = vmatmul.mubr.f32.gmra.mrb[0].mxu0 %v3755
      %v3863 = vpop.f32.mrb[0].mxu0
      %v3864 = vadd.f32 0.0, %v3863
      %v3865 = vpop.f32.mrb[0].mxu0
      %3866 = vmatprep.mubr.f32.mxu0 0.0
      %3867 = vmatmul.mubr.f32.gmra.mrb[0].mxu0 %v3758
      %v3868 = vpop.f32.mrb[0].mxu0
      %v3869 = vadd.f32 0.0, %v3868
      %v3870 = vpop.f32.mrb[0].mxu0
      %3871 = vmatprep.mubr.f32.mxu0 0.0
      %3872 = vmatmul.mubr.f32.gmra.mrb[0].mxu0 %v3761
      %v3873 = vpop.f32.mrb[0].mxu0
      %v3874 = vadd.f32 0.0, %v3873
      %v3875 = vpop.f32.mrb[0].mxu0
      %3876 = vmatprep.mubr.f32.mxu0 0.0
      %3877 = vmatmul.mubr.f32.gmra.mrb[0].mxu0 %v3764
      %v3878 = vpop.f32.mrb[0].mxu0
      %v3879 = vadd.f32 0.0, %v3878
      %v3880 = vpop.f32.mrb[0].mxu0
      %3881 = vmatprep.mubr.f32.mxu0 0.0
      %3882 = vmatmul.mubr.f32.gmra.mrb[0].mxu0 %v3767
      %v3883 = vpop.f32.mrb[0].mxu0
      %v3884 = vadd.f32 0.0, %v3883
      %v3885 = vpop.f32.mrb[0].mxu0
      %3886 = vdwg.mxu0
      %v3887 = vld [vmem:[%s11] sm:$0x1f]
      %v3888 = vld [vmem:[%s10] sm:$0xff]
      %v3889 = vld [vmem:[%s10 + $0x8] sm:$0xff]
      %v3890 = vld [vmem:[%s10 + $0x10] sm:$0xff]
      %v3891 = vld [vmem:[%s10 + $0x18] sm:$0xff]
      %v3892 = vld [vmem:[%s10 + $0x20] sm:$0xff]
      %v3893 = vld [vmem:[%s10 + $0x28] sm:$0xff]
      %v3894 = vld [vmem:[%s10 + $0x30] sm:$0xff]
      %v3895 = vld [vmem:[%s10 + $0x38] sm:$0xff]
      %v3896 = vld [vmem:[%s10 + $0x40] sm:$0xff]
      %v3897 = vld [vmem:[%s10 + $0x48] sm:$0xff]
      %v3898 = vmul.f32 %v3888, %v3839
      %v3899 = vmul.f32 %v3889, %v3844
      %v3900 = vmul.f32 %v3890, %v3849
      %v3901 = vmul.f32 %v3891, %v3854
      %v3902 = vmul.f32 %v3892, %v3859
      %v3903 = vmul.f32 %v3893, %v3864
      %v3904 = vmul.f32 %v3894, %v3869
      %v3905 = vmul.f32 %v3895, %v3874
      %v3906 = vmul.f32 %v3896, %v3879
      %v3907 = vmul.f32 %v3897, %v3884
      %vm3908 = vcmask 654336
      %v3910 = vsel %vm3908, %v3887, 0
      %3912 = vmatprep.subr.mxu0 0.0
      %3913 = vmatpush1.msra.mxu0 %v3898
      %3914 = vmatprep.subr.mxu0 0.0
      %3915 = vmatpush1.msra.mxu0 %v3899
      %3916 = vmatprep.subr.mxu0 0.0
      %3917 = vmatpush1.msra.mxu0 %v3900
      %3918 = vmatprep.subr.mxu0 0.0
      %3919 = vmatpush1.msra.mxu0 %v3901
      %3920 = vmatprep.subr.mxu0 0.0
      %3921 = vmatpush1.msra.mxu0 %v3902
      %3922 = vmatprep.subr.mxu0 0.0
      %3923 = vmatpush1.msra.mxu0 %v3903
      %3924 = vmatprep.subr.mxu0 0.0
      %3925 = vmatpush1.msra.mxu0 %v3904
      %3926 = vmatprep.subr.mxu0 0.0
      %3927 = vmatpush1.msra.mxu0 %v3905
      %3928 = vmatprep.subr.mxu0 0.0
      %3929 = vmatpush1.msra.mxu0 %v3906
      %3930 = vmatprep.subr.mxu0 0.0
      %3931 = vmatpush1.msra.mxu0 %v3907
      %3932 = vmatprep.subr.mxu0 0.0
      %3933 = vmatpush1.msra.mxu0 0.0
      %3934 = vmatprep.subr.mxu0 0.0
      %3935 = vmatpush1.msra.mxu0 0.0
      %3936 = vmatprep.subr.mxu0 0.0
      %3937 = vmatpush1.msra.mxu0 0.0
      %3938 = vmatprep.subr.mxu0 0.0
      %3939 = vmatpush1.msra.mxu0 0.0
      %3940 = vmatprep.subr.mxu0 0.0
      %3941 = vmatpush1.msra.mxu0 0.0
      %3942 = vmatprep.subr.mxu0 0.0
      %3943 = vmatpush1.msra.mxu0 0.0
      %3944 = vmatprep.subr.mxu0 0.0
      %3945 = vmatpush1.msra.mxu0 0.0
      %3946 = vmatprep.subr.mxu0 0.0
      %3947 = vmatpush1.msra.mxu0 0.0
      %3948 = vmatprep.subr.mxu0 0.0
      %3949 = vmatpush1.msra.mxu0 0.0
      %3950 = vmatprep.subr.mxu0 0.0
      %3951 = vmatpush1.msra.mxu0 0.0
      %3952 = vmatprep.subr.mxu0 0.0
      %3953 = vmatpush1.msra.mxu0 0.0
      %3954 = vmatprep.subr.mxu0 0.0
      %3955 = vmatpush1.msra.mxu0 0.0
      %3956 = vmatprep.subr.mxu0 0.0
      %3957 = vmatpush1.msra.mxu0 0.0
      %3958 = vmatprep.subr.mxu0 0.0
      %3959 = vmatpush1.msra.mxu0 0.0
      %3960 = vmatprep.subr.mxu0 0.0
      %3961 = vmatpush1.msra.mxu0 0.0
      %3962 = vmatprep.subr.mxu0 0.0
      %3963 = vmatpush1.msra.mxu0 0.0
      %3964 = vmatprep.subr.mxu0 0.0
      %3965 = vmatpush1.msra.mxu0 0.0
      %3966 = vmatprep.subr.mxu0 0.0
      %3967 = vmatpush1.msra.mxu0 0.0
      %3968 = vmatprep.subr.mxu0 0.0
      %3969 = vmatpush1.msra.mxu0 0.0
      %3970 = vmatprep.subr.mxu0 0.0
      %3971 = vmatpush1.msra.mxu0 0.0
      %3972 = vmatprep.subr.mxu0 0.0
      %3973 = vmatpush1.msra.mxu0 0.0
      %3974 = vmatprep.subr.mxu0 0.0
      %3975 = vmatpush1.msra.mxu0 0.0
      %3976 = vmatprep.mubr.f32.mxu0 0.0
      %3977 = vmatmul.mubr.f32.gmra.mrb[0].mxu0 %v3910
      %v3978 = vpop.f32.mrb[0].mxu0
      %v3979 = vadd.f32 0.0, %v3978
      %v3980 = vpop.f32.mrb[0].mxu0
      %3981 = vdwg.mxu0
      %vm3982 = vcmask 897024
      %v3983 = vsel %vm3982, %v3979, 0.0
      %3984 = vadd.xlane.f32.xlu0 %v3983
      %v3985 = vpop.xlane.xlu0 %3984
      %v3986 = vld [vmem:[%s12] sm:$0x1f]
      %v3987 = vadd.f32 %v3985, %v3986
      %vm3988 = vcmask 4096
      %3989 = vst.msk [vmem:[%s438] sm:$0x1f] %vm3988, %v3987
      %p3990 = scmp.lt.s32.totalorder %s24, 1
      %s3991 = scalar_select %p3990, %s24, 1
      %s3992 = smul.addr %s3991, 8
      %s3993 = scalar_lea.vmem %s13, %s3992
      // Predicated region
      $region73: #{net_forward.1} parent=71 // pred_check
        %p3994 = pneg %p320
      $region74: #{net_forward.1} parent=71 // pred_check_branch
        %3996 = sbr.rel (%p3994) target = $region76
      $region75: #{net_forward.1} parent=71 // pred_region
        _
      $region76: #{net_forward.1} parent=71 // pred_fallthru
        _
    $region72: #{net_forward.1} parent=5 // pred_fallthru
      _
    %p3997 = scmp.le.s32.totalorder 2, %s19
    // Predicated region
    $region77: #{net_forward.1} parent=5 // pred_check
      %p3998 = pneg %p3997
    $region78: #{net_forward.1} parent=5 // pred_check_branch
      %4000 = sbr.rel (%p3998) target = $region80
    $region79: #{net_forward.1} parent=5 // pred_region
      %s4001 = ssub.s32 %s19, 2
      // Predicated region
      $region81: #{net_forward.1} parent=79 // pred_check
        %p4002 = pneg %p326
      $region82: #{net_forward.1} parent=79 // pred_check_branch
        %4004 = sbr.rel (%p4002) target = $region84
      $region83: #{net_forward.1} parent=79 // pred_region
        %p4005 = scmp.lt.s32.totalorder %s25, 1
        %s4006 = scalar_select %p4005, %s25, 1
        %s4007 = smul.addr %s4006, 8
        %s4008 = scalar_lea.vmem %s13, %s4007
      $region84: #{net_forward.1} parent=79 // pred_fallthru
        _
    $region80: #{net_forward.1} parent=5 // pred_fallthru
      _
  $region6: #{net_forward.1} parent=0 // loop_footer
    %s23 = sadd.s32 1, %s19
  $region7: #{net_forward.1} parent=0 // loop_footer_branch
    %18 = sbr.rel target = $region3
  $region8: #{net_forward.1} parent=0 // loop_exit
    _

</llo_original>
